<compile_context>
chip_gen: v5e
topology: v5e:2x2
jax: 0.10.0
libtpu: 0.0.40
codegen_flags: <defaults>
</compile_context>

<pallas_src>
import functools
import math

import jax
import jax.numpy as jnp
from jax import lax
from jax.experimental import pallas as pl
from jax.experimental.pallas import tpu as pltpu

# Exact f32 matmuls everywhere (reference and kernel trace) so the folded
# kernel and the unfolded reference agree to tight tolerance.
jax.config.update("jax_default_matmul_precision", "highest")

# BBHeavyAtom indices (N, CA, C are the first three backbone heavy atoms).
BB_N, BB_CA, BB_C = 0, 1, 2
AA_UNK = 21               # AA.UNK
NUM_ANGULAR_FUNCS = 3     # AngularEncoding(num_funcs=3) default


def _round_up(x, m):
    return ((x + m - 1) // m) * m


# ---------------------------------------------------------------------------
# Cheap per-residue geometry (plain JAX; shared by kernel wrapper & reference)
# ---------------------------------------------------------------------------

def _normalize(v, eps=1e-6):
    return v / (jnp.linalg.norm(v, axis=-1, keepdims=True) + eps)


def construct_3d_basis(center, p1, p2):
    """Gram-Schmidt basis from CA (center), C (p1), N (p2) -> (..., 3, 3)."""
    v1 = p1 - center
    e1 = _normalize(v1)
    v2 = p2 - center
    u2 = v2 - jnp.sum(e1 * v2, axis=-1, keepdims=True) * e1
    e2 = _normalize(u2)
    e3 = jnp.cross(e1, e2)
    return jnp.stack([e1, e2, e3], axis=-1)


def global_to_local(R, t, q):
    """p = R^T (q - t).  R: (N,L,3,3), t: (N,L,3), q: (N,L,A,3)."""
    return jnp.einsum("nlji,nlaj->nlai", R, q - t[:, :, None, :])


def dihedral_from_four_points(p0, p1, p2, p3):
    v0 = p2 - p1
    v1 = p0 - p1
    v2 = p3 - p2
    u1 = jnp.cross(v0, v1)
    n1 = u1 / jnp.linalg.norm(u1, axis=-1, keepdims=True)
    u2 = jnp.cross(v0, v2)
    n2 = u2 / jnp.linalg.norm(u2, axis=-1, keepdims=True)
    sgn = jnp.sign(jnp.sum(jnp.cross(v1, v2) * v0, axis=-1))
    dihed = sgn * jnp.arccos(jnp.clip(jnp.sum(n1 * n2, axis=-1),
                                      -0.999999, 0.999999))
    return jnp.nan_to_num(dihed)


def get_backbone_dihedral_angles(pos_atoms, res_nb, mask_residue):
    """Omega/Phi/Psi angles (N,L,3) and their masks (N,L,3); chain_nb == 0."""
    pos_N = pos_atoms[:, :, BB_N]
    pos_CA = pos_atoms[:, :, BB_CA]
    pos_C = pos_atoms[:, :, BB_C]

    mask_b = mask_residue.astype(bool)
    consec = (jnp.abs(res_nb[:, 1:] - res_nb[:, :-1]) == 1)
    consec = consec & mask_b[:, :-1] & mask_b[:, 1:]
    n_term = jnp.pad(~consec, ((0, 0), (1, 0)), constant_values=True)
    c_term = jnp.pad(~consec, ((0, 0), (0, 1)), constant_values=True)

    omega = jnp.pad(dihedral_from_four_points(pos_CA[:, :-1], pos_C[:, :-1],
                                              pos_N[:, 1:], pos_CA[:, 1:]),
                    ((0, 0), (1, 0)))
    phi = jnp.pad(dihedral_from_four_points(pos_C[:, :-1], pos_N[:, 1:],
                                            pos_CA[:, 1:], pos_C[:, 1:]),
                  ((0, 0), (1, 0)))
    psi = jnp.pad(dihedral_from_four_points(pos_N[:, :-1], pos_CA[:, :-1],
                                            pos_C[:, :-1], pos_N[:, 1:]),
                  ((0, 0), (0, 1)))

    mask_bb_dihed = jnp.stack([~n_term, ~n_term, ~c_term],
                              axis=-1).astype(jnp.float32)
    bb_dihedral = jnp.stack([omega, phi, psi], axis=-1) * mask_bb_dihed
    return bb_dihedral, mask_bb_dihed


def angular_encoding(x):
    """x: (..., d) -> (..., d, 1 + 4*NUM_ANGULAR_FUNCS)."""
    freq = jnp.array([i + 1.0 for i in range(NUM_ANGULAR_FUNCS)]
                     + [1.0 / (i + 1.0) for i in range(NUM_ANGULAR_FUNCS)],
                     jnp.float32)
    xe = x[..., None]
    return jnp.concatenate([xe, jnp.sin(xe * freq), jnp.cos(xe * freq)], axis=-1)


def _prepare_features(aa, res_nb, pos_atoms, mask_atoms,
                      structure_mask, sequence_mask, max_num_atoms):
    """Shared preprocessing: masked aa, local coords, dihedral features."""
    N, L = aa.shape
    A = max_num_atoms
    aa = aa.astype(jnp.int32)
    mask_residue = mask_atoms[:, :, BB_CA]
    pos = pos_atoms[:, :, :A].astype(jnp.float32)
    matoms = mask_atoms[:, :, :A]

    if sequence_mask is not None:
        aa = jnp.where(sequence_mask, aa, jnp.full_like(aa, AA_UNK))

    R = construct_3d_basis(pos[:, :, BB_CA], pos[:, :, BB_C], pos[:, :, BB_N])
    t = pos[:, :, BB_CA]
    crd = global_to_local(R, t, pos)
    crd = jnp.where(matoms[..., None], crd, 0.0)
    crd_flat = crd.reshape(N, L, A * 3)
    if structure_mask is not None:
        crd_flat = crd_flat * structure_mask[..., None].astype(jnp.float32)

    bb_dihedral, mask_bb_dihed = get_backbone_dihedral_angles(
        pos, res_nb, mask_residue.astype(jnp.float32))
    dihed_feat = (angular_encoding(bb_dihedral)
                  * mask_bb_dihed[..., None]).reshape(N, L, -1)
    if structure_mask is not None:
        sm = structure_mask.astype(bool)
        dihed_mask = sm & jnp.roll(sm, 1, axis=1) & jnp.roll(sm, -1, axis=1)
        dihed_feat = dihed_feat * dihed_mask[..., None].astype(jnp.float32)

    return aa, crd_flat, dihed_feat, mask_residue.astype(jnp.float32)


# ---------------------------------------------------------------------------
# Pallas kernel: fused layer 1 (one matmul + VPU reduce) + dense MLP tail
# ---------------------------------------------------------------------------

def _residue_mlp_kernel(x_ref, w1_ref, b1_ref, w2_ref, b2_ref,
                        w3_ref, b3_ref, w4_ref, b4_ref, out_ref,
                        *, A3, Hp, crd_off, mask_off):
    x = x_ref[...]                                              # (T, Win)

    # Layer 1: ONE fused MXU matmul -> [dense part | A3 coordinate slabs].
    y = jnp.dot(x, w1_ref[...], preferred_element_type=jnp.float32)

    pre = y[:, :Hp] + b1_ref[...]
    # Coordinate-weighted slab reduce: pure VPU multiply-add chain; every
    # slice is 128-lane aligned (Hp is a multiple of 128).
    for ad in range(A3):
        lo = (ad + 1) * Hp
        pre = pre + x[:, crd_off + ad:crd_off + ad + 1] * y[:, lo:lo + Hp]

    # Remaining MLP: ReLU -> Linear -> ReLU -> Linear -> ReLU -> Linear.
    h = jnp.maximum(pre, 0.0)
    h = jnp.maximum(jnp.dot(h, w2_ref[...],
                            preferred_element_type=jnp.float32) + b2_ref[...], 0.0)
    h = jnp.maximum(jnp.dot(h, w3_ref[...],
                            preferred_element_type=jnp.float32) + b3_ref[...], 0.0)
    out = jnp.dot(h, w4_ref[...],
                  preferred_element_type=jnp.float32) + b4_ref[...]

    out_ref[...] = out * x[:, mask_off:mask_off + 1]            # residue mask


def residue_embedding(params, aa, res_nb, pos_atoms, mask_atoms,
                      structure_mask=None, sequence_mask=None,
                      *, max_num_atoms, max_aa_types=22):
    """Pallas implementation of ResidueEmbedding.forward -> (N, L, feat_dim)."""
    N, L = aa.shape
    A = max_num_atoms
    A3 = A * 3
    V = max_aa_types
    F = params["aa_tab"].shape[1]
    H = 2 * F
    Hp = _round_up(H, 128)          # lane-dense hidden width
    Fp = _round_up(F, 128)          # lane-dense output width

    aa_m, crd_flat, dihed_feat, mask_res = _prepare_features(
        aa, res_nb, pos_atoms, mask_atoms, structure_mask, sequence_mask, A)
    Dd = dihed_feat.shape[-1]

    # ---- fold the first Linear into one block weight (done once in XLA).
    W1 = params["w1"]                                   # (F + V*A3 + Dd, H)
    W1_aa = W1[:F]                                      # (F, H)
    W1_crd = W1[F:F + V * A3].reshape(V, A3, H)         # (V, A3, H)
    W1_dh = W1[F + V * A3:]                             # (Dd, H)
    Taa = jnp.dot(params["aa_tab"], W1_aa)              # (V, H) fused table

    Kfeat = V + Dd + A3 + 1                             # one-hot|dihed|crd|mask
    Win = _round_up(Kfeat, 128)
    crd_off = V + Dd
    mask_off = V + Dd + A3
    Wout1 = (A3 + 1) * Hp

    W1F = jnp.zeros((Win, Wout1), jnp.float32)
    W1F = W1F.at[:V, :H].set(Taa)
    W1F = W1F.at[V:V + Dd, :H].set(W1_dh)
    slab = jnp.zeros((V, A3, Hp), jnp.float32).at[:, :, :H].set(W1_crd)
    W1F = W1F.at[:V, Hp:].set(slab.reshape(V, A3 * Hp))
    # crd / mask / padding rows of W1F stay zero: they pass through the matmul
    # without contributing; crd enters only via the VPU slab reduce.

    def pad2(w, r, c):
        return jnp.zeros((r, c), jnp.float32).at[:w.shape[0], :w.shape[1]].set(w)

    b1p = pad2(params["b1"], 1, Hp)
    W2p = pad2(params["w2"], Hp, Fp)
    b2p = pad2(params["b2"], 1, Fp)
    W3p = pad2(params["w3"], Fp, Fp)
    b3p = pad2(params["b3"], 1, Fp)
    W4p = pad2(params["w4"], Fp, Fp)
    b4p = pad2(params["b4"], 1, Fp)

    # ---- pack all per-row inputs into one lane-dense block (one DMA / step).
    rows = N * L
    oh = (aa_m.reshape(rows)[:, None] == jnp.arange(V)).astype(jnp.float32)
    feat = jnp.concatenate(
        [oh,
         dihed_feat.reshape(rows, Dd),
         crd_flat.reshape(rows, A3),
         mask_res.reshape(rows, 1)], axis=1)             # (rows, Kfeat)

    # ---- row tile: large (overhead amortization) but >= 2 grid steps (v7x).
    T = min(1024, _round_up(rows, 8))
    rows_pad = _round_up(rows, T)
    if rows_pad // T < 2 and rows > 8:
        T = _round_up((rows + 1) // 2, 8)
        rows_pad = _round_up(rows, T)

    x_p = jnp.pad(feat, ((0, rows_pad - rows), (0, Win - Kfeat)))

    # VMEM budget: weights (double-buffered) + row blocks + layer-1 result.
    weight_bytes = 4 * (W1F.size + b1p.size + W2p.size + b2p.size
                        + W3p.size + b3p.size + W4p.size + b4p.size)
    row_bytes = 4 * T * (Win + Fp + Wout1 + Hp)
    vmem_limit = int(max(32 * 2 ** 20,
                         min(64 * 2 ** 20, 2 * weight_bytes + 3 * row_bytes)))

    kernel = functools.partial(_residue_mlp_kernel, A3=A3, Hp=Hp,
                               crd_off=crd_off, mask_off=mask_off)

    full = lambda r, c: pl.BlockSpec((r, c), lambda i: (0, 0))
    row_block = lambda c: pl.BlockSpec((T, c), lambda i: (i, 0))

    # NOTE: constant-weight blocks could be single-buffered via
    # pipeline_mode=pl.Buffered(1); skipped (negligible VMEM at these sizes).
    out = pl.pallas_call(
        kernel,
        out_shape=jax.ShapeDtypeStruct((rows_pad, Fp), jnp.float32),
        grid_spec=pltpu.PrefetchScalarGridSpec(
            num_scalar_prefetch=0,
            grid=(rows_pad // T,),
            in_specs=[
                row_block(Win),                          # packed row block
                full(Win, Wout1),                        # fused layer-1 weight
                full(1, Hp),                             # b1 (padded)
                full(Hp, Fp), full(1, Fp),               # W2, b2
                full(Fp, Fp), full(1, Fp),               # W3, b3
                full(Fp, Fp), full(1, Fp),               # W4, b4
            ],
            out_specs=row_block(Fp),
        ),
        compiler_params=pltpu.CompilerParams(
            dimension_semantics=("parallel",),
            vmem_limit_bytes=vmem_limit),
    )(x_p, W1F, b1p, W2p, b2p, W3p, b3p, W4p, b4p)

    return out[:rows, :F].reshape(N, L, F)


# ---------------------------------------------------------------------------
# Parameters + pure-JAX reference (mirrors the PyTorch forward, no folding)
# ---------------------------------------------------------------------------

def init_params(key, feat_dim, max_num_atoms, max_aa_types=22):
    A = max_num_atoms
    dihed_dim = 3 * (1 + 4 * NUM_ANGULAR_FUNCS)
    infeat = feat_dim + max_aa_types * A * 3 + dihed_dim
    ks = jax.random.split(key, 9)
    aa_tab = jax.random.normal(ks[0], (max_aa_types, feat_dim), jnp.float32)

    def linear(kw, kb, fan_in, fan_out):
        lim = 1.0 / math.sqrt(fan_in)
        w = jax.random.uniform(kw, (fan_in, fan_out), jnp.float32, -lim, lim)
        b = jax.random.uniform(kb, (1, fan_out), jnp.float32, -lim, lim)
        return w, b

    w1, b1 = linear(ks[1], ks[2], infeat, 2 * feat_dim)
    w2, b2 = linear(ks[3], ks[4], 2 * feat_dim, feat_dim)
    w3, b3 = linear(ks[5], ks[6], feat_dim, feat_dim)
    w4, b4 = linear(ks[7], ks[8], feat_dim, feat_dim)
    return dict(aa_tab=aa_tab, w1=w1, b1=b1, w2=w2, b2=b2,
                w3=w3, b3=b3, w4=w4, b4=b4)


def reference(params, aa, res_nb, pos_atoms, mask_atoms,
              structure_mask=None, sequence_mask=None,
              *, max_num_atoms, max_aa_types=22):
    N, L = aa.shape
    A = max_num_atoms
    aa_m, crd_flat, dihed_feat, mask_res = _prepare_features(
        aa, res_nb, pos_atoms, mask_atoms, structure_mask, sequence_mask, A)

    aa_feat = params["aa_tab"][aa_m]                              # (N, L, F)
    place = (aa_m[:, :, None] == jnp.arange(max_aa_types)).astype(jnp.float32)
    crd_feat = (place[:, :, :, None] * crd_flat[:, :, None, :]
                ).reshape(N, L, max_aa_types * A * 3)
    feat = jnp.concatenate([aa_feat, crd_feat, dihed_feat], axis=-1)

    h = jnp.maximum(feat @ params["w1"] + params["b1"][0], 0.0)
    h = jnp.maximum(h @ params["w2"] + params["b2"][0], 0.0)
    h = jnp.maximum(h @ params["w3"] + params["b3"][0], 0.0)
    out = h @ params["w4"] + params["b4"][0]
    return out * mask_res[..., None]


if __name__ == "__main__":
    # Small demo shapes: batch N=2, seq L=8, feat_dim=32, max_num_atoms=4.
    N, L, F, A = 2, 8, 32, 4
    key = jax.random.PRNGKey(0)
    k_par, k_aa, k_res, k_mask, k_pos = jax.random.split(key, 5)

    params = init_params(k_par, F, max_num_atoms=A)

    aa = jax.random.randint(k_aa, (N, L), 0, 22, dtype=jnp.int32)
    # Increments in {1, 2}: mixes consecutive / non-consecutive residues.
    res_nb = jnp.cumsum(jax.random.randint(k_res, (N, L), 1, 3, dtype=jnp.int32),
                        axis=1)
    mask_atoms = jax.random.bernoulli(k_mask, 0.9, (N, L, A))
    pos_atoms = jax.random.normal(k_pos, (N, L, A, 3), jnp.float32)

    out = residue_embedding(params, aa, res_nb, pos_atoms, mask_atoms,
                            max_num_atoms=A)
    out = jax.block_until_ready(out)

    ref = reference(params, aa, res_nb, pos_atoms, mask_atoms, max_num_atoms=A)
    assert out.shape == (N, L, F)
    err = float(jnp.max(jnp.abs(out - ref)))
    assert err < 1e-3, f"mismatch vs reference: max abs err = {err}"

    print("KERNEL_OK")
</pallas_src>

<mosaic_0001>
module attributes {stable_mosaic.version = 11 : i64} {
  func.func @_residue_mlp_kernel(%arg0: i32, %arg1: memref<8x128xf32, #tpu.memory_space<vmem>>, %arg2: memref<128x1664xf32, #tpu.memory_space<vmem>>, %arg3: memref<1x128xf32, #tpu.memory_space<vmem>>, %arg4: memref<128x128xf32, #tpu.memory_space<vmem>>, %arg5: memref<1x128xf32, #tpu.memory_space<vmem>>, %arg6: memref<128x128xf32, #tpu.memory_space<vmem>>, %arg7: memref<1x128xf32, #tpu.memory_space<vmem>>, %arg8: memref<128x128xf32, #tpu.memory_space<vmem>>, %arg9: memref<1x128xf32, #tpu.memory_space<vmem>>, %arg10: memref<8x128xf32, #tpu.memory_space<vmem>>) attributes {dimension_semantics = [#tpu.dimension_semantics<parallel>], iteration_bounds = array<i64: 2>, scalar_prefetch = 0 : i64, scratch_operands = 0 : i64, tpu.core_type = #tpu.core_type<tc>, window_params = [{transform_indices = @transform_0, window_bounds = array<i64: 8, 128>}, {pipeline_mode = #tpu.pipeline_mode<synchronous>, transform_indices = @transform_1, window_bounds = array<i64: 128, 1664>}, {pipeline_mode = #tpu.pipeline_mode<synchronous>, transform_indices = @transform_2, window_bounds = array<i64: 1, 128>}, {pipeline_mode = #tpu.pipeline_mode<synchronous>, transform_indices = @transform_3, window_bounds = array<i64: 128, 128>}, {pipeline_mode = #tpu.pipeline_mode<synchronous>, transform_indices = @transform_4, window_bounds = array<i64: 1, 128>}, {pipeline_mode = #tpu.pipeline_mode<synchronous>, transform_indices = @transform_5, window_bounds = array<i64: 128, 128>}, {pipeline_mode = #tpu.pipeline_mode<synchronous>, transform_indices = @transform_6, window_bounds = array<i64: 1, 128>}, {pipeline_mode = #tpu.pipeline_mode<synchronous>, transform_indices = @transform_7, window_bounds = array<i64: 128, 128>}, {pipeline_mode = #tpu.pipeline_mode<synchronous>, transform_indices = @transform_8, window_bounds = array<i64: 1, 128>}, {transform_indices = @transform_9, window_bounds = array<i64: 8, 128>}]} {
    %c0 = arith.constant 0 : index
    %c0_0 = arith.constant 0 : index
    %0 = vector.load %arg1[%c0, %c0_0] : memref<8x128xf32, #tpu.memory_space<vmem>>, vector<8x128xf32>
    %c0_1 = arith.constant 0 : index
    %c0_2 = arith.constant 0 : index
    %1 = vector.load %arg2[%c0_1, %c0_2] : memref<128x1664xf32, #tpu.memory_space<vmem>>, vector<128x1664xf32>
    %cst = arith.constant dense<0.000000e+00> : vector<8x1664xf32>
    %2 = tpu.matmul %0, %1, %cst {dimension_numbers = #tpu.dot_dimension_numbers<[1], [0], [0], [1], [0, 0, 1, 1], [], []>, precision = #tpu.contract_precision<fp32>} : vector<8x128xf32>, vector<128x1664xf32>, vector<8x1664xf32> -> vector<8x1664xf32>
    %3 = vector.extract_strided_slice %2 {offsets = [0, 0], sizes = [8, 128], strides = [1, 1]} : vector<8x1664xf32> to vector<8x128xf32>
    %c0_3 = arith.constant 0 : index
    %c0_4 = arith.constant 0 : index
    %4 = vector.load %arg3[%c0_3, %c0_4] : memref<1x128xf32, #tpu.memory_space<vmem>>, vector<1x128xf32>
    %5 = vector.broadcast %4 : vector<1x128xf32> to vector<8x128xf32>
    %6 = arith.addf %3, %5 : vector<8x128xf32>
    %7 = vector.extract_strided_slice %0 {offsets = [0, 61], sizes = [8, 1], strides = [1, 1]} : vector<8x128xf32> to vector<8x1xf32>
    %8 = vector.extract_strided_slice %2 {offsets = [0, 128], sizes = [8, 128], strides = [1, 1]} : vector<8x1664xf32> to vector<8x128xf32>
    %9 = vector.broadcast %7 : vector<8x1xf32> to vector<8x128xf32>
    %10 = arith.mulf %9, %8 : vector<8x128xf32>
    %11 = arith.addf %6, %10 : vector<8x128xf32>
    %12 = vector.extract_strided_slice %0 {offsets = [0, 62], sizes = [8, 1], strides = [1, 1]} : vector<8x128xf32> to vector<8x1xf32>
    %13 = vector.extract_strided_slice %2 {offsets = [0, 256], sizes = [8, 128], strides = [1, 1]} : vector<8x1664xf32> to vector<8x128xf32>
    %14 = vector.broadcast %12 : vector<8x1xf32> to vector<8x128xf32>
    %15 = arith.mulf %14, %13 : vector<8x128xf32>
    %16 = arith.addf %11, %15 : vector<8x128xf32>
    %17 = vector.extract_strided_slice %0 {offsets = [0, 63], sizes = [8, 1], strides = [1, 1]} : vector<8x128xf32> to vector<8x1xf32>
    %18 = vector.extract_strided_slice %2 {offsets = [0, 384], sizes = [8, 128], strides = [1, 1]} : vector<8x1664xf32> to vector<8x128xf32>
    %19 = vector.broadcast %17 : vector<8x1xf32> to vector<8x128xf32>
    %20 = arith.mulf %19, %18 : vector<8x128xf32>
    %21 = arith.addf %16, %20 : vector<8x128xf32>
    %22 = vector.extract_strided_slice %0 {offsets = [0, 64], sizes = [8, 1], strides = [1, 1]} : vector<8x128xf32> to vector<8x1xf32>
    %23 = vector.extract_strided_slice %2 {offsets = [0, 512], sizes = [8, 128], strides = [1, 1]} : vector<8x1664xf32> to vector<8x128xf32>
    %24 = vector.broadcast %22 : vector<8x1xf32> to vector<8x128xf32>
    %25 = arith.mulf %24, %23 : vector<8x128xf32>
    %26 = arith.addf %21, %25 : vector<8x128xf32>
    %27 = vector.extract_strided_slice %0 {offsets = [0, 65], sizes = [8, 1], strides = [1, 1]} : vector<8x128xf32> to vector<8x1xf32>
    %28 = vector.extract_strided_slice %2 {offsets = [0, 640], sizes = [8, 128], strides = [1, 1]} : vector<8x1664xf32> to vector<8x128xf32>
    %29 = vector.broadcast %27 : vector<8x1xf32> to vector<8x128xf32>
    %30 = arith.mulf %29, %28 : vector<8x128xf32>
    %31 = arith.addf %26, %30 : vector<8x128xf32>
    %32 = vector.extract_strided_slice %0 {offsets = [0, 66], sizes = [8, 1], strides = [1, 1]} : vector<8x128xf32> to vector<8x1xf32>
    %33 = vector.extract_strided_slice %2 {offsets = [0, 768], sizes = [8, 128], strides = [1, 1]} : vector<8x1664xf32> to vector<8x128xf32>
    %34 = vector.broadcast %32 : vector<8x1xf32> to vector<8x128xf32>
    %35 = arith.mulf %34, %33 : vector<8x128xf32>
    %36 = arith.addf %31, %35 : vector<8x128xf32>
    %37 = vector.extract_strided_slice %0 {offsets = [0, 67], sizes = [8, 1], strides = [1, 1]} : vector<8x128xf32> to vector<8x1xf32>
    %38 = vector.extract_strided_slice %2 {offsets = [0, 896], sizes = [8, 128], strides = [1, 1]} : vector<8x1664xf32> to vector<8x128xf32>
    %39 = vector.broadcast %37 : vector<8x1xf32> to vector<8x128xf32>
    %40 = arith.mulf %39, %38 : vector<8x128xf32>
    %41 = arith.addf %36, %40 : vector<8x128xf32>
    %42 = vector.extract_strided_slice %0 {offsets = [0, 68], sizes = [8, 1], strides = [1, 1]} : vector<8x128xf32> to vector<8x1xf32>
    %43 = vector.extract_strided_slice %2 {offsets = [0, 1024], sizes = [8, 128], strides = [1, 1]} : vector<8x1664xf32> to vector<8x128xf32>
    %44 = vector.broadcast %42 : vector<8x1xf32> to vector<8x128xf32>
    %45 = arith.mulf %44, %43 : vector<8x128xf32>
    %46 = arith.addf %41, %45 : vector<8x128xf32>
    %47 = vector.extract_strided_slice %0 {offsets = [0, 69], sizes = [8, 1], strides = [1, 1]} : vector<8x128xf32> to vector<8x1xf32>
    %48 = vector.extract_strided_slice %2 {offsets = [0, 1152], sizes = [8, 128], strides = [1, 1]} : vector<8x1664xf32> to vector<8x128xf32>
    %49 = vector.broadcast %47 : vector<8x1xf32> to vector<8x128xf32>
    %50 = arith.mulf %49, %48 : vector<8x128xf32>
    %51 = arith.addf %46, %50 : vector<8x128xf32>
    %52 = vector.extract_strided_slice %0 {offsets = [0, 70], sizes = [8, 1], strides = [1, 1]} : vector<8x128xf32> to vector<8x1xf32>
    %53 = vector.extract_strided_slice %2 {offsets = [0, 1280], sizes = [8, 128], strides = [1, 1]} : vector<8x1664xf32> to vector<8x128xf32>
    %54 = vector.broadcast %52 : vector<8x1xf32> to vector<8x128xf32>
    %55 = arith.mulf %54, %53 : vector<8x128xf32>
    %56 = arith.addf %51, %55 : vector<8x128xf32>
    %57 = vector.extract_strided_slice %0 {offsets = [0, 71], sizes = [8, 1], strides = [1, 1]} : vector<8x128xf32> to vector<8x1xf32>
    %58 = vector.extract_strided_slice %2 {offsets = [0, 1408], sizes = [8, 128], strides = [1, 1]} : vector<8x1664xf32> to vector<8x128xf32>
    %59 = vector.broadcast %57 : vector<8x1xf32> to vector<8x128xf32>
    %60 = arith.mulf %59, %58 : vector<8x128xf32>
    %61 = arith.addf %56, %60 : vector<8x128xf32>
    %62 = vector.extract_strided_slice %0 {offsets = [0, 72], sizes = [8, 1], strides = [1, 1]} : vector<8x128xf32> to vector<8x1xf32>
    %63 = vector.extract_strided_slice %2 {offsets = [0, 1536], sizes = [8, 128], strides = [1, 1]} : vector<8x1664xf32> to vector<8x128xf32>
    %64 = vector.broadcast %62 : vector<8x1xf32> to vector<8x128xf32>
    %65 = arith.mulf %64, %63 : vector<8x128xf32>
    %66 = arith.addf %61, %65 : vector<8x128xf32>
    %cst_5 = arith.constant 0.000000e+00 : f32
    %67 = vector.broadcast %cst_5 : f32 to vector<8x128xf32>
    %68 = arith.maximumf %66, %67 : vector<8x128xf32>
    %c0_6 = arith.constant 0 : index
    %c0_7 = arith.constant 0 : index
    %69 = vector.load %arg4[%c0_6, %c0_7] : memref<128x128xf32, #tpu.memory_space<vmem>>, vector<128x128xf32>
    %cst_8 = arith.constant dense<0.000000e+00> : vector<8x128xf32>
    %70 = tpu.matmul %68, %69, %cst_8 {dimension_numbers = #tpu.dot_dimension_numbers<[1], [0], [0], [1], [0, 0, 1, 1], [], []>, precision = #tpu.contract_precision<fp32>} : vector<8x128xf32>, vector<128x128xf32>, vector<8x128xf32> -> vector<8x128xf32>
    %c0_9 = arith.constant 0 : index
    %c0_10 = arith.constant 0 : index
    %71 = vector.load %arg5[%c0_9, %c0_10] : memref<1x128xf32, #tpu.memory_space<vmem>>, vector<1x128xf32>
    %72 = vector.broadcast %71 : vector<1x128xf32> to vector<8x128xf32>
    %73 = arith.addf %70, %72 : vector<8x128xf32>
    %cst_11 = arith.constant 0.000000e+00 : f32
    %74 = vector.broadcast %cst_11 : f32 to vector<8x128xf32>
    %75 = arith.maximumf %73, %74 : vector<8x128xf32>
    %c0_12 = arith.constant 0 : index
    %c0_13 = arith.constant 0 : index
    %76 = vector.load %arg6[%c0_12, %c0_13] : memref<128x128xf32, #tpu.memory_space<vmem>>, vector<128x128xf32>
    %cst_14 = arith.constant dense<0.000000e+00> : vector<8x128xf32>
    %77 = tpu.matmul %75, %76, %cst_14 {dimension_numbers = #tpu.dot_dimension_numbers<[1], [0], [0], [1], [0, 0, 1, 1], [], []>, precision = #tpu.contract_precision<fp32>} : vector<8x128xf32>, vector<128x128xf32>, vector<8x128xf32> -> vector<8x128xf32>
    %c0_15 = arith.constant 0 : index
    %c0_16 = arith.constant 0 : index
    %78 = vector.load %arg7[%c0_15, %c0_16] : memref<1x128xf32, #tpu.memory_space<vmem>>, vector<1x128xf32>
    %79 = vector.broadcast %78 : vector<1x128xf32> to vector<8x128xf32>
    %80 = arith.addf %77, %79 : vector<8x128xf32>
    %cst_17 = arith.constant 0.000000e+00 : f32
    %81 = vector.broadcast %cst_17 : f32 to vector<8x128xf32>
    %82 = arith.maximumf %80, %81 : vector<8x128xf32>
    %c0_18 = arith.constant 0 : index
    %c0_19 = arith.constant 0 : index
    %83 = vector.load %arg8[%c0_18, %c0_19] : memref<128x128xf32, #tpu.memory_space<vmem>>, vector<128x128xf32>
    %cst_20 = arith.constant dense<0.000000e+00> : vector<8x128xf32>
    %84 = tpu.matmul %82, %83, %cst_20 {dimension_numbers = #tpu.dot_dimension_numbers<[1], [0], [0], [1], [0, 0, 1, 1], [], []>, precision = #tpu.contract_precision<fp32>} : vector<8x128xf32>, vector<128x128xf32>, vector<8x128xf32> -> vector<8x128xf32>
    %c0_21 = arith.constant 0 : index
    %c0_22 = arith.constant 0 : index
    %85 = vector.load %arg9[%c0_21, %c0_22] : memref<1x128xf32, #tpu.memory_space<vmem>>, vector<1x128xf32>
    %86 = vector.broadcast %85 : vector<1x128xf32> to vector<8x128xf32>
    %87 = arith.addf %84, %86 : vector<8x128xf32>
    %88 = vector.extract_strided_slice %0 {offsets = [0, 73], sizes = [8, 1], strides = [1, 1]} : vector<8x128xf32> to vector<8x1xf32>
    %89 = vector.broadcast %88 : vector<8x1xf32> to vector<8x128xf32>
    %90 = arith.mulf %87, %89 : vector<8x128xf32>
    %c0_23 = arith.constant 0 : index
    %c0_24 = arith.constant 0 : index
    %91 = vector.load %arg10[%c0_23, %c0_24] : memref<8x128xf32, #tpu.memory_space<vmem>>, vector<8x128xf32>
    tpu.vector_store %arg10[%c0_23, %c0_24], %90 {strides = array<i32>} : memref<8x128xf32, #tpu.memory_space<vmem>>, vector<8x128xf32>,
    return
  }
  func.func @transform_0(%arg0: i32) -> (i32, i32) {
    %c0_i32 = arith.constant 0 : i32
    %c0_i32_0 = arith.constant 0 : i32
    return %arg0, %c0_i32 : i32, i32
  }
  func.func @transform_1(%arg0: i32) -> (i32, i32) {
    %c0_i32 = arith.constant 0 : i32
    %c0_i32_0 = arith.constant 0 : i32
    %c0_i32_1 = arith.constant 0 : i32
    return %c0_i32, %c0_i32_0 : i32, i32
  }
  func.func @transform_2(%arg0: i32) -> (i32, i32) {
    %c0_i32 = arith.constant 0 : i32
    %c0_i32_0 = arith.constant 0 : i32
    %c0_i32_1 = arith.constant 0 : i32
    return %c0_i32, %c0_i32_0 : i32, i32
  }
  func.func @transform_3(%arg0: i32) -> (i32, i32) {
    %c0_i32 = arith.constant 0 : i32
    %c0_i32_0 = arith.constant 0 : i32
    %c0_i32_1 = arith.constant 0 : i32
    return %c0_i32, %c0_i32_0 : i32, i32
  }
  func.func @transform_4(%arg0: i32) -> (i32, i32) {
    %c0_i32 = arith.constant 0 : i32
    %c0_i32_0 = arith.constant 0 : i32
    %c0_i32_1 = arith.constant 0 : i32
    return %c0_i32, %c0_i32_0 : i32, i32
  }
  func.func @transform_5(%arg0: i32) -> (i32, i32) {
    %c0_i32 = arith.constant 0 : i32
    %c0_i32_0 = arith.constant 0 : i32
    %c0_i32_1 = arith.constant 0 : i32
    return %c0_i32, %c0_i32_0 : i32, i32
  }
  func.func @transform_6(%arg0: i32) -> (i32, i32) {
    %c0_i32 = arith.constant 0 : i32
    %c0_i32_0 = arith.constant 0 : i32
    %c0_i32_1 = arith.constant 0 : i32
    return %c0_i32, %c0_i32_0 : i32, i32
  }
  func.func @transform_7(%arg0: i32) -> (i32, i32) {
    %c0_i32 = arith.constant 0 : i32
    %c0_i32_0 = arith.constant 0 : i32
    %c0_i32_1 = arith.constant 0 : i32
    return %c0_i32, %c0_i32_0 : i32, i32
  }
  func.func @transform_8(%arg0: i32) -> (i32, i32) {
    %c0_i32 = arith.constant 0 : i32
    %c0_i32_0 = arith.constant 0 : i32
    %c0_i32_1 = arith.constant 0 : i32
    return %c0_i32, %c0_i32_0 : i32, i32
  }
  func.func @transform_9(%arg0: i32) -> (i32, i32) {
    %c0_i32 = arith.constant 0 : i32
    %c0_i32_0 = arith.constant 0 : i32
    return %arg0, %c0_i32 : i32, i32
  }
}

</mosaic_0001>

<llo_original>
// kernel: tpu_custom_call.1
$region0: #{tpu_custom_call.1}
  #allocation0 [shape = 'u32[]', space=smem, size = 0x4, offset = 0x4, fixed_abs, tag = 'smem constant byte address 0x4 - core index']
  #allocation1 [shape = 'u32[72,128]{1,0:T(1,128)}', space=vmem, size = 0x9000, scoped, tag = 'internal scratch']
  %s0 = inlined_call_operand.hbm [shape: f32[16,128], index: 0, kind: input, shape index: {}]
  %s1 = inlined_call_operand.hbm [shape: f32[128,1664], index: 1, kind: input, shape index: {}]
  %s2 = inlined_call_operand.vmem [shape: f32[1,128], index: 2, kind: input, shape index: {}]
  %s3 = inlined_call_operand.hbm [shape: f32[128,128], index: 3, kind: input, shape index: {}]
  %s4 = inlined_call_operand.vmem [shape: f32[1,128], index: 4, kind: input, shape index: {}]
  %s5 = inlined_call_operand.hbm [shape: f32[128,128], index: 5, kind: input, shape index: {}]
  %s6 = inlined_call_operand.vmem [shape: f32[1,128], index: 6, kind: input, shape index: {}]
  %s7 = inlined_call_operand.hbm [shape: f32[128,128], index: 7, kind: input, shape index: {}]
  %s8 = inlined_call_operand.vmem [shape: f32[1,128], index: 8, kind: input, shape index: {}]
  %s9 = inlined_call_operand.hbm [shape: f32[16,128], index: 9, kind: output, shape index: {}]
  %s10 = sld [smem:[#allocation0]]
  $region89: #{tpu_custom_call.1} parent=0
    _
  %s12 = ssub.s32 1, %s10
  %s13 = scalar_select 0, %s12, %s10
  $region1: #{tpu_custom_call.1} parent=0
    #allocation2 [shape = 'u8[8192]{0}', space=vmem, size = 0x2000, scoped, tag = 'input window, operand 0']
    #allocation3 [shape = 's32[2]{0}', space=sflag, size = 0x8, scoped, tag = 'scoped memory for tpu_custom_call.1']
    #allocation4 [shape = 's32[2]{0}', space=sflag, size = 0x8, scoped, tag = 'scoped memory for tpu_custom_call.1']
    #allocation5 [shape = 'u8[851968]{0}', space=vmem, size = 0xd0000, scoped, tag = 'input window, operand 1, single buffered']
    #allocation6 [shape = 's32[1]{0}', space=sflag, size = 0x4, scoped, tag = 'scoped memory for tpu_custom_call.1']
    #allocation7 [shape = 'u8[65536]{0}', space=vmem, size = 0x10000, scoped, tag = 'input window, operand 3, single buffered']
    #allocation8 [shape = 'u8[65536]{0}', space=vmem, size = 0x10000, scoped, tag = 'input window, operand 5, single buffered']
    #allocation9 [shape = 's32[1]{0}', space=sflag, size = 0x4, scoped, tag = 'scoped memory for tpu_custom_call.1']
    #allocation10 [shape = 'u8[65536]{0}', space=vmem, size = 0x10000, scoped, tag = 'input window, operand 7, single buffered']
    #allocation11 [shape = 'u8[8192]{0}', space=vmem, size = 0x2000, scoped, tag = 'output window, operand 0']
    %14 = vsyncpa [#allocation3], 0
    %s15 = scalar_lea.sflag [#allocation3], 1
    %16 = vsyncpa %s15, 0
    %17 = vsyncpa [#allocation6], 0
    %18 = vsyncpa [#allocation9], 0
    %19 = vsyncpa [#allocation4], 0
    %s20 = scalar_lea.sflag [#allocation4], 1
    %21 = vsyncpa %s20, 0
    loop: start=0, step=1, limit=4
    $region2: #{tpu_custom_call.1} parent=1 // loop_pre_header
      _
    $region3: #{tpu_custom_call.1} parent=1 // loop_header
      %s23 = sphi 0, %s27
      %p24 = scmp.ge.s32.totalorder %s23, 4
      %s33 = sphi 0, %s35
      %s36 = sphi 0, %s33
      %s37 = sphi 0, %s36
      %s53 = sphi 0, %s37
      %s57 = sphi 0, %s57
      %s59 = sphi 0, %s57
      %s60 = sphi 0, %s59
      %s74 = sphi 0, %s60
      %s78 = sphi 0, %s78
      %s80 = sphi 0, %s78
      %s81 = sphi 0, %s80
      %s95 = sphi 0, %s81
      %s99 = sphi 0, %s99
      %s101 = sphi 0, %s99
      %s102 = sphi 0, %s101
      %s116 = sphi 0, %s102
      %s120 = sphi 0, %s120
      %s122 = sphi 0, %s120
      %s123 = sphi 0, %s122
      %s137 = sphi 0, %s123
      %s141 = sphi 0, %s141
      %s143 = sphi 0, %s141
      %s144 = sphi 0, %s143
      %s158 = sphi 0, %s144
      %s162 = sphi 0, %s162
      %s164 = sphi 0, %s162
      %s165 = sphi 0, %s164
      %s179 = sphi 0, %s165
      %s183 = sphi 0, %s183
      %s185 = sphi 0, %s183
      %s186 = sphi 0, %s185
      %s200 = sphi 0, %s186
      %s204 = sphi 0, %s204
      %s206 = sphi 0, %s204
      %s207 = sphi 0, %s206
      %s221 = sphi 0, %s207
      %s227 = sphi 0, %s229
      %s230 = sphi 0, %s227
      %s231 = sphi 0, %s230
      %s247 = sphi 0, %s231
    $region4: #{tpu_custom_call.1} parent=1 // loop_header_branch
      %26 = sbr.rel (%p24) target = $region8
    $region5: #{tpu_custom_call.1} parent=1 // loop_body
      %s28 = ssub.s32 %s23, 1
      %s29 = ssub.s32 %s23, 2
      %s30 = sadd.s32 %s23, 1
      %s31 = ssub.s32 %s23, %s30
      %p32 = scmp.eq.s32.totalorder %s31, 0
      %s34 = sadd.s32 %s33, 1
      %s35 = scalar_select %p32, %s33, %s34
      %p38 = pneg %p32
      %p39 = scmp.eq.s32.totalorder %s23, 1
      %p40 = por %p38, %p39
      %p41 = scmp.ne.s32.totalorder %s33, %s36
      %p42 = scmp.eq.s32.totalorder %s23, 0
      %p43 = por %p41, %p42
      %p44 = scmp.ne.s32.totalorder %s33, %s36
      %p45 = scmp.eq.s32.totalorder %s28, 1
      %p46 = por %p44, %p45
      %p47 = scmp.ne.s32.totalorder %s36, %s37
      %p48 = scmp.eq.s32.totalorder %s28, 0
      %p49 = por %p47, %p48
      %p50 = scmp.ne.s32.totalorder %s36, %s37
      %p51 = scmp.eq.s32.totalorder %s29, 1
      %p52 = por %p50, %p51
      %p54 = scmp.ne.s32.totalorder %s37, %s53
      %p55 = scmp.eq.s32.totalorder %s29, 0
      %p56 = por %p54, %p55
      %s58 = sadd.s32 %s57, 1
      %p61 = scmp.eq.s32.totalorder %s23, 1
      %p62 = scmp.ne.s32.totalorder %s57, %s59
      %p63 = scmp.eq.s32.totalorder %s23, 0
      %p64 = por %p62, %p63
      %p65 = scmp.ne.s32.totalorder %s57, %s59
      %p66 = scmp.eq.s32.totalorder %s28, 1
      %p67 = por %p65, %p66
      %p68 = scmp.ne.s32.totalorder %s59, %s60
      %p69 = scmp.eq.s32.totalorder %s28, 0
      %p70 = por %p68, %p69
      %p71 = scmp.ne.s32.totalorder %s59, %s60
      %p72 = scmp.eq.s32.totalorder %s29, 1
      %p73 = por %p71, %p72
      %p75 = scmp.ne.s32.totalorder %s60, %s74
      %p76 = scmp.eq.s32.totalorder %s29, 0
      %p77 = por %p75, %p76
      %s79 = sadd.s32 %s78, 1
      %p82 = scmp.eq.s32.totalorder %s23, 1
      %p83 = scmp.ne.s32.totalorder %s78, %s80
      %p84 = scmp.eq.s32.totalorder %s23, 0
      %p85 = por %p83, %p84
      %p86 = scmp.ne.s32.totalorder %s78, %s80
      %p87 = scmp.eq.s32.totalorder %s28, 1
      %p88 = por %p86, %p87
      %p89 = scmp.ne.s32.totalorder %s80, %s81
      %p90 = scmp.eq.s32.totalorder %s28, 0
      %p91 = por %p89, %p90
      %p92 = scmp.ne.s32.totalorder %s80, %s81
      %p93 = scmp.eq.s32.totalorder %s29, 1
      %p94 = por %p92, %p93
      %p96 = scmp.ne.s32.totalorder %s81, %s95
      %p97 = scmp.eq.s32.totalorder %s29, 0
      %p98 = por %p96, %p97
      %s100 = sadd.s32 %s99, 1
      %p103 = scmp.eq.s32.totalorder %s23, 1
      %p104 = scmp.ne.s32.totalorder %s99, %s101
      %p105 = scmp.eq.s32.totalorder %s23, 0
      %p106 = por %p104, %p105
      %p107 = scmp.ne.s32.totalorder %s99, %s101
      %p108 = scmp.eq.s32.totalorder %s28, 1
      %p109 = por %p107, %p108
      %p110 = scmp.ne.s32.totalorder %s101, %s102
      %p111 = scmp.eq.s32.totalorder %s28, 0
      %p112 = por %p110, %p111
      %p113 = scmp.ne.s32.totalorder %s101, %s102
      %p114 = scmp.eq.s32.totalorder %s29, 1
      %p115 = por %p113, %p114
      %p117 = scmp.ne.s32.totalorder %s102, %s116
      %p118 = scmp.eq.s32.totalorder %s29, 0
      %p119 = por %p117, %p118
      %s121 = sadd.s32 %s120, 1
      %p124 = scmp.eq.s32.totalorder %s23, 1
      %p125 = scmp.ne.s32.totalorder %s120, %s122
      %p126 = scmp.eq.s32.totalorder %s23, 0
      %p127 = por %p125, %p126
      %p128 = scmp.ne.s32.totalorder %s120, %s122
      %p129 = scmp.eq.s32.totalorder %s28, 1
      %p130 = por %p128, %p129
      %p131 = scmp.ne.s32.totalorder %s122, %s123
      %p132 = scmp.eq.s32.totalorder %s28, 0
      %p133 = por %p131, %p132
      %p134 = scmp.ne.s32.totalorder %s122, %s123
      %p135 = scmp.eq.s32.totalorder %s29, 1
      %p136 = por %p134, %p135
      %p138 = scmp.ne.s32.totalorder %s123, %s137
      %p139 = scmp.eq.s32.totalorder %s29, 0
      %p140 = por %p138, %p139
      %s142 = sadd.s32 %s141, 1
      %p145 = scmp.eq.s32.totalorder %s23, 1
      %p146 = scmp.ne.s32.totalorder %s141, %s143
      %p147 = scmp.eq.s32.totalorder %s23, 0
      %p148 = por %p146, %p147
      %p149 = scmp.ne.s32.totalorder %s141, %s143
      %p150 = scmp.eq.s32.totalorder %s28, 1
      %p151 = por %p149, %p150
      %p152 = scmp.ne.s32.totalorder %s143, %s144
      %p153 = scmp.eq.s32.totalorder %s28, 0
      %p154 = por %p152, %p153
      %p155 = scmp.ne.s32.totalorder %s143, %s144
      %p156 = scmp.eq.s32.totalorder %s29, 1
      %p157 = por %p155, %p156
      %p159 = scmp.ne.s32.totalorder %s144, %s158
      %p160 = scmp.eq.s32.totalorder %s29, 0
      %p161 = por %p159, %p160
      %s163 = sadd.s32 %s162, 1
      %p166 = scmp.eq.s32.totalorder %s23, 1
      %p167 = scmp.ne.s32.totalorder %s162, %s164
      %p168 = scmp.eq.s32.totalorder %s23, 0
      %p169 = por %p167, %p168
      %p170 = scmp.ne.s32.totalorder %s162, %s164
      %p171 = scmp.eq.s32.totalorder %s28, 1
      %p172 = por %p170, %p171
      %p173 = scmp.ne.s32.totalorder %s164, %s165
      %p174 = scmp.eq.s32.totalorder %s28, 0
      %p175 = por %p173, %p174
      %p176 = scmp.ne.s32.totalorder %s164, %s165
      %p177 = scmp.eq.s32.totalorder %s29, 1
      %p178 = por %p176, %p177
      %p180 = scmp.ne.s32.totalorder %s165, %s179
      %p181 = scmp.eq.s32.totalorder %s29, 0
      %p182 = por %p180, %p181
      %s184 = sadd.s32 %s183, 1
      %p187 = scmp.eq.s32.totalorder %s23, 1
      %p188 = scmp.ne.s32.totalorder %s183, %s185
      %p189 = scmp.eq.s32.totalorder %s23, 0
      %p190 = por %p188, %p189
      %p191 = scmp.ne.s32.totalorder %s183, %s185
      %p192 = scmp.eq.s32.totalorder %s28, 1
      %p193 = por %p191, %p192
      %p194 = scmp.ne.s32.totalorder %s185, %s186
      %p195 = scmp.eq.s32.totalorder %s28, 0
      %p196 = por %p194, %p195
      %p197 = scmp.ne.s32.totalorder %s185, %s186
      %p198 = scmp.eq.s32.totalorder %s29, 1
      %p199 = por %p197, %p198
      %p201 = scmp.ne.s32.totalorder %s186, %s200
      %p202 = scmp.eq.s32.totalorder %s29, 0
      %p203 = por %p201, %p202
      %s205 = sadd.s32 %s204, 1
      %p208 = scmp.eq.s32.totalorder %s23, 1
      %p209 = scmp.ne.s32.totalorder %s204, %s206
      %p210 = scmp.eq.s32.totalorder %s23, 0
      %p211 = por %p209, %p210
      %p212 = scmp.ne.s32.totalorder %s204, %s206
      %p213 = scmp.eq.s32.totalorder %s28, 1
      %p214 = por %p212, %p213
      %p215 = scmp.ne.s32.totalorder %s206, %s207
      %p216 = scmp.eq.s32.totalorder %s28, 0
      %p217 = por %p215, %p216
      %p218 = scmp.ne.s32.totalorder %s206, %s207
      %p219 = scmp.eq.s32.totalorder %s29, 1
      %p220 = por %p218, %p219
      %p222 = scmp.ne.s32.totalorder %s207, %s221
      %p223 = scmp.eq.s32.totalorder %s29, 0
      %p224 = por %p222, %p223
      %s225 = ssub.s32 %s23, %s30
      %p226 = scmp.eq.s32.totalorder %s225, 0
      %s228 = sadd.s32 %s227, 1
      %s229 = scalar_select %p226, %s227, %s228
      %p232 = pneg %p226
      %p233 = scmp.eq.s32.totalorder %s23, 1
      %p234 = por %p232, %p233
      %p235 = scmp.ne.s32.totalorder %s227, %s230
      %p236 = scmp.eq.s32.totalorder %s23, 0
      %p237 = por %p235, %p236
      %p238 = scmp.ne.s32.totalorder %s227, %s230
      %p239 = scmp.eq.s32.totalorder %s28, 1
      %p240 = por %p238, %p239
      %p241 = scmp.ne.s32.totalorder %s230, %s231
      %p242 = scmp.eq.s32.totalorder %s28, 0
      %p243 = por %p241, %p242
      %p244 = scmp.ne.s32.totalorder %s230, %s231
      %p245 = scmp.eq.s32.totalorder %s29, 1
      %p246 = por %p244, %p245
      %p248 = scmp.ne.s32.totalorder %s231, %s247
      %p249 = scmp.eq.s32.totalorder %s29, 0
      %p250 = por %p248, %p249
      %p251 = scmp.le.s32.totalorder 1, %s23
      %p252 = scmp.lt.s32.totalorder %s23, 3
      %p253 = pnand %p251, %p252
      %p254 = pneg %p253
      // Predicated region
      $region9: #{tpu_custom_call.1} parent=5 // pred_check
        _
      $region10: #{tpu_custom_call.1} parent=5 // pred_check_branch
        %256 = sbr.rel (%p253) target = $region12
      $region11: #{tpu_custom_call.1} parent=5 // pred_region
        %s257 = ssub.s32 %s23, 1
        // Predicated region
        $region13: #{tpu_custom_call.1} parent=11 // pred_check
          %p258 = pneg %p70
        $region14: #{tpu_custom_call.1} parent=11 // pred_check_branch
          %260 = sbr.rel (%p258) target = $region16
        $region15: #{tpu_custom_call.1} parent=11 // pred_region
          %262 = vsyncadd [#allocation6], 0
          %s263 = sshll.u32 %s1, 4
          %s264 = int_to_ptr.hbm [resolvable:$true] %s263
          %s265 = sshll.u32 [#allocation5], 4
          %s266 = int_to_ptr.vmem [resolvable:$true] %s265
          %271 = dma.hbm_to_vmem [thread:$0]  %s264, 26624, %s266, [#allocation6], 1664, 1664, 104
        $region16: #{tpu_custom_call.1} parent=11 // pred_fallthru
          _
        // Predicated region
        $region17: #{tpu_custom_call.1} parent=11 // pred_check
          %p272 = pneg %p91
        $region18: #{tpu_custom_call.1} parent=11 // pred_check_branch
          %274 = sbr.rel (%p272) target = $region20
        $region19: #{tpu_custom_call.1} parent=11 // pred_region
          _
        $region20: #{tpu_custom_call.1} parent=11 // pred_fallthru
          _
        // Predicated region
        $region21: #{tpu_custom_call.1} parent=11 // pred_check
          %p275 = pneg %p112
        $region22: #{tpu_custom_call.1} parent=11 // pred_check_branch
          %277 = sbr.rel (%p275) target = $region24
        $region23: #{tpu_custom_call.1} parent=11 // pred_region
          %279 = vsyncadd [#allocation6], 0
          %s280 = sshll.u32 %s3, 4
          %s281 = int_to_ptr.hbm [resolvable:$true] %s280
          %s282 = sshll.u32 [#allocation7], 4
          %s283 = int_to_ptr.vmem [resolvable:$true] %s282
          %288 = dma.hbm_to_vmem [thread:$0]  %s281, 2048, %s283, [#allocation6], 128, 128, 8
        $region24: #{tpu_custom_call.1} parent=11 // pred_fallthru
          _
        // Predicated region
        $region25: #{tpu_custom_call.1} parent=11 // pred_check
          %p289 = pneg %p133
        $region26: #{tpu_custom_call.1} parent=11 // pred_check_branch
          %291 = sbr.rel (%p289) target = $region28
        $region27: #{tpu_custom_call.1} parent=11 // pred_region
          _
        $region28: #{tpu_custom_call.1} parent=11 // pred_fallthru
          _
        // Predicated region
        $region29: #{tpu_custom_call.1} parent=11 // pred_check
          %p292 = pneg %p154
        $region30: #{tpu_custom_call.1} parent=11 // pred_check_branch
          %294 = sbr.rel (%p292) target = $region32
        $region31: #{tpu_custom_call.1} parent=11 // pred_region
          %296 = vsyncadd [#allocation9], 0
          %s297 = sshll.u32 %s5, 4
          %s298 = int_to_ptr.hbm [resolvable:$true] %s297
          %s299 = sshll.u32 [#allocation8], 4
          %s300 = int_to_ptr.vmem [resolvable:$true] %s299
          %305 = dma.hbm_to_vmem [thread:$0]  %s298, 2048, %s300, [#allocation9], 128, 128, 8
        $region32: #{tpu_custom_call.1} parent=11 // pred_fallthru
          _
        // Predicated region
        $region33: #{tpu_custom_call.1} parent=11 // pred_check
          %p306 = pneg %p175
        $region34: #{tpu_custom_call.1} parent=11 // pred_check_branch
          %308 = sbr.rel (%p306) target = $region36
        $region35: #{tpu_custom_call.1} parent=11 // pred_region
          _
        $region36: #{tpu_custom_call.1} parent=11 // pred_fallthru
          _
        // Predicated region
        $region37: #{tpu_custom_call.1} parent=11 // pred_check
          %p309 = pneg %p196
        $region38: #{tpu_custom_call.1} parent=11 // pred_check_branch
          %311 = sbr.rel (%p309) target = $region40
        $region39: #{tpu_custom_call.1} parent=11 // pred_region
          %313 = vsyncadd [#allocation9], 0
          %s314 = sshll.u32 %s7, 4
          %s315 = int_to_ptr.hbm [resolvable:$true] %s314
          %s316 = sshll.u32 [#allocation10], 4
          %s317 = int_to_ptr.vmem [resolvable:$true] %s316
          %322 = dma.hbm_to_vmem [thread:$0]  %s315, 2048, %s317, [#allocation9], 128, 128, 8
        $region40: #{tpu_custom_call.1} parent=11 // pred_fallthru
          _
        // Predicated region
        $region41: #{tpu_custom_call.1} parent=11 // pred_check
          %p323 = pneg %p217
        $region42: #{tpu_custom_call.1} parent=11 // pred_check_branch
          %325 = sbr.rel (%p323) target = $region44
        $region43: #{tpu_custom_call.1} parent=11 // pred_region
          _
        $region44: #{tpu_custom_call.1} parent=11 // pred_fallthru
          _
      $region12: #{tpu_custom_call.1} parent=5 // pred_fallthru
        _
      %p326 = scmp.lt.s32.totalorder %s23, 2
      // Predicated region
      $region45: #{tpu_custom_call.1} parent=5 // pred_check
        %p327 = pneg %p326
      $region46: #{tpu_custom_call.1} parent=5 // pred_check_branch
        %329 = sbr.rel (%p327) target = $region48
      $region47: #{tpu_custom_call.1} parent=5 // pred_region
        // Predicated region
        $region49: #{tpu_custom_call.1} parent=47 // pred_check
          %p330 = pneg %p43
        $region50: #{tpu_custom_call.1} parent=47 // pred_check_branch
          %332 = sbr.rel (%p330) target = $region52
        $region51: #{tpu_custom_call.1} parent=47 // pred_region
          %s333 = sand.u32 %s33, 1
          %s334 = scalar_lea.sflag [#allocation3], %s333
          %s335 = sand.u32 %s33, 1
          %s336 = smul.addr %s335, 8
          %s337 = scalar_lea.vmem [#allocation2], %s336
          %339 = vsyncadd %s334, 0
          %s340 = smul.addr %s23, 8
          %s341 = scalar_lea.hbm %s0, %s340
          %s343 = sshll.u32 %s341, 4
          %s344 = int_to_ptr.hbm [resolvable:$true] %s343
          %s345 = sshll.u32 %s337, 4
          %s346 = int_to_ptr.vmem [resolvable:$true] %s345
          %348 = dma.hbm_to_vmem [thread:$0]  %s344, 128, %s346, %s334
        $region52: #{tpu_custom_call.1} parent=47 // pred_fallthru
          _
      $region48: #{tpu_custom_call.1} parent=5 // pred_fallthru
        _
      %p349 = scmp.le.s32.totalorder 1, %s23
      %p350 = scmp.lt.s32.totalorder %s23, 3
      %p351 = pnand %p349, %p350
      %p352 = pneg %p351
      // Predicated region
      $region53: #{tpu_custom_call.1} parent=5 // pred_check
        _
      $region54: #{tpu_custom_call.1} parent=5 // pred_check_branch
        %354 = sbr.rel (%p351) target = $region56
      $region55: #{tpu_custom_call.1} parent=5 // pred_region
        %s355 = ssub.s32 %s23, 1
        %s356 = sand.u32 %s36, 1
        %s357 = scalar_lea.sflag [#allocation3], %s356
        %s358 = sand.u32 %s36, 1
        %s359 = smul.addr %s358, 8
        %s360 = scalar_lea.vmem [#allocation2], %s359
        // Predicated region
        $region57: #{tpu_custom_call.1} parent=55 // pred_check
          %p361 = pneg %p49
        $region58: #{tpu_custom_call.1} parent=55 // pred_check_branch
          %363 = sbr.rel (%p361) target = $region60
        $region59: #{tpu_custom_call.1} parent=55 // pred_region
          %365 = dma.done %s357, 128
        $region60: #{tpu_custom_call.1} parent=55 // pred_fallthru
          _
        // Predicated region
        $region61: #{tpu_custom_call.1} parent=55 // pred_check
          %p366 = pneg %p70
        $region62: #{tpu_custom_call.1} parent=55 // pred_check_branch
          %368 = sbr.rel (%p366) target = $region64
        $region63: #{tpu_custom_call.1} parent=55 // pred_region
          %370 = dma.done [#allocation6], 26624
        $region64: #{tpu_custom_call.1} parent=55 // pred_fallthru
          _
        // Predicated region
        $region65: #{tpu_custom_call.1} parent=55 // pred_check
          %p371 = pneg %p112
        $region66: #{tpu_custom_call.1} parent=55 // pred_check_branch
          %373 = sbr.rel (%p371) target = $region68
        $region67: #{tpu_custom_call.1} parent=55 // pred_region
          %375 = dma.done [#allocation6], 2048
        $region68: #{tpu_custom_call.1} parent=55 // pred_fallthru
          _
        // Predicated region
        $region69: #{tpu_custom_call.1} parent=55 // pred_check
          %p376 = pneg %p154
        $region70: #{tpu_custom_call.1} parent=55 // pred_check_branch
          %378 = sbr.rel (%p376) target = $region72
        $region71: #{tpu_custom_call.1} parent=55 // pred_region
          %380 = dma.done [#allocation9], 2048
        $region72: #{tpu_custom_call.1} parent=55 // pred_fallthru
          _
        // Predicated region
        $region73: #{tpu_custom_call.1} parent=55 // pred_check
          %p381 = pneg %p196
        $region74: #{tpu_custom_call.1} parent=55 // pred_check_branch
          %383 = sbr.rel (%p381) target = $region76
        $region75: #{tpu_custom_call.1} parent=55 // pred_region
          %385 = dma.done [#allocation9], 2048
        $region76: #{tpu_custom_call.1} parent=55 // pred_fallthru
          _
        %s386 = sand.u32 %s36, 1
        %s387 = scalar_lea.sflag [#allocation3], %s386
        %s388 = sand.u32 %s36, 1
        %s389 = smul.addr %s388, 8
        %s390 = scalar_lea.vmem [#allocation2], %s389
        %p391 = pneg %p49
        %p392 = pneg %p46
        %p393 = pneg %p70
        %p394 = pneg %p67
        %p395 = pneg %p91
        %p396 = pneg %p88
        %p397 = pneg %p112
        %p398 = pneg %p109
        %p399 = pneg %p133
        %p400 = pneg %p130
        %p401 = pneg %p154
        %p402 = pneg %p151
        %p403 = pneg %p175
        %p404 = pneg %p172
        %p405 = pneg %p196
        %p406 = pneg %p193
        %p407 = pneg %p217
        %p408 = pneg %p214
        %p409 = pneg %p243
        %p410 = pneg %p240
        %s411 = sand.u32 %s230, 1
        %s412 = scalar_lea.sflag [#allocation4], %s411
        %s413 = sand.u32 %s230, 1
        %s414 = smul.addr %s413, 8
        %s415 = scalar_lea.vmem [#allocation11], %s414
        %v416 = vld [vmem:[%s360] sm:$0xff]
        %v417 = vld [vmem:[#allocation5] sm:$0xff]
        %v418 = vld [vmem:[#allocation5 + $0x8] sm:$0xff]
        %v419 = vld [vmem:[#allocation5 + $0x10] sm:$0xff]
        %v420 = vld [vmem:[#allocation5 + $0x18] sm:$0xff]
        %v421 = vld [vmem:[#allocation5 + $0x20] sm:$0xff]
        %v422 = vld [vmem:[#allocation5 + $0x28] sm:$0xff]
        %v423 = vld [vmem:[#allocation5 + $0x30] sm:$0xff]
        %v424 = vld [vmem:[#allocation5 + $0x38] sm:$0xff]
        %v425 = vld [vmem:[#allocation5 + $0x40] sm:$0xff]
        %v426 = vld [vmem:[#allocation5 + $0x48] sm:$0xff]
        %v427 = vld [vmem:[#allocation5 + $0x50] sm:$0xff]
        %v428 = vld [vmem:[#allocation5 + $0x58] sm:$0xff]
        %v429 = vld [vmem:[#allocation5 + $0x60] sm:$0xff]
        %v430 = vld [vmem:[#allocation5 + $0x68] sm:$0xff]
        %v431 = vld [vmem:[#allocation5 + $0x70] sm:$0xff]
        %v432 = vld [vmem:[#allocation5 + $0x78] sm:$0xff]
        %v433 = vld [vmem:[#allocation5 + $0x80] sm:$0xff]
        %v434 = vld [vmem:[#allocation5 + $0x88] sm:$0xff]
        %v435 = vld [vmem:[#allocation5 + $0x90] sm:$0xff]
        %v436 = vld [vmem:[#allocation5 + $0x98] sm:$0xff]
        %v437 = vld [vmem:[#allocation5 + $0xa0] sm:$0xff]
        %v438 = vld [vmem:[#allocation5 + $0xa8] sm:$0xff]
        %v439 = vld [vmem:[#allocation5 + $0xb0] sm:$0xff]
        %v440 = vld [vmem:[#allocation5 + $0xb8] sm:$0xff]
        %v441 = vld [vmem:[#allocation5 + $0xc0] sm:$0xff]
        %v442 = vld [vmem:[#allocation5 + $0xc8] sm:$0xff]
        %v443 = vld [vmem:[#allocation5 + $0xd0] sm:$0xff]
        %v444 = vld [vmem:[#allocation5 + $0xd8] sm:$0xff]
        %v445 = vld [vmem:[#allocation5 + $0xe0] sm:$0xff]
        %v446 = vld [vmem:[#allocation5 + $0xe8] sm:$0xff]
        %v447 = vld [vmem:[#allocation5 + $0xf0] sm:$0xff]
        %v448 = vld [vmem:[#allocation5 + $0xf8] sm:$0xff]
        %v449 = vld [vmem:[#allocation5 + $0x100] sm:$0xff]
        %v450 = vld [vmem:[#allocation5 + $0x108] sm:$0xff]
        %v451 = vld [vmem:[#allocation5 + $0x110] sm:$0xff]
        %v452 = vld [vmem:[#allocation5 + $0x118] sm:$0xff]
        %v453 = vld [vmem:[#allocation5 + $0x120] sm:$0xff]
        %v454 = vld [vmem:[#allocation5 + $0x128] sm:$0xff]
        %v455 = vld [vmem:[#allocation5 + $0x130] sm:$0xff]
        %v456 = vld [vmem:[#allocation5 + $0x138] sm:$0xff]
        %v457 = vld [vmem:[#allocation5 + $0x140] sm:$0xff]
        %v458 = vld [vmem:[#allocation5 + $0x148] sm:$0xff]
        %v459 = vld [vmem:[#allocation5 + $0x150] sm:$0xff]
        %v460 = vld [vmem:[#allocation5 + $0x158] sm:$0xff]
        %v461 = vld [vmem:[#allocation5 + $0x160] sm:$0xff]
        %v462 = vld [vmem:[#allocation5 + $0x168] sm:$0xff]
        %v463 = vld [vmem:[#allocation5 + $0x170] sm:$0xff]
        %v464 = vld [vmem:[#allocation5 + $0x178] sm:$0xff]
        %v465 = vld [vmem:[#allocation5 + $0x180] sm:$0xff]
        %v466 = vld [vmem:[#allocation5 + $0x188] sm:$0xff]
        %v467 = vld [vmem:[#allocation5 + $0x190] sm:$0xff]
        %v468 = vld [vmem:[#allocation5 + $0x198] sm:$0xff]
        %v469 = vld [vmem:[#allocation5 + $0x1a0] sm:$0xff]
        %v470 = vld [vmem:[#allocation5 + $0x1a8] sm:$0xff]
        %v471 = vld [vmem:[#allocation5 + $0x1b0] sm:$0xff]
        %v472 = vld [vmem:[#allocation5 + $0x1b8] sm:$0xff]
        %v473 = vld [vmem:[#allocation5 + $0x1c0] sm:$0xff]
        %v474 = vld [vmem:[#allocation5 + $0x1c8] sm:$0xff]
        %v475 = vld [vmem:[#allocation5 + $0x1d0] sm:$0xff]
        %v476 = vld [vmem:[#allocation5 + $0x1d8] sm:$0xff]
        %v477 = vld [vmem:[#allocation5 + $0x1e0] sm:$0xff]
        %v478 = vld [vmem:[#allocation5 + $0x1e8] sm:$0xff]
        %v479 = vld [vmem:[#allocation5 + $0x1f0] sm:$0xff]
        %v480 = vld [vmem:[#allocation5 + $0x1f8] sm:$0xff]
        %v481 = vld [vmem:[#allocation5 + $0x200] sm:$0xff]
        %v482 = vld [vmem:[#allocation5 + $0x208] sm:$0xff]
        %v483 = vld [vmem:[#allocation5 + $0x210] sm:$0xff]
        %v484 = vld [vmem:[#allocation5 + $0x218] sm:$0xff]
        %v485 = vld [vmem:[#allocation5 + $0x220] sm:$0xff]
        %v486 = vld [vmem:[#allocation5 + $0x228] sm:$0xff]
        %v487 = vld [vmem:[#allocation5 + $0x230] sm:$0xff]
        %v488 = vld [vmem:[#allocation5 + $0x238] sm:$0xff]
        %v489 = vld [vmem:[#allocation5 + $0x240] sm:$0xff]
        %v490 = vld [vmem:[#allocation5 + $0x248] sm:$0xff]
        %v491 = vld [vmem:[#allocation5 + $0x250] sm:$0xff]
        %v492 = vld [vmem:[#allocation5 + $0x258] sm:$0xff]
        %v493 = vld [vmem:[#allocation5 + $0x260] sm:$0xff]
        %v494 = vld [vmem:[#allocation5 + $0x268] sm:$0xff]
        %v495 = vld [vmem:[#allocation5 + $0x270] sm:$0xff]
        %v496 = vld [vmem:[#allocation5 + $0x278] sm:$0xff]
        %v497 = vld [vmem:[#allocation5 + $0x280] sm:$0xff]
        %v498 = vld [vmem:[#allocation5 + $0x288] sm:$0xff]
        %v499 = vld [vmem:[#allocation5 + $0x290] sm:$0xff]
        %v500 = vld [vmem:[#allocation5 + $0x298] sm:$0xff]
        %v501 = vld [vmem:[#allocation5 + $0x2a0] sm:$0xff]
        %v502 = vld [vmem:[#allocation5 + $0x2a8] sm:$0xff]
        %v503 = vld [vmem:[#allocation5 + $0x2b0] sm:$0xff]
        %v504 = vld [vmem:[#allocation5 + $0x2b8] sm:$0xff]
        %v505 = vld [vmem:[#allocation5 + $0x2c0] sm:$0xff]
        %v506 = vld [vmem:[#allocation5 + $0x2c8] sm:$0xff]
        %v507 = vld [vmem:[#allocation5 + $0x2d0] sm:$0xff]
        %v508 = vld [vmem:[#allocation5 + $0x2d8] sm:$0xff]
        %v509 = vld [vmem:[#allocation5 + $0x2e0] sm:$0xff]
        %v510 = vld [vmem:[#allocation5 + $0x2e8] sm:$0xff]
        %v511 = vld [vmem:[#allocation5 + $0x2f0] sm:$0xff]
        %v512 = vld [vmem:[#allocation5 + $0x2f8] sm:$0xff]
        %v513 = vld [vmem:[#allocation5 + $0x300] sm:$0xff]
        %v514 = vld [vmem:[#allocation5 + $0x308] sm:$0xff]
        %v515 = vld [vmem:[#allocation5 + $0x310] sm:$0xff]
        %v516 = vld [vmem:[#allocation5 + $0x318] sm:$0xff]
        %v517 = vld [vmem:[#allocation5 + $0x320] sm:$0xff]
        %v518 = vld [vmem:[#allocation5 + $0x328] sm:$0xff]
        %v519 = vld [vmem:[#allocation5 + $0x330] sm:$0xff]
        %v520 = vld [vmem:[#allocation5 + $0x338] sm:$0xff]
        %v521 = vld [vmem:[#allocation5 + $0x340] sm:$0xff]
        %v522 = vld [vmem:[#allocation5 + $0x348] sm:$0xff]
        %v523 = vld [vmem:[#allocation5 + $0x350] sm:$0xff]
        %v524 = vld [vmem:[#allocation5 + $0x358] sm:$0xff]
        %v525 = vld [vmem:[#allocation5 + $0x360] sm:$0xff]
        %v526 = vld [vmem:[#allocation5 + $0x368] sm:$0xff]
        %v527 = vld [vmem:[#allocation5 + $0x370] sm:$0xff]
        %v528 = vld [vmem:[#allocation5 + $0x378] sm:$0xff]
        %v529 = vld [vmem:[#allocation5 + $0x380] sm:$0xff]
        %v530 = vld [vmem:[#allocation5 + $0x388] sm:$0xff]
        %v531 = vld [vmem:[#allocation5 + $0x390] sm:$0xff]
        %v532 = vld [vmem:[#allocation5 + $0x398] sm:$0xff]
        %v533 = vld [vmem:[#allocation5 + $0x3a0] sm:$0xff]
        %v534 = vld [vmem:[#allocation5 + $0x3a8] sm:$0xff]
        %v535 = vld [vmem:[#allocation5 + $0x3b0] sm:$0xff]
        %v536 = vld [vmem:[#allocation5 + $0x3b8] sm:$0xff]
        %v537 = vld [vmem:[#allocation5 + $0x3c0] sm:$0xff]
        %v538 = vld [vmem:[#allocation5 + $0x3c8] sm:$0xff]
        %v539 = vld [vmem:[#allocation5 + $0x3d0] sm:$0xff]
        %v540 = vld [vmem:[#allocation5 + $0x3d8] sm:$0xff]
        %v541 = vld [vmem:[#allocation5 + $0x3e0] sm:$0xff]
        %v542 = vld [vmem:[#allocation5 + $0x3e8] sm:$0xff]
        %v543 = vld [vmem:[#allocation5 + $0x3f0] sm:$0xff]
        %v544 = vld [vmem:[#allocation5 + $0x3f8] sm:$0xff]
        %v545 = vld [vmem:[#allocation5 + $0x400] sm:$0xff]
        %v546 = vld [vmem:[#allocation5 + $0x408] sm:$0xff]
        %v547 = vld [vmem:[#allocation5 + $0x410] sm:$0xff]
        %v548 = vld [vmem:[#allocation5 + $0x418] sm:$0xff]
        %v549 = vld [vmem:[#allocation5 + $0x420] sm:$0xff]
        %v550 = vld [vmem:[#allocation5 + $0x428] sm:$0xff]
        %v551 = vld [vmem:[#allocation5 + $0x430] sm:$0xff]
        %v552 = vld [vmem:[#allocation5 + $0x438] sm:$0xff]
        %v553 = vld [vmem:[#allocation5 + $0x440] sm:$0xff]
        %v554 = vld [vmem:[#allocation5 + $0x448] sm:$0xff]
        %v555 = vld [vmem:[#allocation5 + $0x450] sm:$0xff]
        %v556 = vld [vmem:[#allocation5 + $0x458] sm:$0xff]
        %v557 = vld [vmem:[#allocation5 + $0x460] sm:$0xff]
        %v558 = vld [vmem:[#allocation5 + $0x468] sm:$0xff]
        %v559 = vld [vmem:[#allocation5 + $0x470] sm:$0xff]
        %v560 = vld [vmem:[#allocation5 + $0x478] sm:$0xff]
        %v561 = vld [vmem:[#allocation5 + $0x480] sm:$0xff]
        %v562 = vld [vmem:[#allocation5 + $0x488] sm:$0xff]
        %v563 = vld [vmem:[#allocation5 + $0x490] sm:$0xff]
        %v564 = vld [vmem:[#allocation5 + $0x498] sm:$0xff]
        %v565 = vld [vmem:[#allocation5 + $0x4a0] sm:$0xff]
        %v566 = vld [vmem:[#allocation5 + $0x4a8] sm:$0xff]
        %v567 = vld [vmem:[#allocation5 + $0x4b0] sm:$0xff]
        %v568 = vld [vmem:[#allocation5 + $0x4b8] sm:$0xff]
        %v569 = vld [vmem:[#allocation5 + $0x4c0] sm:$0xff]
        %v570 = vld [vmem:[#allocation5 + $0x4c8] sm:$0xff]
        %v571 = vld [vmem:[#allocation5 + $0x4d0] sm:$0xff]
        %v572 = vld [vmem:[#allocation5 + $0x4d8] sm:$0xff]
        %v573 = vld [vmem:[#allocation5 + $0x4e0] sm:$0xff]
        %v574 = vld [vmem:[#allocation5 + $0x4e8] sm:$0xff]
        %v575 = vld [vmem:[#allocation5 + $0x4f0] sm:$0xff]
        %v576 = vld [vmem:[#allocation5 + $0x4f8] sm:$0xff]
        %v577 = vld [vmem:[#allocation5 + $0x500] sm:$0xff]
        %v578 = vld [vmem:[#allocation5 + $0x508] sm:$0xff]
        %v579 = vld [vmem:[#allocation5 + $0x510] sm:$0xff]
        %v580 = vld [vmem:[#allocation5 + $0x518] sm:$0xff]
        %v581 = vld [vmem:[#allocation5 + $0x520] sm:$0xff]
        %v582 = vld [vmem:[#allocation5 + $0x528] sm:$0xff]
        %v583 = vld [vmem:[#allocation5 + $0x530] sm:$0xff]
        %v584 = vld [vmem:[#allocation5 + $0x538] sm:$0xff]
        %v585 = vld [vmem:[#allocation5 + $0x540] sm:$0xff]
        %v586 = vld [vmem:[#allocation5 + $0x548] sm:$0xff]
        %v587 = vld [vmem:[#allocation5 + $0x550] sm:$0xff]
        %v588 = vld [vmem:[#allocation5 + $0x558] sm:$0xff]
        %v589 = vld [vmem:[#allocation5 + $0x560] sm:$0xff]
        %v590 = vld [vmem:[#allocation5 + $0x568] sm:$0xff]
        %v591 = vld [vmem:[#allocation5 + $0x570] sm:$0xff]
        %v592 = vld [vmem:[#allocation5 + $0x578] sm:$0xff]
        %v593 = vld [vmem:[#allocation5 + $0x580] sm:$0xff]
        %v594 = vld [vmem:[#allocation5 + $0x588] sm:$0xff]
        %v595 = vld [vmem:[#allocation5 + $0x590] sm:$0xff]
        %v596 = vld [vmem:[#allocation5 + $0x598] sm:$0xff]
        %v597 = vld [vmem:[#allocation5 + $0x5a0] sm:$0xff]
        %v598 = vld [vmem:[#allocation5 + $0x5a8] sm:$0xff]
        %v599 = vld [vmem:[#allocation5 + $0x5b0] sm:$0xff]
        %v600 = vld [vmem:[#allocation5 + $0x5b8] sm:$0xff]
        %v601 = vld [vmem:[#allocation5 + $0x5c0] sm:$0xff]
        %v602 = vld [vmem:[#allocation5 + $0x5c8] sm:$0xff]
        %v603 = vld [vmem:[#allocation5 + $0x5d0] sm:$0xff]
        %v604 = vld [vmem:[#allocation5 + $0x5d8] sm:$0xff]
        %v605 = vld [vmem:[#allocation5 + $0x5e0] sm:$0xff]
        %v606 = vld [vmem:[#allocation5 + $0x5e8] sm:$0xff]
        %v607 = vld [vmem:[#allocation5 + $0x5f0] sm:$0xff]
        %v608 = vld [vmem:[#allocation5 + $0x5f8] sm:$0xff]
        %v609 = vld [vmem:[#allocation5 + $0x600] sm:$0xff]
        %v610 = vld [vmem:[#allocation5 + $0x608] sm:$0xff]
        %v611 = vld [vmem:[#allocation5 + $0x610] sm:$0xff]
        %v612 = vld [vmem:[#allocation5 + $0x618] sm:$0xff]
        %v613 = vld [vmem:[#allocation5 + $0x620] sm:$0xff]
        %v614 = vld [vmem:[#allocation5 + $0x628] sm:$0xff]
        %v615 = vld [vmem:[#allocation5 + $0x630] sm:$0xff]
        %v616 = vld [vmem:[#allocation5 + $0x638] sm:$0xff]
        %v617 = vld [vmem:[#allocation5 + $0x640] sm:$0xff]
        %v618 = vld [vmem:[#allocation5 + $0x648] sm:$0xff]
        %v619 = vld [vmem:[#allocation5 + $0x650] sm:$0xff]
        %v620 = vld [vmem:[#allocation5 + $0x658] sm:$0xff]
        %v621 = vld [vmem:[#allocation5 + $0x660] sm:$0xff]
        %v622 = vld [vmem:[#allocation5 + $0x668] sm:$0xff]
        %v623 = vld [vmem:[#allocation5 + $0x670] sm:$0xff]
        %v624 = vld [vmem:[#allocation5 + $0x678] sm:$0xff]
        %v625 = vand.u32 %v612, 4294901760
        %626 = vmatpush.msra.mxu0 %v625
        %v627 = vand.u32 %v599, 4294901760
        %628 = vmatpush.msra.mxu0 %v627
        %v629 = vand.u32 %v586, 4294901760
        %630 = vmatpush.msra.mxu0 %v629
        %v631 = vand.u32 %v573, 4294901760
        %632 = vmatpush.msra.mxu0 %v631
        %v633 = vand.u32 %v560, 4294901760
        %634 = vmatpush.msra.mxu0 %v633
        %v635 = vand.u32 %v547, 4294901760
        %636 = vmatpush.msra.mxu0 %v635
        %v637 = vand.u32 %v534, 4294901760
        %638 = vmatpush.msra.mxu0 %v637
        %v639 = vand.u32 %v521, 4294901760
        %640 = vmatpush.msra.mxu0 %v639
        %v641 = vand.u32 %v508, 4294901760
        %642 = vmatpush.msra.mxu0 %v641
        %v643 = vand.u32 %v495, 4294901760
        %644 = vmatpush.msra.mxu0 %v643
        %v645 = vand.u32 %v482, 4294901760
        %646 = vmatpush.msra.mxu0 %v645
        %v647 = vand.u32 %v469, 4294901760
        %648 = vmatpush.msra.mxu0 %v647
        %v649 = vand.u32 %v456, 4294901760
        %650 = vmatpush.msra.mxu0 %v649
        %v651 = vand.u32 %v443, 4294901760
        %652 = vmatpush.msra.mxu0 %v651
        %v653 = vand.u32 %v430, 4294901760
        %654 = vmatpush.msra.mxu0 %v653
        %v655 = vand.u32 %v417, 4294901760
        %656 = vmatpush.msra.mxu0 %v655
        %v657 = vand.u32 %v416, 4294901760
        %v658 = vsub.f32 %v416, %v657
        %v659 = vand.u32 %v658, 4294901760
        %v660 = vsub.f32 %v658, %v659
        %v661 = vand.u32 %v660, 4294901760
        %662 = vmatmul.f32.gmra.mxu0 %v661
        %v663 = vpop.f32.mrf.mxu0
        %v664 = vadd.f32 0.0, %v663
        %665 = vdwg.mxu0
        %v666 = vand.u32 %v612, 4294901760
        %v667 = vsub.f32 %v612, %v666
        %v668 = vand.u32 %v667, 4294901760
        %v669 = vsub.f32 %v667, %v668
        %v670 = vand.u32 %v669, 4294901760
        %671 = vmatpush.msra.mxu0 %v670
        %v672 = vand.u32 %v599, 4294901760
        %v673 = vsub.f32 %v599, %v672
        %v674 = vand.u32 %v673, 4294901760
        %v675 = vsub.f32 %v673, %v674
        %v676 = vand.u32 %v675, 4294901760
        %677 = vmatpush.msra.mxu0 %v676
        %v678 = vand.u32 %v586, 4294901760
        %v679 = vsub.f32 %v586, %v678
        %v680 = vand.u32 %v679, 4294901760
        %v681 = vsub.f32 %v679, %v680
        %v682 = vand.u32 %v681, 4294901760
        %683 = vmatpush.msra.mxu0 %v682
        %v684 = vand.u32 %v573, 4294901760
        %v685 = vsub.f32 %v573, %v684
        %v686 = vand.u32 %v685, 4294901760
        %v687 = vsub.f32 %v685, %v686
        %v688 = vand.u32 %v687, 4294901760
        %689 = vmatpush.msra.mxu0 %v688
        %v690 = vand.u32 %v560, 4294901760
        %v691 = vsub.f32 %v560, %v690
        %v692 = vand.u32 %v691, 4294901760
        %v693 = vsub.f32 %v691, %v692
        %v694 = vand.u32 %v693, 4294901760
        %695 = vmatpush.msra.mxu0 %v694
        %v696 = vand.u32 %v547, 4294901760
        %v697 = vsub.f32 %v547, %v696
        %v698 = vand.u32 %v697, 4294901760
        %v699 = vsub.f32 %v697, %v698
        %v700 = vand.u32 %v699, 4294901760
        %701 = vmatpush.msra.mxu0 %v700
        %v702 = vand.u32 %v534, 4294901760
        %v703 = vsub.f32 %v534, %v702
        %v704 = vand.u32 %v703, 4294901760
        %v705 = vsub.f32 %v703, %v704
        %v706 = vand.u32 %v705, 4294901760
        %707 = vmatpush.msra.mxu0 %v706
        %v708 = vand.u32 %v521, 4294901760
        %v709 = vsub.f32 %v521, %v708
        %v710 = vand.u32 %v709, 4294901760
        %v711 = vsub.f32 %v709, %v710
        %v712 = vand.u32 %v711, 4294901760
        %713 = vmatpush.msra.mxu0 %v712
        %v714 = vand.u32 %v508, 4294901760
        %v715 = vsub.f32 %v508, %v714
        %v716 = vand.u32 %v715, 4294901760
        %v717 = vsub.f32 %v715, %v716
        %v718 = vand.u32 %v717, 4294901760
        %719 = vmatpush.msra.mxu0 %v718
        %v720 = vand.u32 %v495, 4294901760
        %v721 = vsub.f32 %v495, %v720
        %v722 = vand.u32 %v721, 4294901760
        %v723 = vsub.f32 %v721, %v722
        %v724 = vand.u32 %v723, 4294901760
        %725 = vmatpush.msra.mxu0 %v724
        %v726 = vand.u32 %v482, 4294901760
        %v727 = vsub.f32 %v482, %v726
        %v728 = vand.u32 %v727, 4294901760
        %v729 = vsub.f32 %v727, %v728
        %v730 = vand.u32 %v729, 4294901760
        %731 = vmatpush.msra.mxu0 %v730
        %v732 = vand.u32 %v469, 4294901760
        %v733 = vsub.f32 %v469, %v732
        %v734 = vand.u32 %v733, 4294901760
        %v735 = vsub.f32 %v733, %v734
        %v736 = vand.u32 %v735, 4294901760
        %737 = vmatpush.msra.mxu0 %v736
        %v738 = vand.u32 %v456, 4294901760
        %v739 = vsub.f32 %v456, %v738
        %v740 = vand.u32 %v739, 4294901760
        %v741 = vsub.f32 %v739, %v740
        %v742 = vand.u32 %v741, 4294901760
        %743 = vmatpush.msra.mxu0 %v742
        %v744 = vand.u32 %v443, 4294901760
        %v745 = vsub.f32 %v443, %v744
        %v746 = vand.u32 %v745, 4294901760
        %v747 = vsub.f32 %v745, %v746
        %v748 = vand.u32 %v747, 4294901760
        %749 = vmatpush.msra.mxu0 %v748
        %v750 = vand.u32 %v430, 4294901760
        %v751 = vsub.f32 %v430, %v750
        %v752 = vand.u32 %v751, 4294901760
        %v753 = vsub.f32 %v751, %v752
        %v754 = vand.u32 %v753, 4294901760
        %755 = vmatpush.msra.mxu0 %v754
        %v756 = vand.u32 %v417, 4294901760
        %v757 = vsub.f32 %v417, %v756
        %v758 = vand.u32 %v757, 4294901760
        %v759 = vsub.f32 %v757, %v758
        %v760 = vand.u32 %v759, 4294901760
        %761 = vmatpush.msra.mxu0 %v760
        %v762 = vand.u32 %v416, 4294901760
        %763 = vmatmul.f32.gmra.mxu0 %v762
        %v764 = vpop.f32.mrf.mxu0
        %v765 = vadd.f32 %v664, %v764
        %766 = vdwg.mxu0
        %v767 = vand.u32 %v612, 4294901760
        %v768 = vsub.f32 %v612, %v767
        %769 = vmatpush.msra.mxu0 %v768
        %v770 = vand.u32 %v599, 4294901760
        %v771 = vsub.f32 %v599, %v770
        %772 = vmatpush.msra.mxu0 %v771
        %v773 = vand.u32 %v586, 4294901760
        %v774 = vsub.f32 %v586, %v773
        %775 = vmatpush.msra.mxu0 %v774
        %v776 = vand.u32 %v573, 4294901760
        %v777 = vsub.f32 %v573, %v776
        %778 = vmatpush.msra.mxu0 %v777
        %v779 = vand.u32 %v560, 4294901760
        %v780 = vsub.f32 %v560, %v779
        %781 = vmatpush.msra.mxu0 %v780
        %v782 = vand.u32 %v547, 4294901760
        %v783 = vsub.f32 %v547, %v782
        %784 = vmatpush.msra.mxu0 %v783
        %v785 = vand.u32 %v534, 4294901760
        %v786 = vsub.f32 %v534, %v785
        %787 = vmatpush.msra.mxu0 %v786
        %v788 = vand.u32 %v521, 4294901760
        %v789 = vsub.f32 %v521, %v788
        %790 = vmatpush.msra.mxu0 %v789
        %v791 = vand.u32 %v508, 4294901760
        %v792 = vsub.f32 %v508, %v791
        %793 = vmatpush.msra.mxu0 %v792
        %v794 = vand.u32 %v495, 4294901760
        %v795 = vsub.f32 %v495, %v794
        %796 = vmatpush.msra.mxu0 %v795
        %v797 = vand.u32 %v482, 4294901760
        %v798 = vsub.f32 %v482, %v797
        %799 = vmatpush.msra.mxu0 %v798
        %v800 = vand.u32 %v469, 4294901760
        %v801 = vsub.f32 %v469, %v800
        %802 = vmatpush.msra.mxu0 %v801
        %v803 = vand.u32 %v456, 4294901760
        %v804 = vsub.f32 %v456, %v803
        %805 = vmatpush.msra.mxu0 %v804
        %v806 = vand.u32 %v443, 4294901760
        %v807 = vsub.f32 %v443, %v806
        %808 = vmatpush.msra.mxu0 %v807
        %v809 = vand.u32 %v430, 4294901760
        %v810 = vsub.f32 %v430, %v809
        %811 = vmatpush.msra.mxu0 %v810
        %v812 = vand.u32 %v417, 4294901760
        %v813 = vsub.f32 %v417, %v812
        %814 = vmatpush.msra.mxu0 %v813
        %v815 = vand.u32 %v416, 4294901760
        %v816 = vsub.f32 %v416, %v815
        %817 = vmatmul.f32.gmra.mxu0 %v816
        %v818 = vpop.f32.mrf.mxu0
        %v819 = vadd.f32 %v765, %v818
        %820 = vdwg.mxu0
        %v821 = vand.u32 %v612, 4294901760
        %822 = vmatpush.msra.mxu0 %v821
        %v823 = vand.u32 %v599, 4294901760
        %824 = vmatpush.msra.mxu0 %v823
        %v825 = vand.u32 %v586, 4294901760
        %826 = vmatpush.msra.mxu0 %v825
        %v827 = vand.u32 %v573, 4294901760
        %828 = vmatpush.msra.mxu0 %v827
        %v829 = vand.u32 %v560, 4294901760
        %830 = vmatpush.msra.mxu0 %v829
        %v831 = vand.u32 %v547, 4294901760
        %832 = vmatpush.msra.mxu0 %v831
        %v833 = vand.u32 %v534, 4294901760
        %834 = vmatpush.msra.mxu0 %v833
        %v835 = vand.u32 %v521, 4294901760
        %836 = vmatpush.msra.mxu0 %v835
        %v837 = vand.u32 %v508, 4294901760
        %838 = vmatpush.msra.mxu0 %v837
        %v839 = vand.u32 %v495, 4294901760
        %840 = vmatpush.msra.mxu0 %v839
        %v841 = vand.u32 %v482, 4294901760
        %842 = vmatpush.msra.mxu0 %v841
        %v843 = vand.u32 %v469, 4294901760
        %844 = vmatpush.msra.mxu0 %v843
        %v845 = vand.u32 %v456, 4294901760
        %846 = vmatpush.msra.mxu0 %v845
        %v847 = vand.u32 %v443, 4294901760
        %848 = vmatpush.msra.mxu0 %v847
        %v849 = vand.u32 %v430, 4294901760
        %850 = vmatpush.msra.mxu0 %v849
        %v851 = vand.u32 %v417, 4294901760
        %852 = vmatpush.msra.mxu0 %v851
        %v853 = vand.u32 %v416, 4294901760
        %v854 = vsub.f32 %v416, %v853
        %v855 = vand.u32 %v854, 4294901760
        %856 = vmatmul.f32.gmra.mxu0 %v855
        %v857 = vpop.f32.mrf.mxu0
        %v858 = vadd.f32 %v819, %v857
        %859 = vdwg.mxu0
        %v860 = vand.u32 %v612, 4294901760
        %v861 = vsub.f32 %v612, %v860
        %v862 = vand.u32 %v861, 4294901760
        %863 = vmatpush.msra.mxu0 %v862
        %v864 = vand.u32 %v599, 4294901760
        %v865 = vsub.f32 %v599, %v864
        %v866 = vand.u32 %v865, 4294901760
        %867 = vmatpush.msra.mxu0 %v866
        %v868 = vand.u32 %v586, 4294901760
        %v869 = vsub.f32 %v586, %v868
        %v870 = vand.u32 %v869, 4294901760
        %871 = vmatpush.msra.mxu0 %v870
        %v872 = vand.u32 %v573, 4294901760
        %v873 = vsub.f32 %v573, %v872
        %v874 = vand.u32 %v873, 4294901760
        %875 = vmatpush.msra.mxu0 %v874
        %v876 = vand.u32 %v560, 4294901760
        %v877 = vsub.f32 %v560, %v876
        %v878 = vand.u32 %v877, 4294901760
        %879 = vmatpush.msra.mxu0 %v878
        %v880 = vand.u32 %v547, 4294901760
        %v881 = vsub.f32 %v547, %v880
        %v882 = vand.u32 %v881, 4294901760
        %883 = vmatpush.msra.mxu0 %v882
        %v884 = vand.u32 %v534, 4294901760
        %v885 = vsub.f32 %v534, %v884
        %v886 = vand.u32 %v885, 4294901760
        %887 = vmatpush.msra.mxu0 %v886
        %v888 = vand.u32 %v521, 4294901760
        %v889 = vsub.f32 %v521, %v888
        %v890 = vand.u32 %v889, 4294901760
        %891 = vmatpush.msra.mxu0 %v890
        %v892 = vand.u32 %v508, 4294901760
        %v893 = vsub.f32 %v508, %v892
        %v894 = vand.u32 %v893, 4294901760
        %895 = vmatpush.msra.mxu0 %v894
        %v896 = vand.u32 %v495, 4294901760
        %v897 = vsub.f32 %v495, %v896
        %v898 = vand.u32 %v897, 4294901760
        %899 = vmatpush.msra.mxu0 %v898
        %v900 = vand.u32 %v482, 4294901760
        %v901 = vsub.f32 %v482, %v900
        %v902 = vand.u32 %v901, 4294901760
        %903 = vmatpush.msra.mxu0 %v902
        %v904 = vand.u32 %v469, 4294901760
        %v905 = vsub.f32 %v469, %v904
        %v906 = vand.u32 %v905, 4294901760
        %907 = vmatpush.msra.mxu0 %v906
        %v908 = vand.u32 %v456, 4294901760
        %v909 = vsub.f32 %v456, %v908
        %v910 = vand.u32 %v909, 4294901760
        %911 = vmatpush.msra.mxu0 %v910
        %v912 = vand.u32 %v443, 4294901760
        %v913 = vsub.f32 %v443, %v912
        %v914 = vand.u32 %v913, 4294901760
        %915 = vmatpush.msra.mxu0 %v914
        %v916 = vand.u32 %v430, 4294901760
        %v917 = vsub.f32 %v430, %v916
        %v918 = vand.u32 %v917, 4294901760
        %919 = vmatpush.msra.mxu0 %v918
        %v920 = vand.u32 %v417, 4294901760
        %v921 = vsub.f32 %v417, %v920
        %v922 = vand.u32 %v921, 4294901760
        %923 = vmatpush.msra.mxu0 %v922
        %v924 = vand.u32 %v416, 4294901760
        %925 = vmatmul.f32.gmra.mxu0 %v924
        %v926 = vpop.f32.mrf.mxu0
        %v927 = vadd.f32 %v858, %v926
        %928 = vdwg.mxu0
        %v929 = vand.u32 %v612, 4294901760
        %930 = vmatpush.msra.mxu0 %v929
        %v931 = vand.u32 %v599, 4294901760
        %932 = vmatpush.msra.mxu0 %v931
        %v933 = vand.u32 %v586, 4294901760
        %934 = vmatpush.msra.mxu0 %v933
        %v935 = vand.u32 %v573, 4294901760
        %936 = vmatpush.msra.mxu0 %v935
        %v937 = vand.u32 %v560, 4294901760
        %938 = vmatpush.msra.mxu0 %v937
        %v939 = vand.u32 %v547, 4294901760
        %940 = vmatpush.msra.mxu0 %v939
        %v941 = vand.u32 %v534, 4294901760
        %942 = vmatpush.msra.mxu0 %v941
        %v943 = vand.u32 %v521, 4294901760
        %944 = vmatpush.msra.mxu0 %v943
        %v945 = vand.u32 %v508, 4294901760
        %946 = vmatpush.msra.mxu0 %v945
        %v947 = vand.u32 %v495, 4294901760
        %948 = vmatpush.msra.mxu0 %v947
        %v949 = vand.u32 %v482, 4294901760
        %950 = vmatpush.msra.mxu0 %v949
        %v951 = vand.u32 %v469, 4294901760
        %952 = vmatpush.msra.mxu0 %v951
        %v953 = vand.u32 %v456, 4294901760
        %954 = vmatpush.msra.mxu0 %v953
        %v955 = vand.u32 %v443, 4294901760
        %956 = vmatpush.msra.mxu0 %v955
        %v957 = vand.u32 %v430, 4294901760
        %958 = vmatpush.msra.mxu0 %v957
        %v959 = vand.u32 %v417, 4294901760
        %960 = vmatpush.msra.mxu0 %v959
        %v961 = vand.u32 %v416, 4294901760
        %962 = vmatmul.f32.gmra.mxu0 %v961
        %v963 = vpop.f32.mrf.mxu0
        %v964 = vadd.f32 %v927, %v963
        %965 = vdwg.mxu0
        %v966 = vand.u32 %v613, 4294901760
        %967 = vmatpush.msra.mxu0 %v966
        %v968 = vand.u32 %v600, 4294901760
        %969 = vmatpush.msra.mxu0 %v968
        %v970 = vand.u32 %v587, 4294901760
        %971 = vmatpush.msra.mxu0 %v970
        %v972 = vand.u32 %v574, 4294901760
        %973 = vmatpush.msra.mxu0 %v972
        %v974 = vand.u32 %v561, 4294901760
        %975 = vmatpush.msra.mxu0 %v974
        %v976 = vand.u32 %v548, 4294901760
        %977 = vmatpush.msra.mxu0 %v976
        %v978 = vand.u32 %v535, 4294901760
        %979 = vmatpush.msra.mxu0 %v978
        %v980 = vand.u32 %v522, 4294901760
        %981 = vmatpush.msra.mxu0 %v980
        %v982 = vand.u32 %v509, 4294901760
        %983 = vmatpush.msra.mxu0 %v982
        %v984 = vand.u32 %v496, 4294901760
        %985 = vmatpush.msra.mxu0 %v984
        %v986 = vand.u32 %v483, 4294901760
        %987 = vmatpush.msra.mxu0 %v986
        %v988 = vand.u32 %v470, 4294901760
        %989 = vmatpush.msra.mxu0 %v988
        %v990 = vand.u32 %v457, 4294901760
        %991 = vmatpush.msra.mxu0 %v990
        %v992 = vand.u32 %v444, 4294901760
        %993 = vmatpush.msra.mxu0 %v992
        %v994 = vand.u32 %v431, 4294901760
        %995 = vmatpush.msra.mxu0 %v994
        %v996 = vand.u32 %v418, 4294901760
        %997 = vmatpush.msra.mxu0 %v996
        %v998 = vand.u32 %v416, 4294901760
        %v999 = vsub.f32 %v416, %v998
        %v1000 = vand.u32 %v999, 4294901760
        %v1001 = vsub.f32 %v999, %v1000
        %v1002 = vand.u32 %v1001, 4294901760
        %1003 = vmatmul.f32.gmra.mxu0 %v1002
        %v1004 = vpop.f32.mrf.mxu0
        %v1005 = vadd.f32 0.0, %v1004
        %1006 = vdwg.mxu0
        %v1007 = vand.u32 %v613, 4294901760
        %v1008 = vsub.f32 %v613, %v1007
        %v1009 = vand.u32 %v1008, 4294901760
        %v1010 = vsub.f32 %v1008, %v1009
        %v1011 = vand.u32 %v1010, 4294901760
        %1012 = vmatpush.msra.mxu0 %v1011
        %v1013 = vand.u32 %v600, 4294901760
        %v1014 = vsub.f32 %v600, %v1013
        %v1015 = vand.u32 %v1014, 4294901760
        %v1016 = vsub.f32 %v1014, %v1015
        %v1017 = vand.u32 %v1016, 4294901760
        %1018 = vmatpush.msra.mxu0 %v1017
        %v1019 = vand.u32 %v587, 4294901760
        %v1020 = vsub.f32 %v587, %v1019
        %v1021 = vand.u32 %v1020, 4294901760
        %v1022 = vsub.f32 %v1020, %v1021
        %v1023 = vand.u32 %v1022, 4294901760
        %1024 = vmatpush.msra.mxu0 %v1023
        %v1025 = vand.u32 %v574, 4294901760
        %v1026 = vsub.f32 %v574, %v1025
        %v1027 = vand.u32 %v1026, 4294901760
        %v1028 = vsub.f32 %v1026, %v1027
        %v1029 = vand.u32 %v1028, 4294901760
        %1030 = vmatpush.msra.mxu0 %v1029
        %v1031 = vand.u32 %v561, 4294901760
        %v1032 = vsub.f32 %v561, %v1031
        %v1033 = vand.u32 %v1032, 4294901760
        %v1034 = vsub.f32 %v1032, %v1033
        %v1035 = vand.u32 %v1034, 4294901760
        %1036 = vmatpush.msra.mxu0 %v1035
        %v1037 = vand.u32 %v548, 4294901760
        %v1038 = vsub.f32 %v548, %v1037
        %v1039 = vand.u32 %v1038, 4294901760
        %v1040 = vsub.f32 %v1038, %v1039
        %v1041 = vand.u32 %v1040, 4294901760
        %1042 = vmatpush.msra.mxu0 %v1041
        %v1043 = vand.u32 %v535, 4294901760
        %v1044 = vsub.f32 %v535, %v1043
        %v1045 = vand.u32 %v1044, 4294901760
        %v1046 = vsub.f32 %v1044, %v1045
        %v1047 = vand.u32 %v1046, 4294901760
        %1048 = vmatpush.msra.mxu0 %v1047
        %v1049 = vand.u32 %v522, 4294901760
        %v1050 = vsub.f32 %v522, %v1049
        %v1051 = vand.u32 %v1050, 4294901760
        %v1052 = vsub.f32 %v1050, %v1051
        %v1053 = vand.u32 %v1052, 4294901760
        %1054 = vmatpush.msra.mxu0 %v1053
        %v1055 = vand.u32 %v509, 4294901760
        %v1056 = vsub.f32 %v509, %v1055
        %v1057 = vand.u32 %v1056, 4294901760
        %v1058 = vsub.f32 %v1056, %v1057
        %v1059 = vand.u32 %v1058, 4294901760
        %1060 = vmatpush.msra.mxu0 %v1059
        %v1061 = vand.u32 %v496, 4294901760
        %v1062 = vsub.f32 %v496, %v1061
        %v1063 = vand.u32 %v1062, 4294901760
        %v1064 = vsub.f32 %v1062, %v1063
        %v1065 = vand.u32 %v1064, 4294901760
        %1066 = vmatpush.msra.mxu0 %v1065
        %v1067 = vand.u32 %v483, 4294901760
        %v1068 = vsub.f32 %v483, %v1067
        %v1069 = vand.u32 %v1068, 4294901760
        %v1070 = vsub.f32 %v1068, %v1069
        %v1071 = vand.u32 %v1070, 4294901760
        %1072 = vmatpush.msra.mxu0 %v1071
        %v1073 = vand.u32 %v470, 4294901760
        %v1074 = vsub.f32 %v470, %v1073
        %v1075 = vand.u32 %v1074, 4294901760
        %v1076 = vsub.f32 %v1074, %v1075
        %v1077 = vand.u32 %v1076, 4294901760
        %1078 = vmatpush.msra.mxu0 %v1077
        %v1079 = vand.u32 %v457, 4294901760
        %v1080 = vsub.f32 %v457, %v1079
        %v1081 = vand.u32 %v1080, 4294901760
        %v1082 = vsub.f32 %v1080, %v1081
        %v1083 = vand.u32 %v1082, 4294901760
        %1084 = vmatpush.msra.mxu0 %v1083
        %v1085 = vand.u32 %v444, 4294901760
        %v1086 = vsub.f32 %v444, %v1085
        %v1087 = vand.u32 %v1086, 4294901760
        %v1088 = vsub.f32 %v1086, %v1087
        %v1089 = vand.u32 %v1088, 4294901760
        %1090 = vmatpush.msra.mxu0 %v1089
        %v1091 = vand.u32 %v431, 4294901760
        %v1092 = vsub.f32 %v431, %v1091
        %v1093 = vand.u32 %v1092, 4294901760
        %v1094 = vsub.f32 %v1092, %v1093
        %v1095 = vand.u32 %v1094, 4294901760
        %1096 = vmatpush.msra.mxu0 %v1095
        %v1097 = vand.u32 %v418, 4294901760
        %v1098 = vsub.f32 %v418, %v1097
        %v1099 = vand.u32 %v1098, 4294901760
        %v1100 = vsub.f32 %v1098, %v1099
        %v1101 = vand.u32 %v1100, 4294901760
        %1102 = vmatpush.msra.mxu0 %v1101
        %v1103 = vand.u32 %v416, 4294901760
        %1104 = vmatmul.f32.gmra.mxu0 %v1103
        %v1105 = vpop.f32.mrf.mxu0
        %v1106 = vadd.f32 %v1005, %v1105
        %1107 = vdwg.mxu0
        %v1108 = vand.u32 %v613, 4294901760
        %v1109 = vsub.f32 %v613, %v1108
        %1110 = vmatpush.msra.mxu0 %v1109
        %v1111 = vand.u32 %v600, 4294901760
        %v1112 = vsub.f32 %v600, %v1111
        %1113 = vmatpush.msra.mxu0 %v1112
        %v1114 = vand.u32 %v587, 4294901760
        %v1115 = vsub.f32 %v587, %v1114
        %1116 = vmatpush.msra.mxu0 %v1115
        %v1117 = vand.u32 %v574, 4294901760
        %v1118 = vsub.f32 %v574, %v1117
        %1119 = vmatpush.msra.mxu0 %v1118
        %v1120 = vand.u32 %v561, 4294901760
        %v1121 = vsub.f32 %v561, %v1120
        %1122 = vmatpush.msra.mxu0 %v1121
        %v1123 = vand.u32 %v548, 4294901760
        %v1124 = vsub.f32 %v548, %v1123
        %1125 = vmatpush.msra.mxu0 %v1124
        %v1126 = vand.u32 %v535, 4294901760
        %v1127 = vsub.f32 %v535, %v1126
        %1128 = vmatpush.msra.mxu0 %v1127
        %v1129 = vand.u32 %v522, 4294901760
        %v1130 = vsub.f32 %v522, %v1129
        %1131 = vmatpush.msra.mxu0 %v1130
        %v1132 = vand.u32 %v509, 4294901760
        %v1133 = vsub.f32 %v509, %v1132
        %1134 = vmatpush.msra.mxu0 %v1133
        %v1135 = vand.u32 %v496, 4294901760
        %v1136 = vsub.f32 %v496, %v1135
        %1137 = vmatpush.msra.mxu0 %v1136
        %v1138 = vand.u32 %v483, 4294901760
        %v1139 = vsub.f32 %v483, %v1138
        %1140 = vmatpush.msra.mxu0 %v1139
        %v1141 = vand.u32 %v470, 4294901760
        %v1142 = vsub.f32 %v470, %v1141
        %1143 = vmatpush.msra.mxu0 %v1142
        %v1144 = vand.u32 %v457, 4294901760
        %v1145 = vsub.f32 %v457, %v1144
        %1146 = vmatpush.msra.mxu0 %v1145
        %v1147 = vand.u32 %v444, 4294901760
        %v1148 = vsub.f32 %v444, %v1147
        %1149 = vmatpush.msra.mxu0 %v1148
        %v1150 = vand.u32 %v431, 4294901760
        %v1151 = vsub.f32 %v431, %v1150
        %1152 = vmatpush.msra.mxu0 %v1151
        %v1153 = vand.u32 %v418, 4294901760
        %v1154 = vsub.f32 %v418, %v1153
        %1155 = vmatpush.msra.mxu0 %v1154
        %v1156 = vand.u32 %v416, 4294901760
        %v1157 = vsub.f32 %v416, %v1156
        %1158 = vmatmul.f32.gmra.mxu0 %v1157
        %v1159 = vpop.f32.mrf.mxu0
        %v1160 = vadd.f32 %v1106, %v1159
        %1161 = vdwg.mxu0
        %v1162 = vand.u32 %v613, 4294901760
        %1163 = vmatpush.msra.mxu0 %v1162
        %v1164 = vand.u32 %v600, 4294901760
        %1165 = vmatpush.msra.mxu0 %v1164
        %v1166 = vand.u32 %v587, 4294901760
        %1167 = vmatpush.msra.mxu0 %v1166
        %v1168 = vand.u32 %v574, 4294901760
        %1169 = vmatpush.msra.mxu0 %v1168
        %v1170 = vand.u32 %v561, 4294901760
        %1171 = vmatpush.msra.mxu0 %v1170
        %v1172 = vand.u32 %v548, 4294901760
        %1173 = vmatpush.msra.mxu0 %v1172
        %v1174 = vand.u32 %v535, 4294901760
        %1175 = vmatpush.msra.mxu0 %v1174
        %v1176 = vand.u32 %v522, 4294901760
        %1177 = vmatpush.msra.mxu0 %v1176
        %v1178 = vand.u32 %v509, 4294901760
        %1179 = vmatpush.msra.mxu0 %v1178
        %v1180 = vand.u32 %v496, 4294901760
        %1181 = vmatpush.msra.mxu0 %v1180
        %v1182 = vand.u32 %v483, 4294901760
        %1183 = vmatpush.msra.mxu0 %v1182
        %v1184 = vand.u32 %v470, 4294901760
        %1185 = vmatpush.msra.mxu0 %v1184
        %v1186 = vand.u32 %v457, 4294901760
        %1187 = vmatpush.msra.mxu0 %v1186
        %v1188 = vand.u32 %v444, 4294901760
        %1189 = vmatpush.msra.mxu0 %v1188
        %v1190 = vand.u32 %v431, 4294901760
        %1191 = vmatpush.msra.mxu0 %v1190
        %v1192 = vand.u32 %v418, 4294901760
        %1193 = vmatpush.msra.mxu0 %v1192
        %v1194 = vand.u32 %v416, 4294901760
        %v1195 = vsub.f32 %v416, %v1194
        %v1196 = vand.u32 %v1195, 4294901760
        %1197 = vmatmul.f32.gmra.mxu0 %v1196
        %v1198 = vpop.f32.mrf.mxu0
        %v1199 = vadd.f32 %v1160, %v1198
        %1200 = vdwg.mxu0
        %v1201 = vand.u32 %v613, 4294901760
        %v1202 = vsub.f32 %v613, %v1201
        %v1203 = vand.u32 %v1202, 4294901760
        %1204 = vmatpush.msra.mxu0 %v1203
        %v1205 = vand.u32 %v600, 4294901760
        %v1206 = vsub.f32 %v600, %v1205
        %v1207 = vand.u32 %v1206, 4294901760
        %1208 = vmatpush.msra.mxu0 %v1207
        %v1209 = vand.u32 %v587, 4294901760
        %v1210 = vsub.f32 %v587, %v1209
        %v1211 = vand.u32 %v1210, 4294901760
        %1212 = vmatpush.msra.mxu0 %v1211
        %v1213 = vand.u32 %v574, 4294901760
        %v1214 = vsub.f32 %v574, %v1213
        %v1215 = vand.u32 %v1214, 4294901760
        %1216 = vmatpush.msra.mxu0 %v1215
        %v1217 = vand.u32 %v561, 4294901760
        %v1218 = vsub.f32 %v561, %v1217
        %v1219 = vand.u32 %v1218, 4294901760
        %1220 = vmatpush.msra.mxu0 %v1219
        %v1221 = vand.u32 %v548, 4294901760
        %v1222 = vsub.f32 %v548, %v1221
        %v1223 = vand.u32 %v1222, 4294901760
        %1224 = vmatpush.msra.mxu0 %v1223
        %v1225 = vand.u32 %v535, 4294901760
        %v1226 = vsub.f32 %v535, %v1225
        %v1227 = vand.u32 %v1226, 4294901760
        %1228 = vmatpush.msra.mxu0 %v1227
        %v1229 = vand.u32 %v522, 4294901760
        %v1230 = vsub.f32 %v522, %v1229
        %v1231 = vand.u32 %v1230, 4294901760
        %1232 = vmatpush.msra.mxu0 %v1231
        %v1233 = vand.u32 %v509, 4294901760
        %v1234 = vsub.f32 %v509, %v1233
        %v1235 = vand.u32 %v1234, 4294901760
        %1236 = vmatpush.msra.mxu0 %v1235
        %v1237 = vand.u32 %v496, 4294901760
        %v1238 = vsub.f32 %v496, %v1237
        %v1239 = vand.u32 %v1238, 4294901760
        %1240 = vmatpush.msra.mxu0 %v1239
        %v1241 = vand.u32 %v483, 4294901760
        %v1242 = vsub.f32 %v483, %v1241
        %v1243 = vand.u32 %v1242, 4294901760
        %1244 = vmatpush.msra.mxu0 %v1243
        %v1245 = vand.u32 %v470, 4294901760
        %v1246 = vsub.f32 %v470, %v1245
        %v1247 = vand.u32 %v1246, 4294901760
        %1248 = vmatpush.msra.mxu0 %v1247
        %v1249 = vand.u32 %v457, 4294901760
        %v1250 = vsub.f32 %v457, %v1249
        %v1251 = vand.u32 %v1250, 4294901760
        %1252 = vmatpush.msra.mxu0 %v1251
        %v1253 = vand.u32 %v444, 4294901760
        %v1254 = vsub.f32 %v444, %v1253
        %v1255 = vand.u32 %v1254, 4294901760
        %1256 = vmatpush.msra.mxu0 %v1255
        %v1257 = vand.u32 %v431, 4294901760
        %v1258 = vsub.f32 %v431, %v1257
        %v1259 = vand.u32 %v1258, 4294901760
        %1260 = vmatpush.msra.mxu0 %v1259
        %v1261 = vand.u32 %v418, 4294901760
        %v1262 = vsub.f32 %v418, %v1261
        %v1263 = vand.u32 %v1262, 4294901760
        %1264 = vmatpush.msra.mxu0 %v1263
        %v1265 = vand.u32 %v416, 4294901760
        %1266 = vmatmul.f32.gmra.mxu0 %v1265
        %v1267 = vpop.f32.mrf.mxu0
        %v1268 = vadd.f32 %v1199, %v1267
        %1269 = vdwg.mxu0
        %v1270 = vand.u32 %v613, 4294901760
        %1271 = vmatpush.msra.mxu0 %v1270
        %v1272 = vand.u32 %v600, 4294901760
        %1273 = vmatpush.msra.mxu0 %v1272
        %v1274 = vand.u32 %v587, 4294901760
        %1275 = vmatpush.msra.mxu0 %v1274
        %v1276 = vand.u32 %v574, 4294901760
        %1277 = vmatpush.msra.mxu0 %v1276
        %v1278 = vand.u32 %v561, 4294901760
        %1279 = vmatpush.msra.mxu0 %v1278
        %v1280 = vand.u32 %v548, 4294901760
        %1281 = vmatpush.msra.mxu0 %v1280
        %v1282 = vand.u32 %v535, 4294901760
        %1283 = vmatpush.msra.mxu0 %v1282
        %v1284 = vand.u32 %v522, 4294901760
        %1285 = vmatpush.msra.mxu0 %v1284
        %v1286 = vand.u32 %v509, 4294901760
        %1287 = vmatpush.msra.mxu0 %v1286
        %v1288 = vand.u32 %v496, 4294901760
        %1289 = vmatpush.msra.mxu0 %v1288
        %v1290 = vand.u32 %v483, 4294901760
        %1291 = vmatpush.msra.mxu0 %v1290
        %v1292 = vand.u32 %v470, 4294901760
        %1293 = vmatpush.msra.mxu0 %v1292
        %v1294 = vand.u32 %v457, 4294901760
        %1295 = vmatpush.msra.mxu0 %v1294
        %v1296 = vand.u32 %v444, 4294901760
        %1297 = vmatpush.msra.mxu0 %v1296
        %v1298 = vand.u32 %v431, 4294901760
        %1299 = vmatpush.msra.mxu0 %v1298
        %v1300 = vand.u32 %v418, 4294901760
        %1301 = vmatpush.msra.mxu0 %v1300
        %v1302 = vand.u32 %v416, 4294901760
        %1303 = vmatmul.f32.gmra.mxu0 %v1302
        %v1304 = vpop.f32.mrf.mxu0
        %v1305 = vadd.f32 %v1268, %v1304
        %1306 = vdwg.mxu0
        %v1307 = vand.u32 %v614, 4294901760
        %1308 = vmatpush.msra.mxu0 %v1307
        %v1309 = vand.u32 %v601, 4294901760
        %1310 = vmatpush.msra.mxu0 %v1309
        %v1311 = vand.u32 %v588, 4294901760
        %1312 = vmatpush.msra.mxu0 %v1311
        %v1313 = vand.u32 %v575, 4294901760
        %1314 = vmatpush.msra.mxu0 %v1313
        %v1315 = vand.u32 %v562, 4294901760
        %1316 = vmatpush.msra.mxu0 %v1315
        %v1317 = vand.u32 %v549, 4294901760
        %1318 = vmatpush.msra.mxu0 %v1317
        %v1319 = vand.u32 %v536, 4294901760
        %1320 = vmatpush.msra.mxu0 %v1319
        %v1321 = vand.u32 %v523, 4294901760
        %1322 = vmatpush.msra.mxu0 %v1321
        %v1323 = vand.u32 %v510, 4294901760
        %1324 = vmatpush.msra.mxu0 %v1323
        %v1325 = vand.u32 %v497, 4294901760
        %1326 = vmatpush.msra.mxu0 %v1325
        %v1327 = vand.u32 %v484, 4294901760
        %1328 = vmatpush.msra.mxu0 %v1327
        %v1329 = vand.u32 %v471, 4294901760
        %1330 = vmatpush.msra.mxu0 %v1329
        %v1331 = vand.u32 %v458, 4294901760
        %1332 = vmatpush.msra.mxu0 %v1331
        %v1333 = vand.u32 %v445, 4294901760
        %1334 = vmatpush.msra.mxu0 %v1333
        %v1335 = vand.u32 %v432, 4294901760
        %1336 = vmatpush.msra.mxu0 %v1335
        %v1337 = vand.u32 %v419, 4294901760
        %1338 = vmatpush.msra.mxu0 %v1337
        %v1339 = vand.u32 %v416, 4294901760
        %v1340 = vsub.f32 %v416, %v1339
        %v1341 = vand.u32 %v1340, 4294901760
        %v1342 = vsub.f32 %v1340, %v1341
        %v1343 = vand.u32 %v1342, 4294901760
        %1344 = vmatmul.f32.gmra.mxu0 %v1343
        %v1345 = vpop.f32.mrf.mxu0
        %v1346 = vadd.f32 0.0, %v1345
        %1347 = vdwg.mxu0
        %v1348 = vand.u32 %v614, 4294901760
        %v1349 = vsub.f32 %v614, %v1348
        %v1350 = vand.u32 %v1349, 4294901760
        %v1351 = vsub.f32 %v1349, %v1350
        %v1352 = vand.u32 %v1351, 4294901760
        %1353 = vmatpush.msra.mxu0 %v1352
        %v1354 = vand.u32 %v601, 4294901760
        %v1355 = vsub.f32 %v601, %v1354
        %v1356 = vand.u32 %v1355, 4294901760
        %v1357 = vsub.f32 %v1355, %v1356
        %v1358 = vand.u32 %v1357, 4294901760
        %1359 = vmatpush.msra.mxu0 %v1358
        %v1360 = vand.u32 %v588, 4294901760
        %v1361 = vsub.f32 %v588, %v1360
        %v1362 = vand.u32 %v1361, 4294901760
        %v1363 = vsub.f32 %v1361, %v1362
        %v1364 = vand.u32 %v1363, 4294901760
        %1365 = vmatpush.msra.mxu0 %v1364
        %v1366 = vand.u32 %v575, 4294901760
        %v1367 = vsub.f32 %v575, %v1366
        %v1368 = vand.u32 %v1367, 4294901760
        %v1369 = vsub.f32 %v1367, %v1368
        %v1370 = vand.u32 %v1369, 4294901760
        %1371 = vmatpush.msra.mxu0 %v1370
        %v1372 = vand.u32 %v562, 4294901760
        %v1373 = vsub.f32 %v562, %v1372
        %v1374 = vand.u32 %v1373, 4294901760
        %v1375 = vsub.f32 %v1373, %v1374
        %v1376 = vand.u32 %v1375, 4294901760
        %1377 = vmatpush.msra.mxu0 %v1376
        %v1378 = vand.u32 %v549, 4294901760
        %v1379 = vsub.f32 %v549, %v1378
        %v1380 = vand.u32 %v1379, 4294901760
        %v1381 = vsub.f32 %v1379, %v1380
        %v1382 = vand.u32 %v1381, 4294901760
        %1383 = vmatpush.msra.mxu0 %v1382
        %v1384 = vand.u32 %v536, 4294901760
        %v1385 = vsub.f32 %v536, %v1384
        %v1386 = vand.u32 %v1385, 4294901760
        %v1387 = vsub.f32 %v1385, %v1386
        %v1388 = vand.u32 %v1387, 4294901760
        %1389 = vmatpush.msra.mxu0 %v1388
        %v1390 = vand.u32 %v523, 4294901760
        %v1391 = vsub.f32 %v523, %v1390
        %v1392 = vand.u32 %v1391, 4294901760
        %v1393 = vsub.f32 %v1391, %v1392
        %v1394 = vand.u32 %v1393, 4294901760
        %1395 = vmatpush.msra.mxu0 %v1394
        %v1396 = vand.u32 %v510, 4294901760
        %v1397 = vsub.f32 %v510, %v1396
        %v1398 = vand.u32 %v1397, 4294901760
        %v1399 = vsub.f32 %v1397, %v1398
        %v1400 = vand.u32 %v1399, 4294901760
        %1401 = vmatpush.msra.mxu0 %v1400
        %v1402 = vand.u32 %v497, 4294901760
        %v1403 = vsub.f32 %v497, %v1402
        %v1404 = vand.u32 %v1403, 4294901760
        %v1405 = vsub.f32 %v1403, %v1404
        %v1406 = vand.u32 %v1405, 4294901760
        %1407 = vmatpush.msra.mxu0 %v1406
        %v1408 = vand.u32 %v484, 4294901760
        %v1409 = vsub.f32 %v484, %v1408
        %v1410 = vand.u32 %v1409, 4294901760
        %v1411 = vsub.f32 %v1409, %v1410
        %v1412 = vand.u32 %v1411, 4294901760
        %1413 = vmatpush.msra.mxu0 %v1412
        %v1414 = vand.u32 %v471, 4294901760
        %v1415 = vsub.f32 %v471, %v1414
        %v1416 = vand.u32 %v1415, 4294901760
        %v1417 = vsub.f32 %v1415, %v1416
        %v1418 = vand.u32 %v1417, 4294901760
        %1419 = vmatpush.msra.mxu0 %v1418
        %v1420 = vand.u32 %v458, 4294901760
        %v1421 = vsub.f32 %v458, %v1420
        %v1422 = vand.u32 %v1421, 4294901760
        %v1423 = vsub.f32 %v1421, %v1422
        %v1424 = vand.u32 %v1423, 4294901760
        %1425 = vmatpush.msra.mxu0 %v1424
        %v1426 = vand.u32 %v445, 4294901760
        %v1427 = vsub.f32 %v445, %v1426
        %v1428 = vand.u32 %v1427, 4294901760
        %v1429 = vsub.f32 %v1427, %v1428
        %v1430 = vand.u32 %v1429, 4294901760
        %1431 = vmatpush.msra.mxu0 %v1430
        %v1432 = vand.u32 %v432, 4294901760
        %v1433 = vsub.f32 %v432, %v1432
        %v1434 = vand.u32 %v1433, 4294901760
        %v1435 = vsub.f32 %v1433, %v1434
        %v1436 = vand.u32 %v1435, 4294901760
        %1437 = vmatpush.msra.mxu0 %v1436
        %v1438 = vand.u32 %v419, 4294901760
        %v1439 = vsub.f32 %v419, %v1438
        %v1440 = vand.u32 %v1439, 4294901760
        %v1441 = vsub.f32 %v1439, %v1440
        %v1442 = vand.u32 %v1441, 4294901760
        %1443 = vmatpush.msra.mxu0 %v1442
        %v1444 = vand.u32 %v416, 4294901760
        %1445 = vmatmul.f32.gmra.mxu0 %v1444
        %v1446 = vpop.f32.mrf.mxu0
        %v1447 = vadd.f32 %v1346, %v1446
        %1448 = vdwg.mxu0
        %v1449 = vand.u32 %v614, 4294901760
        %v1450 = vsub.f32 %v614, %v1449
        %1451 = vmatpush.msra.mxu0 %v1450
        %v1452 = vand.u32 %v601, 4294901760
        %v1453 = vsub.f32 %v601, %v1452
        %1454 = vmatpush.msra.mxu0 %v1453
        %v1455 = vand.u32 %v588, 4294901760
        %v1456 = vsub.f32 %v588, %v1455
        %1457 = vmatpush.msra.mxu0 %v1456
        %v1458 = vand.u32 %v575, 4294901760
        %v1459 = vsub.f32 %v575, %v1458
        %1460 = vmatpush.msra.mxu0 %v1459
        %v1461 = vand.u32 %v562, 4294901760
        %v1462 = vsub.f32 %v562, %v1461
        %1463 = vmatpush.msra.mxu0 %v1462
        %v1464 = vand.u32 %v549, 4294901760
        %v1465 = vsub.f32 %v549, %v1464
        %1466 = vmatpush.msra.mxu0 %v1465
        %v1467 = vand.u32 %v536, 4294901760
        %v1468 = vsub.f32 %v536, %v1467
        %1469 = vmatpush.msra.mxu0 %v1468
        %v1470 = vand.u32 %v523, 4294901760
        %v1471 = vsub.f32 %v523, %v1470
        %1472 = vmatpush.msra.mxu0 %v1471
        %v1473 = vand.u32 %v510, 4294901760
        %v1474 = vsub.f32 %v510, %v1473
        %1475 = vmatpush.msra.mxu0 %v1474
        %v1476 = vand.u32 %v497, 4294901760
        %v1477 = vsub.f32 %v497, %v1476
        %1478 = vmatpush.msra.mxu0 %v1477
        %v1479 = vand.u32 %v484, 4294901760
        %v1480 = vsub.f32 %v484, %v1479
        %1481 = vmatpush.msra.mxu0 %v1480
        %v1482 = vand.u32 %v471, 4294901760
        %v1483 = vsub.f32 %v471, %v1482
        %1484 = vmatpush.msra.mxu0 %v1483
        %v1485 = vand.u32 %v458, 4294901760
        %v1486 = vsub.f32 %v458, %v1485
        %1487 = vmatpush.msra.mxu0 %v1486
        %v1488 = vand.u32 %v445, 4294901760
        %v1489 = vsub.f32 %v445, %v1488
        %1490 = vmatpush.msra.mxu0 %v1489
        %v1491 = vand.u32 %v432, 4294901760
        %v1492 = vsub.f32 %v432, %v1491
        %1493 = vmatpush.msra.mxu0 %v1492
        %v1494 = vand.u32 %v419, 4294901760
        %v1495 = vsub.f32 %v419, %v1494
        %1496 = vmatpush.msra.mxu0 %v1495
        %v1497 = vand.u32 %v416, 4294901760
        %v1498 = vsub.f32 %v416, %v1497
        %1499 = vmatmul.f32.gmra.mxu0 %v1498
        %v1500 = vpop.f32.mrf.mxu0
        %v1501 = vadd.f32 %v1447, %v1500
        %1502 = vdwg.mxu0
        %v1503 = vand.u32 %v614, 4294901760
        %1504 = vmatpush.msra.mxu0 %v1503
        %v1505 = vand.u32 %v601, 4294901760
        %1506 = vmatpush.msra.mxu0 %v1505
        %v1507 = vand.u32 %v588, 4294901760
        %1508 = vmatpush.msra.mxu0 %v1507
        %v1509 = vand.u32 %v575, 4294901760
        %1510 = vmatpush.msra.mxu0 %v1509
        %v1511 = vand.u32 %v562, 4294901760
        %1512 = vmatpush.msra.mxu0 %v1511
        %v1513 = vand.u32 %v549, 4294901760
        %1514 = vmatpush.msra.mxu0 %v1513
        %v1515 = vand.u32 %v536, 4294901760
        %1516 = vmatpush.msra.mxu0 %v1515
        %v1517 = vand.u32 %v523, 4294901760
        %1518 = vmatpush.msra.mxu0 %v1517
        %v1519 = vand.u32 %v510, 4294901760
        %1520 = vmatpush.msra.mxu0 %v1519
        %v1521 = vand.u32 %v497, 4294901760
        %1522 = vmatpush.msra.mxu0 %v1521
        %v1523 = vand.u32 %v484, 4294901760
        %1524 = vmatpush.msra.mxu0 %v1523
        %v1525 = vand.u32 %v471, 4294901760
        %1526 = vmatpush.msra.mxu0 %v1525
        %v1527 = vand.u32 %v458, 4294901760
        %1528 = vmatpush.msra.mxu0 %v1527
        %v1529 = vand.u32 %v445, 4294901760
        %1530 = vmatpush.msra.mxu0 %v1529
        %v1531 = vand.u32 %v432, 4294901760
        %1532 = vmatpush.msra.mxu0 %v1531
        %v1533 = vand.u32 %v419, 4294901760
        %1534 = vmatpush.msra.mxu0 %v1533
        %v1535 = vand.u32 %v416, 4294901760
        %v1536 = vsub.f32 %v416, %v1535
        %v1537 = vand.u32 %v1536, 4294901760
        %1538 = vmatmul.f32.gmra.mxu0 %v1537
        %v1539 = vpop.f32.mrf.mxu0
        %v1540 = vadd.f32 %v1501, %v1539
        %1541 = vdwg.mxu0
        %v1542 = vand.u32 %v614, 4294901760
        %v1543 = vsub.f32 %v614, %v1542
        %v1544 = vand.u32 %v1543, 4294901760
        %1545 = vmatpush.msra.mxu0 %v1544
        %v1546 = vand.u32 %v601, 4294901760
        %v1547 = vsub.f32 %v601, %v1546
        %v1548 = vand.u32 %v1547, 4294901760
        %1549 = vmatpush.msra.mxu0 %v1548
        %v1550 = vand.u32 %v588, 4294901760
        %v1551 = vsub.f32 %v588, %v1550
        %v1552 = vand.u32 %v1551, 4294901760
        %1553 = vmatpush.msra.mxu0 %v1552
        %v1554 = vand.u32 %v575, 4294901760
        %v1555 = vsub.f32 %v575, %v1554
        %v1556 = vand.u32 %v1555, 4294901760
        %1557 = vmatpush.msra.mxu0 %v1556
        %v1558 = vand.u32 %v562, 4294901760
        %v1559 = vsub.f32 %v562, %v1558
        %v1560 = vand.u32 %v1559, 4294901760
        %1561 = vmatpush.msra.mxu0 %v1560
        %v1562 = vand.u32 %v549, 4294901760
        %v1563 = vsub.f32 %v549, %v1562
        %v1564 = vand.u32 %v1563, 4294901760
        %1565 = vmatpush.msra.mxu0 %v1564
        %v1566 = vand.u32 %v536, 4294901760
        %v1567 = vsub.f32 %v536, %v1566
        %v1568 = vand.u32 %v1567, 4294901760
        %1569 = vmatpush.msra.mxu0 %v1568
        %v1570 = vand.u32 %v523, 4294901760
        %v1571 = vsub.f32 %v523, %v1570
        %v1572 = vand.u32 %v1571, 4294901760
        %1573 = vmatpush.msra.mxu0 %v1572
        %v1574 = vand.u32 %v510, 4294901760
        %v1575 = vsub.f32 %v510, %v1574
        %v1576 = vand.u32 %v1575, 4294901760
        %1577 = vmatpush.msra.mxu0 %v1576
        %v1578 = vand.u32 %v497, 4294901760
        %v1579 = vsub.f32 %v497, %v1578
        %v1580 = vand.u32 %v1579, 4294901760
        %1581 = vmatpush.msra.mxu0 %v1580
        %v1582 = vand.u32 %v484, 4294901760
        %v1583 = vsub.f32 %v484, %v1582
        %v1584 = vand.u32 %v1583, 4294901760
        %1585 = vmatpush.msra.mxu0 %v1584
        %v1586 = vand.u32 %v471, 4294901760
        %v1587 = vsub.f32 %v471, %v1586
        %v1588 = vand.u32 %v1587, 4294901760
        %1589 = vmatpush.msra.mxu0 %v1588
        %v1590 = vand.u32 %v458, 4294901760
        %v1591 = vsub.f32 %v458, %v1590
        %v1592 = vand.u32 %v1591, 4294901760
        %1593 = vmatpush.msra.mxu0 %v1592
        %v1594 = vand.u32 %v445, 4294901760
        %v1595 = vsub.f32 %v445, %v1594
        %v1596 = vand.u32 %v1595, 4294901760
        %1597 = vmatpush.msra.mxu0 %v1596
        %v1598 = vand.u32 %v432, 4294901760
        %v1599 = vsub.f32 %v432, %v1598
        %v1600 = vand.u32 %v1599, 4294901760
        %1601 = vmatpush.msra.mxu0 %v1600
        %v1602 = vand.u32 %v419, 4294901760
        %v1603 = vsub.f32 %v419, %v1602
        %v1604 = vand.u32 %v1603, 4294901760
        %1605 = vmatpush.msra.mxu0 %v1604
        %v1606 = vand.u32 %v416, 4294901760
        %1607 = vmatmul.f32.gmra.mxu0 %v1606
        %v1608 = vpop.f32.mrf.mxu0
        %v1609 = vadd.f32 %v1540, %v1608
        %1610 = vdwg.mxu0
        %v1611 = vand.u32 %v614, 4294901760
        %1612 = vmatpush.msra.mxu0 %v1611
        %v1613 = vand.u32 %v601, 4294901760
        %1614 = vmatpush.msra.mxu0 %v1613
        %v1615 = vand.u32 %v588, 4294901760
        %1616 = vmatpush.msra.mxu0 %v1615
        %v1617 = vand.u32 %v575, 4294901760
        %1618 = vmatpush.msra.mxu0 %v1617
        %v1619 = vand.u32 %v562, 4294901760
        %1620 = vmatpush.msra.mxu0 %v1619
        %v1621 = vand.u32 %v549, 4294901760
        %1622 = vmatpush.msra.mxu0 %v1621
        %v1623 = vand.u32 %v536, 4294901760
        %1624 = vmatpush.msra.mxu0 %v1623
        %v1625 = vand.u32 %v523, 4294901760
        %1626 = vmatpush.msra.mxu0 %v1625
        %v1627 = vand.u32 %v510, 4294901760
        %1628 = vmatpush.msra.mxu0 %v1627
        %v1629 = vand.u32 %v497, 4294901760
        %1630 = vmatpush.msra.mxu0 %v1629
        %v1631 = vand.u32 %v484, 4294901760
        %1632 = vmatpush.msra.mxu0 %v1631
        %v1633 = vand.u32 %v471, 4294901760
        %1634 = vmatpush.msra.mxu0 %v1633
        %v1635 = vand.u32 %v458, 4294901760
        %1636 = vmatpush.msra.mxu0 %v1635
        %v1637 = vand.u32 %v445, 4294901760
        %1638 = vmatpush.msra.mxu0 %v1637
        %v1639 = vand.u32 %v432, 4294901760
        %1640 = vmatpush.msra.mxu0 %v1639
        %v1641 = vand.u32 %v419, 4294901760
        %1642 = vmatpush.msra.mxu0 %v1641
        %v1643 = vand.u32 %v416, 4294901760
        %1644 = vmatmul.f32.gmra.mxu0 %v1643
        %v1645 = vpop.f32.mrf.mxu0
        %v1646 = vadd.f32 %v1609, %v1645
        %1647 = vdwg.mxu0
        %v1648 = vand.u32 %v615, 4294901760
        %1649 = vmatpush.msra.mxu0 %v1648
        %v1650 = vand.u32 %v602, 4294901760
        %1651 = vmatpush.msra.mxu0 %v1650
        %v1652 = vand.u32 %v589, 4294901760
        %1653 = vmatpush.msra.mxu0 %v1652
        %v1654 = vand.u32 %v576, 4294901760
        %1655 = vmatpush.msra.mxu0 %v1654
        %v1656 = vand.u32 %v563, 4294901760
        %1657 = vmatpush.msra.mxu0 %v1656
        %v1658 = vand.u32 %v550, 4294901760
        %1659 = vmatpush.msra.mxu0 %v1658
        %v1660 = vand.u32 %v537, 4294901760
        %1661 = vmatpush.msra.mxu0 %v1660
        %v1662 = vand.u32 %v524, 4294901760
        %1663 = vmatpush.msra.mxu0 %v1662
        %v1664 = vand.u32 %v511, 4294901760
        %1665 = vmatpush.msra.mxu0 %v1664
        %v1666 = vand.u32 %v498, 4294901760
        %1667 = vmatpush.msra.mxu0 %v1666
        %v1668 = vand.u32 %v485, 4294901760
        %1669 = vmatpush.msra.mxu0 %v1668
        %v1670 = vand.u32 %v472, 4294901760
        %1671 = vmatpush.msra.mxu0 %v1670
        %v1672 = vand.u32 %v459, 4294901760
        %1673 = vmatpush.msra.mxu0 %v1672
        %v1674 = vand.u32 %v446, 4294901760
        %1675 = vmatpush.msra.mxu0 %v1674
        %v1676 = vand.u32 %v433, 4294901760
        %1677 = vmatpush.msra.mxu0 %v1676
        %v1678 = vand.u32 %v420, 4294901760
        %1679 = vmatpush.msra.mxu0 %v1678
        %v1680 = vand.u32 %v416, 4294901760
        %v1681 = vsub.f32 %v416, %v1680
        %v1682 = vand.u32 %v1681, 4294901760
        %v1683 = vsub.f32 %v1681, %v1682
        %v1684 = vand.u32 %v1683, 4294901760
        %1685 = vmatmul.f32.gmra.mxu0 %v1684
        %v1686 = vpop.f32.mrf.mxu0
        %v1687 = vadd.f32 0.0, %v1686
        %1688 = vdwg.mxu0
        %v1689 = vand.u32 %v615, 4294901760
        %v1690 = vsub.f32 %v615, %v1689
        %v1691 = vand.u32 %v1690, 4294901760
        %v1692 = vsub.f32 %v1690, %v1691
        %v1693 = vand.u32 %v1692, 4294901760
        %1694 = vmatpush.msra.mxu0 %v1693
        %v1695 = vand.u32 %v602, 4294901760
        %v1696 = vsub.f32 %v602, %v1695
        %v1697 = vand.u32 %v1696, 4294901760
        %v1698 = vsub.f32 %v1696, %v1697
        %v1699 = vand.u32 %v1698, 4294901760
        %1700 = vmatpush.msra.mxu0 %v1699
        %v1701 = vand.u32 %v589, 4294901760
        %v1702 = vsub.f32 %v589, %v1701
        %v1703 = vand.u32 %v1702, 4294901760
        %v1704 = vsub.f32 %v1702, %v1703
        %v1705 = vand.u32 %v1704, 4294901760
        %1706 = vmatpush.msra.mxu0 %v1705
        %v1707 = vand.u32 %v576, 4294901760
        %v1708 = vsub.f32 %v576, %v1707
        %v1709 = vand.u32 %v1708, 4294901760
        %v1710 = vsub.f32 %v1708, %v1709
        %v1711 = vand.u32 %v1710, 4294901760
        %1712 = vmatpush.msra.mxu0 %v1711
        %v1713 = vand.u32 %v563, 4294901760
        %v1714 = vsub.f32 %v563, %v1713
        %v1715 = vand.u32 %v1714, 4294901760
        %v1716 = vsub.f32 %v1714, %v1715
        %v1717 = vand.u32 %v1716, 4294901760
        %1718 = vmatpush.msra.mxu0 %v1717
        %v1719 = vand.u32 %v550, 4294901760
        %v1720 = vsub.f32 %v550, %v1719
        %v1721 = vand.u32 %v1720, 4294901760
        %v1722 = vsub.f32 %v1720, %v1721
        %v1723 = vand.u32 %v1722, 4294901760
        %1724 = vmatpush.msra.mxu0 %v1723
        %v1725 = vand.u32 %v537, 4294901760
        %v1726 = vsub.f32 %v537, %v1725
        %v1727 = vand.u32 %v1726, 4294901760
        %v1728 = vsub.f32 %v1726, %v1727
        %v1729 = vand.u32 %v1728, 4294901760
        %1730 = vmatpush.msra.mxu0 %v1729
        %v1731 = vand.u32 %v524, 4294901760
        %v1732 = vsub.f32 %v524, %v1731
        %v1733 = vand.u32 %v1732, 4294901760
        %v1734 = vsub.f32 %v1732, %v1733
        %v1735 = vand.u32 %v1734, 4294901760
        %1736 = vmatpush.msra.mxu0 %v1735
        %v1737 = vand.u32 %v511, 4294901760
        %v1738 = vsub.f32 %v511, %v1737
        %v1739 = vand.u32 %v1738, 4294901760
        %v1740 = vsub.f32 %v1738, %v1739
        %v1741 = vand.u32 %v1740, 4294901760
        %1742 = vmatpush.msra.mxu0 %v1741
        %v1743 = vand.u32 %v498, 4294901760
        %v1744 = vsub.f32 %v498, %v1743
        %v1745 = vand.u32 %v1744, 4294901760
        %v1746 = vsub.f32 %v1744, %v1745
        %v1747 = vand.u32 %v1746, 4294901760
        %1748 = vmatpush.msra.mxu0 %v1747
        %v1749 = vand.u32 %v485, 4294901760
        %v1750 = vsub.f32 %v485, %v1749
        %v1751 = vand.u32 %v1750, 4294901760
        %v1752 = vsub.f32 %v1750, %v1751
        %v1753 = vand.u32 %v1752, 4294901760
        %1754 = vmatpush.msra.mxu0 %v1753
        %v1755 = vand.u32 %v472, 4294901760
        %v1756 = vsub.f32 %v472, %v1755
        %v1757 = vand.u32 %v1756, 4294901760
        %v1758 = vsub.f32 %v1756, %v1757
        %v1759 = vand.u32 %v1758, 4294901760
        %1760 = vmatpush.msra.mxu0 %v1759
        %v1761 = vand.u32 %v459, 4294901760
        %v1762 = vsub.f32 %v459, %v1761
        %v1763 = vand.u32 %v1762, 4294901760
        %v1764 = vsub.f32 %v1762, %v1763
        %v1765 = vand.u32 %v1764, 4294901760
        %1766 = vmatpush.msra.mxu0 %v1765
        %v1767 = vand.u32 %v446, 4294901760
        %v1768 = vsub.f32 %v446, %v1767
        %v1769 = vand.u32 %v1768, 4294901760
        %v1770 = vsub.f32 %v1768, %v1769
        %v1771 = vand.u32 %v1770, 4294901760
        %1772 = vmatpush.msra.mxu0 %v1771
        %v1773 = vand.u32 %v433, 4294901760
        %v1774 = vsub.f32 %v433, %v1773
        %v1775 = vand.u32 %v1774, 4294901760
        %v1776 = vsub.f32 %v1774, %v1775
        %v1777 = vand.u32 %v1776, 4294901760
        %1778 = vmatpush.msra.mxu0 %v1777
        %v1779 = vand.u32 %v420, 4294901760
        %v1780 = vsub.f32 %v420, %v1779
        %v1781 = vand.u32 %v1780, 4294901760
        %v1782 = vsub.f32 %v1780, %v1781
        %v1783 = vand.u32 %v1782, 4294901760
        %1784 = vmatpush.msra.mxu0 %v1783
        %v1785 = vand.u32 %v416, 4294901760
        %1786 = vmatmul.f32.gmra.mxu0 %v1785
        %v1787 = vpop.f32.mrf.mxu0
        %v1788 = vadd.f32 %v1687, %v1787
        %1789 = vdwg.mxu0
        %v1790 = vand.u32 %v615, 4294901760
        %v1791 = vsub.f32 %v615, %v1790
        %1792 = vmatpush.msra.mxu0 %v1791
        %v1793 = vand.u32 %v602, 4294901760
        %v1794 = vsub.f32 %v602, %v1793
        %1795 = vmatpush.msra.mxu0 %v1794
        %v1796 = vand.u32 %v589, 4294901760
        %v1797 = vsub.f32 %v589, %v1796
        %1798 = vmatpush.msra.mxu0 %v1797
        %v1799 = vand.u32 %v576, 4294901760
        %v1800 = vsub.f32 %v576, %v1799
        %1801 = vmatpush.msra.mxu0 %v1800
        %v1802 = vand.u32 %v563, 4294901760
        %v1803 = vsub.f32 %v563, %v1802
        %1804 = vmatpush.msra.mxu0 %v1803
        %v1805 = vand.u32 %v550, 4294901760
        %v1806 = vsub.f32 %v550, %v1805
        %1807 = vmatpush.msra.mxu0 %v1806
        %v1808 = vand.u32 %v537, 4294901760
        %v1809 = vsub.f32 %v537, %v1808
        %1810 = vmatpush.msra.mxu0 %v1809
        %v1811 = vand.u32 %v524, 4294901760
        %v1812 = vsub.f32 %v524, %v1811
        %1813 = vmatpush.msra.mxu0 %v1812
        %v1814 = vand.u32 %v511, 4294901760
        %v1815 = vsub.f32 %v511, %v1814
        %1816 = vmatpush.msra.mxu0 %v1815
        %v1817 = vand.u32 %v498, 4294901760
        %v1818 = vsub.f32 %v498, %v1817
        %1819 = vmatpush.msra.mxu0 %v1818
        %v1820 = vand.u32 %v485, 4294901760
        %v1821 = vsub.f32 %v485, %v1820
        %1822 = vmatpush.msra.mxu0 %v1821
        %v1823 = vand.u32 %v472, 4294901760
        %v1824 = vsub.f32 %v472, %v1823
        %1825 = vmatpush.msra.mxu0 %v1824
        %v1826 = vand.u32 %v459, 4294901760
        %v1827 = vsub.f32 %v459, %v1826
        %1828 = vmatpush.msra.mxu0 %v1827
        %v1829 = vand.u32 %v446, 4294901760
        %v1830 = vsub.f32 %v446, %v1829
        %1831 = vmatpush.msra.mxu0 %v1830
        %v1832 = vand.u32 %v433, 4294901760
        %v1833 = vsub.f32 %v433, %v1832
        %1834 = vmatpush.msra.mxu0 %v1833
        %v1835 = vand.u32 %v420, 4294901760
        %v1836 = vsub.f32 %v420, %v1835
        %1837 = vmatpush.msra.mxu0 %v1836
        %v1838 = vand.u32 %v416, 4294901760
        %v1839 = vsub.f32 %v416, %v1838
        %1840 = vmatmul.f32.gmra.mxu0 %v1839
        %v1841 = vpop.f32.mrf.mxu0
        %v1842 = vadd.f32 %v1788, %v1841
        %1843 = vdwg.mxu0
        %v1844 = vand.u32 %v615, 4294901760
        %1845 = vmatpush.msra.mxu0 %v1844
        %v1846 = vand.u32 %v602, 4294901760
        %1847 = vmatpush.msra.mxu0 %v1846
        %v1848 = vand.u32 %v589, 4294901760
        %1849 = vmatpush.msra.mxu0 %v1848
        %v1850 = vand.u32 %v576, 4294901760
        %1851 = vmatpush.msra.mxu0 %v1850
        %v1852 = vand.u32 %v563, 4294901760
        %1853 = vmatpush.msra.mxu0 %v1852
        %v1854 = vand.u32 %v550, 4294901760
        %1855 = vmatpush.msra.mxu0 %v1854
        %v1856 = vand.u32 %v537, 4294901760
        %1857 = vmatpush.msra.mxu0 %v1856
        %v1858 = vand.u32 %v524, 4294901760
        %1859 = vmatpush.msra.mxu0 %v1858
        %v1860 = vand.u32 %v511, 4294901760
        %1861 = vmatpush.msra.mxu0 %v1860
        %v1862 = vand.u32 %v498, 4294901760
        %1863 = vmatpush.msra.mxu0 %v1862
        %v1864 = vand.u32 %v485, 4294901760
        %1865 = vmatpush.msra.mxu0 %v1864
        %v1866 = vand.u32 %v472, 4294901760
        %1867 = vmatpush.msra.mxu0 %v1866
        %v1868 = vand.u32 %v459, 4294901760
        %1869 = vmatpush.msra.mxu0 %v1868
        %v1870 = vand.u32 %v446, 4294901760
        %1871 = vmatpush.msra.mxu0 %v1870
        %v1872 = vand.u32 %v433, 4294901760
        %1873 = vmatpush.msra.mxu0 %v1872
        %v1874 = vand.u32 %v420, 4294901760
        %1875 = vmatpush.msra.mxu0 %v1874
        %v1876 = vand.u32 %v416, 4294901760
        %v1877 = vsub.f32 %v416, %v1876
        %v1878 = vand.u32 %v1877, 4294901760
        %1879 = vmatmul.f32.gmra.mxu0 %v1878
        %v1880 = vpop.f32.mrf.mxu0
        %v1881 = vadd.f32 %v1842, %v1880
        %1882 = vdwg.mxu0
        %v1883 = vand.u32 %v615, 4294901760
        %v1884 = vsub.f32 %v615, %v1883
        %v1885 = vand.u32 %v1884, 4294901760
        %1886 = vmatpush.msra.mxu0 %v1885
        %v1887 = vand.u32 %v602, 4294901760
        %v1888 = vsub.f32 %v602, %v1887
        %v1889 = vand.u32 %v1888, 4294901760
        %1890 = vmatpush.msra.mxu0 %v1889
        %v1891 = vand.u32 %v589, 4294901760
        %v1892 = vsub.f32 %v589, %v1891
        %v1893 = vand.u32 %v1892, 4294901760
        %1894 = vmatpush.msra.mxu0 %v1893
        %v1895 = vand.u32 %v576, 4294901760
        %v1896 = vsub.f32 %v576, %v1895
        %v1897 = vand.u32 %v1896, 4294901760
        %1898 = vmatpush.msra.mxu0 %v1897
        %v1899 = vand.u32 %v563, 4294901760
        %v1900 = vsub.f32 %v563, %v1899
        %v1901 = vand.u32 %v1900, 4294901760
        %1902 = vmatpush.msra.mxu0 %v1901
        %v1903 = vand.u32 %v550, 4294901760
        %v1904 = vsub.f32 %v550, %v1903
        %v1905 = vand.u32 %v1904, 4294901760
        %1906 = vmatpush.msra.mxu0 %v1905
        %v1907 = vand.u32 %v537, 4294901760
        %v1908 = vsub.f32 %v537, %v1907
        %v1909 = vand.u32 %v1908, 4294901760
        %1910 = vmatpush.msra.mxu0 %v1909
        %v1911 = vand.u32 %v524, 4294901760
        %v1912 = vsub.f32 %v524, %v1911
        %v1913 = vand.u32 %v1912, 4294901760
        %1914 = vmatpush.msra.mxu0 %v1913
        %v1915 = vand.u32 %v511, 4294901760
        %v1916 = vsub.f32 %v511, %v1915
        %v1917 = vand.u32 %v1916, 4294901760
        %1918 = vmatpush.msra.mxu0 %v1917
        %v1919 = vand.u32 %v498, 4294901760
        %v1920 = vsub.f32 %v498, %v1919
        %v1921 = vand.u32 %v1920, 4294901760
        %1922 = vmatpush.msra.mxu0 %v1921
        %v1923 = vand.u32 %v485, 4294901760
        %v1924 = vsub.f32 %v485, %v1923
        %v1925 = vand.u32 %v1924, 4294901760
        %1926 = vmatpush.msra.mxu0 %v1925
        %v1927 = vand.u32 %v472, 4294901760
        %v1928 = vsub.f32 %v472, %v1927
        %v1929 = vand.u32 %v1928, 4294901760
        %1930 = vmatpush.msra.mxu0 %v1929
        %v1931 = vand.u32 %v459, 4294901760
        %v1932 = vsub.f32 %v459, %v1931
        %v1933 = vand.u32 %v1932, 4294901760
        %1934 = vmatpush.msra.mxu0 %v1933
        %v1935 = vand.u32 %v446, 4294901760
        %v1936 = vsub.f32 %v446, %v1935
        %v1937 = vand.u32 %v1936, 4294901760
        %1938 = vmatpush.msra.mxu0 %v1937
        %v1939 = vand.u32 %v433, 4294901760
        %v1940 = vsub.f32 %v433, %v1939
        %v1941 = vand.u32 %v1940, 4294901760
        %1942 = vmatpush.msra.mxu0 %v1941
        %v1943 = vand.u32 %v420, 4294901760
        %v1944 = vsub.f32 %v420, %v1943
        %v1945 = vand.u32 %v1944, 4294901760
        %1946 = vmatpush.msra.mxu0 %v1945
        %v1947 = vand.u32 %v416, 4294901760
        %1948 = vmatmul.f32.gmra.mxu0 %v1947
        %v1949 = vpop.f32.mrf.mxu0
        %v1950 = vadd.f32 %v1881, %v1949
        %1951 = vdwg.mxu0
        %v1952 = vand.u32 %v615, 4294901760
        %1953 = vmatpush.msra.mxu0 %v1952
        %v1954 = vand.u32 %v602, 4294901760
        %1955 = vmatpush.msra.mxu0 %v1954
        %v1956 = vand.u32 %v589, 4294901760
        %1957 = vmatpush.msra.mxu0 %v1956
        %v1958 = vand.u32 %v576, 4294901760
        %1959 = vmatpush.msra.mxu0 %v1958
        %v1960 = vand.u32 %v563, 4294901760
        %1961 = vmatpush.msra.mxu0 %v1960
        %v1962 = vand.u32 %v550, 4294901760
        %1963 = vmatpush.msra.mxu0 %v1962
        %v1964 = vand.u32 %v537, 4294901760
        %1965 = vmatpush.msra.mxu0 %v1964
        %v1966 = vand.u32 %v524, 4294901760
        %1967 = vmatpush.msra.mxu0 %v1966
        %v1968 = vand.u32 %v511, 4294901760
        %1969 = vmatpush.msra.mxu0 %v1968
        %v1970 = vand.u32 %v498, 4294901760
        %1971 = vmatpush.msra.mxu0 %v1970
        %v1972 = vand.u32 %v485, 4294901760
        %1973 = vmatpush.msra.mxu0 %v1972
        %v1974 = vand.u32 %v472, 4294901760
        %1975 = vmatpush.msra.mxu0 %v1974
        %v1976 = vand.u32 %v459, 4294901760
        %1977 = vmatpush.msra.mxu0 %v1976
        %v1978 = vand.u32 %v446, 4294901760
        %1979 = vmatpush.msra.mxu0 %v1978
        %v1980 = vand.u32 %v433, 4294901760
        %1981 = vmatpush.msra.mxu0 %v1980
        %v1982 = vand.u32 %v420, 4294901760
        %1983 = vmatpush.msra.mxu0 %v1982
        %v1984 = vand.u32 %v416, 4294901760
        %1985 = vmatmul.f32.gmra.mxu0 %v1984
        %v1986 = vpop.f32.mrf.mxu0
        %v1987 = vadd.f32 %v1950, %v1986
        %1988 = vdwg.mxu0
        %v1989 = vand.u32 %v616, 4294901760
        %1990 = vmatpush.msra.mxu0 %v1989
        %v1991 = vand.u32 %v603, 4294901760
        %1992 = vmatpush.msra.mxu0 %v1991
        %v1993 = vand.u32 %v590, 4294901760
        %1994 = vmatpush.msra.mxu0 %v1993
        %v1995 = vand.u32 %v577, 4294901760
        %1996 = vmatpush.msra.mxu0 %v1995
        %v1997 = vand.u32 %v564, 4294901760
        %1998 = vmatpush.msra.mxu0 %v1997
        %v1999 = vand.u32 %v551, 4294901760
        %2000 = vmatpush.msra.mxu0 %v1999
        %v2001 = vand.u32 %v538, 4294901760
        %2002 = vmatpush.msra.mxu0 %v2001
        %v2003 = vand.u32 %v525, 4294901760
        %2004 = vmatpush.msra.mxu0 %v2003
        %v2005 = vand.u32 %v512, 4294901760
        %2006 = vmatpush.msra.mxu0 %v2005
        %v2007 = vand.u32 %v499, 4294901760
        %2008 = vmatpush.msra.mxu0 %v2007
        %v2009 = vand.u32 %v486, 4294901760
        %2010 = vmatpush.msra.mxu0 %v2009
        %v2011 = vand.u32 %v473, 4294901760
        %2012 = vmatpush.msra.mxu0 %v2011
        %v2013 = vand.u32 %v460, 4294901760
        %2014 = vmatpush.msra.mxu0 %v2013
        %v2015 = vand.u32 %v447, 4294901760
        %2016 = vmatpush.msra.mxu0 %v2015
        %v2017 = vand.u32 %v434, 4294901760
        %2018 = vmatpush.msra.mxu0 %v2017
        %v2019 = vand.u32 %v421, 4294901760
        %2020 = vmatpush.msra.mxu0 %v2019
        %v2021 = vand.u32 %v416, 4294901760
        %v2022 = vsub.f32 %v416, %v2021
        %v2023 = vand.u32 %v2022, 4294901760
        %v2024 = vsub.f32 %v2022, %v2023
        %v2025 = vand.u32 %v2024, 4294901760
        %2026 = vmatmul.f32.gmra.mxu0 %v2025
        %v2027 = vpop.f32.mrf.mxu0
        %v2028 = vadd.f32 0.0, %v2027
        %2029 = vdwg.mxu0
        %v2030 = vand.u32 %v616, 4294901760
        %v2031 = vsub.f32 %v616, %v2030
        %v2032 = vand.u32 %v2031, 4294901760
        %v2033 = vsub.f32 %v2031, %v2032
        %v2034 = vand.u32 %v2033, 4294901760
        %2035 = vmatpush.msra.mxu0 %v2034
        %v2036 = vand.u32 %v603, 4294901760
        %v2037 = vsub.f32 %v603, %v2036
        %v2038 = vand.u32 %v2037, 4294901760
        %v2039 = vsub.f32 %v2037, %v2038
        %v2040 = vand.u32 %v2039, 4294901760
        %2041 = vmatpush.msra.mxu0 %v2040
        %v2042 = vand.u32 %v590, 4294901760
        %v2043 = vsub.f32 %v590, %v2042
        %v2044 = vand.u32 %v2043, 4294901760
        %v2045 = vsub.f32 %v2043, %v2044
        %v2046 = vand.u32 %v2045, 4294901760
        %2047 = vmatpush.msra.mxu0 %v2046
        %v2048 = vand.u32 %v577, 4294901760
        %v2049 = vsub.f32 %v577, %v2048
        %v2050 = vand.u32 %v2049, 4294901760
        %v2051 = vsub.f32 %v2049, %v2050
        %v2052 = vand.u32 %v2051, 4294901760
        %2053 = vmatpush.msra.mxu0 %v2052
        %v2054 = vand.u32 %v564, 4294901760
        %v2055 = vsub.f32 %v564, %v2054
        %v2056 = vand.u32 %v2055, 4294901760
        %v2057 = vsub.f32 %v2055, %v2056
        %v2058 = vand.u32 %v2057, 4294901760
        %2059 = vmatpush.msra.mxu0 %v2058
        %v2060 = vand.u32 %v551, 4294901760
        %v2061 = vsub.f32 %v551, %v2060
        %v2062 = vand.u32 %v2061, 4294901760
        %v2063 = vsub.f32 %v2061, %v2062
        %v2064 = vand.u32 %v2063, 4294901760
        %2065 = vmatpush.msra.mxu0 %v2064
        %v2066 = vand.u32 %v538, 4294901760
        %v2067 = vsub.f32 %v538, %v2066
        %v2068 = vand.u32 %v2067, 4294901760
        %v2069 = vsub.f32 %v2067, %v2068
        %v2070 = vand.u32 %v2069, 4294901760
        %2071 = vmatpush.msra.mxu0 %v2070
        %v2072 = vand.u32 %v525, 4294901760
        %v2073 = vsub.f32 %v525, %v2072
        %v2074 = vand.u32 %v2073, 4294901760
        %v2075 = vsub.f32 %v2073, %v2074
        %v2076 = vand.u32 %v2075, 4294901760
        %2077 = vmatpush.msra.mxu0 %v2076
        %v2078 = vand.u32 %v512, 4294901760
        %v2079 = vsub.f32 %v512, %v2078
        %v2080 = vand.u32 %v2079, 4294901760
        %v2081 = vsub.f32 %v2079, %v2080
        %v2082 = vand.u32 %v2081, 4294901760
        %2083 = vmatpush.msra.mxu0 %v2082
        %v2084 = vand.u32 %v499, 4294901760
        %v2085 = vsub.f32 %v499, %v2084
        %v2086 = vand.u32 %v2085, 4294901760
        %v2087 = vsub.f32 %v2085, %v2086
        %v2088 = vand.u32 %v2087, 4294901760
        %2089 = vmatpush.msra.mxu0 %v2088
        %v2090 = vand.u32 %v486, 4294901760
        %v2091 = vsub.f32 %v486, %v2090
        %v2092 = vand.u32 %v2091, 4294901760
        %v2093 = vsub.f32 %v2091, %v2092
        %v2094 = vand.u32 %v2093, 4294901760
        %2095 = vmatpush.msra.mxu0 %v2094
        %v2096 = vand.u32 %v473, 4294901760
        %v2097 = vsub.f32 %v473, %v2096
        %v2098 = vand.u32 %v2097, 4294901760
        %v2099 = vsub.f32 %v2097, %v2098
        %v2100 = vand.u32 %v2099, 4294901760
        %2101 = vmatpush.msra.mxu0 %v2100
        %v2102 = vand.u32 %v460, 4294901760
        %v2103 = vsub.f32 %v460, %v2102
        %v2104 = vand.u32 %v2103, 4294901760
        %v2105 = vsub.f32 %v2103, %v2104
        %v2106 = vand.u32 %v2105, 4294901760
        %2107 = vmatpush.msra.mxu0 %v2106
        %v2108 = vand.u32 %v447, 4294901760
        %v2109 = vsub.f32 %v447, %v2108
        %v2110 = vand.u32 %v2109, 4294901760
        %v2111 = vsub.f32 %v2109, %v2110
        %v2112 = vand.u32 %v2111, 4294901760
        %2113 = vmatpush.msra.mxu0 %v2112
        %v2114 = vand.u32 %v434, 4294901760
        %v2115 = vsub.f32 %v434, %v2114
        %v2116 = vand.u32 %v2115, 4294901760
        %v2117 = vsub.f32 %v2115, %v2116
        %v2118 = vand.u32 %v2117, 4294901760
        %2119 = vmatpush.msra.mxu0 %v2118
        %v2120 = vand.u32 %v421, 4294901760
        %v2121 = vsub.f32 %v421, %v2120
        %v2122 = vand.u32 %v2121, 4294901760
        %v2123 = vsub.f32 %v2121, %v2122
        %v2124 = vand.u32 %v2123, 4294901760
        %2125 = vmatpush.msra.mxu0 %v2124
        %v2126 = vand.u32 %v416, 4294901760
        %2127 = vmatmul.f32.gmra.mxu0 %v2126
        %v2128 = vpop.f32.mrf.mxu0
        %v2129 = vadd.f32 %v2028, %v2128
        %2130 = vdwg.mxu0
        %v2131 = vand.u32 %v616, 4294901760
        %v2132 = vsub.f32 %v616, %v2131
        %2133 = vmatpush.msra.mxu0 %v2132
        %v2134 = vand.u32 %v603, 4294901760
        %v2135 = vsub.f32 %v603, %v2134
        %2136 = vmatpush.msra.mxu0 %v2135
        %v2137 = vand.u32 %v590, 4294901760
        %v2138 = vsub.f32 %v590, %v2137
        %2139 = vmatpush.msra.mxu0 %v2138
        %v2140 = vand.u32 %v577, 4294901760
        %v2141 = vsub.f32 %v577, %v2140
        %2142 = vmatpush.msra.mxu0 %v2141
        %v2143 = vand.u32 %v564, 4294901760
        %v2144 = vsub.f32 %v564, %v2143
        %2145 = vmatpush.msra.mxu0 %v2144
        %v2146 = vand.u32 %v551, 4294901760
        %v2147 = vsub.f32 %v551, %v2146
        %2148 = vmatpush.msra.mxu0 %v2147
        %v2149 = vand.u32 %v538, 4294901760
        %v2150 = vsub.f32 %v538, %v2149
        %2151 = vmatpush.msra.mxu0 %v2150
        %v2152 = vand.u32 %v525, 4294901760
        %v2153 = vsub.f32 %v525, %v2152
        %2154 = vmatpush.msra.mxu0 %v2153
        %v2155 = vand.u32 %v512, 4294901760
        %v2156 = vsub.f32 %v512, %v2155
        %2157 = vmatpush.msra.mxu0 %v2156
        %v2158 = vand.u32 %v499, 4294901760
        %v2159 = vsub.f32 %v499, %v2158
        %2160 = vmatpush.msra.mxu0 %v2159
        %v2161 = vand.u32 %v486, 4294901760
        %v2162 = vsub.f32 %v486, %v2161
        %2163 = vmatpush.msra.mxu0 %v2162
        %v2164 = vand.u32 %v473, 4294901760
        %v2165 = vsub.f32 %v473, %v2164
        %2166 = vmatpush.msra.mxu0 %v2165
        %v2167 = vand.u32 %v460, 4294901760
        %v2168 = vsub.f32 %v460, %v2167
        %2169 = vmatpush.msra.mxu0 %v2168
        %v2170 = vand.u32 %v447, 4294901760
        %v2171 = vsub.f32 %v447, %v2170
        %2172 = vmatpush.msra.mxu0 %v2171
        %v2173 = vand.u32 %v434, 4294901760
        %v2174 = vsub.f32 %v434, %v2173
        %2175 = vmatpush.msra.mxu0 %v2174
        %v2176 = vand.u32 %v421, 4294901760
        %v2177 = vsub.f32 %v421, %v2176
        %2178 = vmatpush.msra.mxu0 %v2177
        %v2179 = vand.u32 %v416, 4294901760
        %v2180 = vsub.f32 %v416, %v2179
        %2181 = vmatmul.f32.gmra.mxu0 %v2180
        %v2182 = vpop.f32.mrf.mxu0
        %v2183 = vadd.f32 %v2129, %v2182
        %2184 = vdwg.mxu0
        %v2185 = vand.u32 %v616, 4294901760
        %2186 = vmatpush.msra.mxu0 %v2185
        %v2187 = vand.u32 %v603, 4294901760
        %2188 = vmatpush.msra.mxu0 %v2187
        %v2189 = vand.u32 %v590, 4294901760
        %2190 = vmatpush.msra.mxu0 %v2189
        %v2191 = vand.u32 %v577, 4294901760
        %2192 = vmatpush.msra.mxu0 %v2191
        %v2193 = vand.u32 %v564, 4294901760
        %2194 = vmatpush.msra.mxu0 %v2193
        %v2195 = vand.u32 %v551, 4294901760
        %2196 = vmatpush.msra.mxu0 %v2195
        %v2197 = vand.u32 %v538, 4294901760
        %2198 = vmatpush.msra.mxu0 %v2197
        %v2199 = vand.u32 %v525, 4294901760
        %2200 = vmatpush.msra.mxu0 %v2199
        %v2201 = vand.u32 %v512, 4294901760
        %2202 = vmatpush.msra.mxu0 %v2201
        %v2203 = vand.u32 %v499, 4294901760
        %2204 = vmatpush.msra.mxu0 %v2203
        %v2205 = vand.u32 %v486, 4294901760
        %2206 = vmatpush.msra.mxu0 %v2205
        %v2207 = vand.u32 %v473, 4294901760
        %2208 = vmatpush.msra.mxu0 %v2207
        %v2209 = vand.u32 %v460, 4294901760
        %2210 = vmatpush.msra.mxu0 %v2209
        %v2211 = vand.u32 %v447, 4294901760
        %2212 = vmatpush.msra.mxu0 %v2211
        %v2213 = vand.u32 %v434, 4294901760
        %2214 = vmatpush.msra.mxu0 %v2213
        %v2215 = vand.u32 %v421, 4294901760
        %2216 = vmatpush.msra.mxu0 %v2215
        %v2217 = vand.u32 %v416, 4294901760
        %v2218 = vsub.f32 %v416, %v2217
        %v2219 = vand.u32 %v2218, 4294901760
        %2220 = vmatmul.f32.gmra.mxu0 %v2219
        %v2221 = vpop.f32.mrf.mxu0
        %v2222 = vadd.f32 %v2183, %v2221
        %2223 = vdwg.mxu0
        %v2224 = vand.u32 %v616, 4294901760
        %v2225 = vsub.f32 %v616, %v2224
        %v2226 = vand.u32 %v2225, 4294901760
        %2227 = vmatpush.msra.mxu0 %v2226
        %v2228 = vand.u32 %v603, 4294901760
        %v2229 = vsub.f32 %v603, %v2228
        %v2230 = vand.u32 %v2229, 4294901760
        %2231 = vmatpush.msra.mxu0 %v2230
        %v2232 = vand.u32 %v590, 4294901760
        %v2233 = vsub.f32 %v590, %v2232
        %v2234 = vand.u32 %v2233, 4294901760
        %2235 = vmatpush.msra.mxu0 %v2234
        %v2236 = vand.u32 %v577, 4294901760
        %v2237 = vsub.f32 %v577, %v2236
        %v2238 = vand.u32 %v2237, 4294901760
        %2239 = vmatpush.msra.mxu0 %v2238
        %v2240 = vand.u32 %v564, 4294901760
        %v2241 = vsub.f32 %v564, %v2240
        %v2242 = vand.u32 %v2241, 4294901760
        %2243 = vmatpush.msra.mxu0 %v2242
        %v2244 = vand.u32 %v551, 4294901760
        %v2245 = vsub.f32 %v551, %v2244
        %v2246 = vand.u32 %v2245, 4294901760
        %2247 = vmatpush.msra.mxu0 %v2246
        %v2248 = vand.u32 %v538, 4294901760
        %v2249 = vsub.f32 %v538, %v2248
        %v2250 = vand.u32 %v2249, 4294901760
        %2251 = vmatpush.msra.mxu0 %v2250
        %v2252 = vand.u32 %v525, 4294901760
        %v2253 = vsub.f32 %v525, %v2252
        %v2254 = vand.u32 %v2253, 4294901760
        %2255 = vmatpush.msra.mxu0 %v2254
        %v2256 = vand.u32 %v512, 4294901760
        %v2257 = vsub.f32 %v512, %v2256
        %v2258 = vand.u32 %v2257, 4294901760
        %2259 = vmatpush.msra.mxu0 %v2258
        %v2260 = vand.u32 %v499, 4294901760
        %v2261 = vsub.f32 %v499, %v2260
        %v2262 = vand.u32 %v2261, 4294901760
        %2263 = vmatpush.msra.mxu0 %v2262
        %v2264 = vand.u32 %v486, 4294901760
        %v2265 = vsub.f32 %v486, %v2264
        %v2266 = vand.u32 %v2265, 4294901760
        %2267 = vmatpush.msra.mxu0 %v2266
        %v2268 = vand.u32 %v473, 4294901760
        %v2269 = vsub.f32 %v473, %v2268
        %v2270 = vand.u32 %v2269, 4294901760
        %2271 = vmatpush.msra.mxu0 %v2270
        %v2272 = vand.u32 %v460, 4294901760
        %v2273 = vsub.f32 %v460, %v2272
        %v2274 = vand.u32 %v2273, 4294901760
        %2275 = vmatpush.msra.mxu0 %v2274
        %v2276 = vand.u32 %v447, 4294901760
        %v2277 = vsub.f32 %v447, %v2276
        %v2278 = vand.u32 %v2277, 4294901760
        %2279 = vmatpush.msra.mxu0 %v2278
        %v2280 = vand.u32 %v434, 4294901760
        %v2281 = vsub.f32 %v434, %v2280
        %v2282 = vand.u32 %v2281, 4294901760
        %2283 = vmatpush.msra.mxu0 %v2282
        %v2284 = vand.u32 %v421, 4294901760
        %v2285 = vsub.f32 %v421, %v2284
        %v2286 = vand.u32 %v2285, 4294901760
        %2287 = vmatpush.msra.mxu0 %v2286
        %v2288 = vand.u32 %v416, 4294901760
        %2289 = vmatmul.f32.gmra.mxu0 %v2288
        %v2290 = vpop.f32.mrf.mxu0
        %v2291 = vadd.f32 %v2222, %v2290
        %2292 = vdwg.mxu0
        %v2293 = vand.u32 %v616, 4294901760
        %2294 = vmatpush.msra.mxu0 %v2293
        %v2295 = vand.u32 %v603, 4294901760
        %2296 = vmatpush.msra.mxu0 %v2295
        %v2297 = vand.u32 %v590, 4294901760
        %2298 = vmatpush.msra.mxu0 %v2297
        %v2299 = vand.u32 %v577, 4294901760
        %2300 = vmatpush.msra.mxu0 %v2299
        %v2301 = vand.u32 %v564, 4294901760
        %2302 = vmatpush.msra.mxu0 %v2301
        %v2303 = vand.u32 %v551, 4294901760
        %2304 = vmatpush.msra.mxu0 %v2303
        %v2305 = vand.u32 %v538, 4294901760
        %2306 = vmatpush.msra.mxu0 %v2305
        %v2307 = vand.u32 %v525, 4294901760
        %2308 = vmatpush.msra.mxu0 %v2307
        %v2309 = vand.u32 %v512, 4294901760
        %2310 = vmatpush.msra.mxu0 %v2309
        %v2311 = vand.u32 %v499, 4294901760
        %2312 = vmatpush.msra.mxu0 %v2311
        %v2313 = vand.u32 %v486, 4294901760
        %2314 = vmatpush.msra.mxu0 %v2313
        %v2315 = vand.u32 %v473, 4294901760
        %2316 = vmatpush.msra.mxu0 %v2315
        %v2317 = vand.u32 %v460, 4294901760
        %2318 = vmatpush.msra.mxu0 %v2317
        %v2319 = vand.u32 %v447, 4294901760
        %2320 = vmatpush.msra.mxu0 %v2319
        %v2321 = vand.u32 %v434, 4294901760
        %2322 = vmatpush.msra.mxu0 %v2321
        %v2323 = vand.u32 %v421, 4294901760
        %2324 = vmatpush.msra.mxu0 %v2323
        %v2325 = vand.u32 %v416, 4294901760
        %2326 = vmatmul.f32.gmra.mxu0 %v2325
        %v2327 = vpop.f32.mrf.mxu0
        %v2328 = vadd.f32 %v2291, %v2327
        %2329 = vdwg.mxu0
        %v2330 = vand.u32 %v617, 4294901760
        %2331 = vmatpush.msra.mxu0 %v2330
        %v2332 = vand.u32 %v604, 4294901760
        %2333 = vmatpush.msra.mxu0 %v2332
        %v2334 = vand.u32 %v591, 4294901760
        %2335 = vmatpush.msra.mxu0 %v2334
        %v2336 = vand.u32 %v578, 4294901760
        %2337 = vmatpush.msra.mxu0 %v2336
        %v2338 = vand.u32 %v565, 4294901760
        %2339 = vmatpush.msra.mxu0 %v2338
        %v2340 = vand.u32 %v552, 4294901760
        %2341 = vmatpush.msra.mxu0 %v2340
        %v2342 = vand.u32 %v539, 4294901760
        %2343 = vmatpush.msra.mxu0 %v2342
        %v2344 = vand.u32 %v526, 4294901760
        %2345 = vmatpush.msra.mxu0 %v2344
        %v2346 = vand.u32 %v513, 4294901760
        %2347 = vmatpush.msra.mxu0 %v2346
        %v2348 = vand.u32 %v500, 4294901760
        %2349 = vmatpush.msra.mxu0 %v2348
        %v2350 = vand.u32 %v487, 4294901760
        %2351 = vmatpush.msra.mxu0 %v2350
        %v2352 = vand.u32 %v474, 4294901760
        %2353 = vmatpush.msra.mxu0 %v2352
        %v2354 = vand.u32 %v461, 4294901760
        %2355 = vmatpush.msra.mxu0 %v2354
        %v2356 = vand.u32 %v448, 4294901760
        %2357 = vmatpush.msra.mxu0 %v2356
        %v2358 = vand.u32 %v435, 4294901760
        %2359 = vmatpush.msra.mxu0 %v2358
        %v2360 = vand.u32 %v422, 4294901760
        %2361 = vmatpush.msra.mxu0 %v2360
        %v2362 = vand.u32 %v416, 4294901760
        %v2363 = vsub.f32 %v416, %v2362
        %v2364 = vand.u32 %v2363, 4294901760
        %v2365 = vsub.f32 %v2363, %v2364
        %v2366 = vand.u32 %v2365, 4294901760
        %2367 = vmatmul.f32.gmra.mxu0 %v2366
        %v2368 = vpop.f32.mrf.mxu0
        %v2369 = vadd.f32 0.0, %v2368
        %2370 = vdwg.mxu0
        %v2371 = vand.u32 %v617, 4294901760
        %v2372 = vsub.f32 %v617, %v2371
        %v2373 = vand.u32 %v2372, 4294901760
        %v2374 = vsub.f32 %v2372, %v2373
        %v2375 = vand.u32 %v2374, 4294901760
        %2376 = vmatpush.msra.mxu0 %v2375
        %v2377 = vand.u32 %v604, 4294901760
        %v2378 = vsub.f32 %v604, %v2377
        %v2379 = vand.u32 %v2378, 4294901760
        %v2380 = vsub.f32 %v2378, %v2379
        %v2381 = vand.u32 %v2380, 4294901760
        %2382 = vmatpush.msra.mxu0 %v2381
        %v2383 = vand.u32 %v591, 4294901760
        %v2384 = vsub.f32 %v591, %v2383
        %v2385 = vand.u32 %v2384, 4294901760
        %v2386 = vsub.f32 %v2384, %v2385
        %v2387 = vand.u32 %v2386, 4294901760
        %2388 = vmatpush.msra.mxu0 %v2387
        %v2389 = vand.u32 %v578, 4294901760
        %v2390 = vsub.f32 %v578, %v2389
        %v2391 = vand.u32 %v2390, 4294901760
        %v2392 = vsub.f32 %v2390, %v2391
        %v2393 = vand.u32 %v2392, 4294901760
        %2394 = vmatpush.msra.mxu0 %v2393
        %v2395 = vand.u32 %v565, 4294901760
        %v2396 = vsub.f32 %v565, %v2395
        %v2397 = vand.u32 %v2396, 4294901760
        %v2398 = vsub.f32 %v2396, %v2397
        %v2399 = vand.u32 %v2398, 4294901760
        %2400 = vmatpush.msra.mxu0 %v2399
        %v2401 = vand.u32 %v552, 4294901760
        %v2402 = vsub.f32 %v552, %v2401
        %v2403 = vand.u32 %v2402, 4294901760
        %v2404 = vsub.f32 %v2402, %v2403
        %v2405 = vand.u32 %v2404, 4294901760
        %2406 = vmatpush.msra.mxu0 %v2405
        %v2407 = vand.u32 %v539, 4294901760
        %v2408 = vsub.f32 %v539, %v2407
        %v2409 = vand.u32 %v2408, 4294901760
        %v2410 = vsub.f32 %v2408, %v2409
        %v2411 = vand.u32 %v2410, 4294901760
        %2412 = vmatpush.msra.mxu0 %v2411
        %v2413 = vand.u32 %v526, 4294901760
        %v2414 = vsub.f32 %v526, %v2413
        %v2415 = vand.u32 %v2414, 4294901760
        %v2416 = vsub.f32 %v2414, %v2415
        %v2417 = vand.u32 %v2416, 4294901760
        %2418 = vmatpush.msra.mxu0 %v2417
        %v2419 = vand.u32 %v513, 4294901760
        %v2420 = vsub.f32 %v513, %v2419
        %v2421 = vand.u32 %v2420, 4294901760
        %v2422 = vsub.f32 %v2420, %v2421
        %v2423 = vand.u32 %v2422, 4294901760
        %2424 = vmatpush.msra.mxu0 %v2423
        %v2425 = vand.u32 %v500, 4294901760
        %v2426 = vsub.f32 %v500, %v2425
        %v2427 = vand.u32 %v2426, 4294901760
        %v2428 = vsub.f32 %v2426, %v2427
        %v2429 = vand.u32 %v2428, 4294901760
        %2430 = vmatpush.msra.mxu0 %v2429
        %v2431 = vand.u32 %v487, 4294901760
        %v2432 = vsub.f32 %v487, %v2431
        %v2433 = vand.u32 %v2432, 4294901760
        %v2434 = vsub.f32 %v2432, %v2433
        %v2435 = vand.u32 %v2434, 4294901760
        %2436 = vmatpush.msra.mxu0 %v2435
        %v2437 = vand.u32 %v474, 4294901760
        %v2438 = vsub.f32 %v474, %v2437
        %v2439 = vand.u32 %v2438, 4294901760
        %v2440 = vsub.f32 %v2438, %v2439
        %v2441 = vand.u32 %v2440, 4294901760
        %2442 = vmatpush.msra.mxu0 %v2441
        %v2443 = vand.u32 %v461, 4294901760
        %v2444 = vsub.f32 %v461, %v2443
        %v2445 = vand.u32 %v2444, 4294901760
        %v2446 = vsub.f32 %v2444, %v2445
        %v2447 = vand.u32 %v2446, 4294901760
        %2448 = vmatpush.msra.mxu0 %v2447
        %v2449 = vand.u32 %v448, 4294901760
        %v2450 = vsub.f32 %v448, %v2449
        %v2451 = vand.u32 %v2450, 4294901760
        %v2452 = vsub.f32 %v2450, %v2451
        %v2453 = vand.u32 %v2452, 4294901760
        %2454 = vmatpush.msra.mxu0 %v2453
        %v2455 = vand.u32 %v435, 4294901760
        %v2456 = vsub.f32 %v435, %v2455
        %v2457 = vand.u32 %v2456, 4294901760
        %v2458 = vsub.f32 %v2456, %v2457
        %v2459 = vand.u32 %v2458, 4294901760
        %2460 = vmatpush.msra.mxu0 %v2459
        %v2461 = vand.u32 %v422, 4294901760
        %v2462 = vsub.f32 %v422, %v2461
        %v2463 = vand.u32 %v2462, 4294901760
        %v2464 = vsub.f32 %v2462, %v2463
        %v2465 = vand.u32 %v2464, 4294901760
        %2466 = vmatpush.msra.mxu0 %v2465
        %v2467 = vand.u32 %v416, 4294901760
        %2468 = vmatmul.f32.gmra.mxu0 %v2467
        %v2469 = vpop.f32.mrf.mxu0
        %v2470 = vadd.f32 %v2369, %v2469
        %2471 = vdwg.mxu0
        %v2472 = vand.u32 %v617, 4294901760
        %v2473 = vsub.f32 %v617, %v2472
        %2474 = vmatpush.msra.mxu0 %v2473
        %v2475 = vand.u32 %v604, 4294901760
        %v2476 = vsub.f32 %v604, %v2475
        %2477 = vmatpush.msra.mxu0 %v2476
        %v2478 = vand.u32 %v591, 4294901760
        %v2479 = vsub.f32 %v591, %v2478
        %2480 = vmatpush.msra.mxu0 %v2479
        %v2481 = vand.u32 %v578, 4294901760
        %v2482 = vsub.f32 %v578, %v2481
        %2483 = vmatpush.msra.mxu0 %v2482
        %v2484 = vand.u32 %v565, 4294901760
        %v2485 = vsub.f32 %v565, %v2484
        %2486 = vmatpush.msra.mxu0 %v2485
        %v2487 = vand.u32 %v552, 4294901760
        %v2488 = vsub.f32 %v552, %v2487
        %2489 = vmatpush.msra.mxu0 %v2488
        %v2490 = vand.u32 %v539, 4294901760
        %v2491 = vsub.f32 %v539, %v2490
        %2492 = vmatpush.msra.mxu0 %v2491
        %v2493 = vand.u32 %v526, 4294901760
        %v2494 = vsub.f32 %v526, %v2493
        %2495 = vmatpush.msra.mxu0 %v2494
        %v2496 = vand.u32 %v513, 4294901760
        %v2497 = vsub.f32 %v513, %v2496
        %2498 = vmatpush.msra.mxu0 %v2497
        %v2499 = vand.u32 %v500, 4294901760
        %v2500 = vsub.f32 %v500, %v2499
        %2501 = vmatpush.msra.mxu0 %v2500
        %v2502 = vand.u32 %v487, 4294901760
        %v2503 = vsub.f32 %v487, %v2502
        %2504 = vmatpush.msra.mxu0 %v2503
        %v2505 = vand.u32 %v474, 4294901760
        %v2506 = vsub.f32 %v474, %v2505
        %2507 = vmatpush.msra.mxu0 %v2506
        %v2508 = vand.u32 %v461, 4294901760
        %v2509 = vsub.f32 %v461, %v2508
        %2510 = vmatpush.msra.mxu0 %v2509
        %v2511 = vand.u32 %v448, 4294901760
        %v2512 = vsub.f32 %v448, %v2511
        %2513 = vmatpush.msra.mxu0 %v2512
        %v2514 = vand.u32 %v435, 4294901760
        %v2515 = vsub.f32 %v435, %v2514
        %2516 = vmatpush.msra.mxu0 %v2515
        %v2517 = vand.u32 %v422, 4294901760
        %v2518 = vsub.f32 %v422, %v2517
        %2519 = vmatpush.msra.mxu0 %v2518
        %v2520 = vand.u32 %v416, 4294901760
        %v2521 = vsub.f32 %v416, %v2520
        %2522 = vmatmul.f32.gmra.mxu0 %v2521
        %v2523 = vpop.f32.mrf.mxu0
        %v2524 = vadd.f32 %v2470, %v2523
        %2525 = vdwg.mxu0
        %v2526 = vand.u32 %v617, 4294901760
        %2527 = vmatpush.msra.mxu0 %v2526
        %v2528 = vand.u32 %v604, 4294901760
        %2529 = vmatpush.msra.mxu0 %v2528
        %v2530 = vand.u32 %v591, 4294901760
        %2531 = vmatpush.msra.mxu0 %v2530
        %v2532 = vand.u32 %v578, 4294901760
        %2533 = vmatpush.msra.mxu0 %v2532
        %v2534 = vand.u32 %v565, 4294901760
        %2535 = vmatpush.msra.mxu0 %v2534
        %v2536 = vand.u32 %v552, 4294901760
        %2537 = vmatpush.msra.mxu0 %v2536
        %v2538 = vand.u32 %v539, 4294901760
        %2539 = vmatpush.msra.mxu0 %v2538
        %v2540 = vand.u32 %v526, 4294901760
        %2541 = vmatpush.msra.mxu0 %v2540
        %v2542 = vand.u32 %v513, 4294901760
        %2543 = vmatpush.msra.mxu0 %v2542
        %v2544 = vand.u32 %v500, 4294901760
        %2545 = vmatpush.msra.mxu0 %v2544
        %v2546 = vand.u32 %v487, 4294901760
        %2547 = vmatpush.msra.mxu0 %v2546
        %v2548 = vand.u32 %v474, 4294901760
        %2549 = vmatpush.msra.mxu0 %v2548
        %v2550 = vand.u32 %v461, 4294901760
        %2551 = vmatpush.msra.mxu0 %v2550
        %v2552 = vand.u32 %v448, 4294901760
        %2553 = vmatpush.msra.mxu0 %v2552
        %v2554 = vand.u32 %v435, 4294901760
        %2555 = vmatpush.msra.mxu0 %v2554
        %v2556 = vand.u32 %v422, 4294901760
        %2557 = vmatpush.msra.mxu0 %v2556
        %v2558 = vand.u32 %v416, 4294901760
        %v2559 = vsub.f32 %v416, %v2558
        %v2560 = vand.u32 %v2559, 4294901760
        %2561 = vmatmul.f32.gmra.mxu0 %v2560
        %v2562 = vpop.f32.mrf.mxu0
        %v2563 = vadd.f32 %v2524, %v2562
        %2564 = vdwg.mxu0
        %v2565 = vand.u32 %v617, 4294901760
        %v2566 = vsub.f32 %v617, %v2565
        %v2567 = vand.u32 %v2566, 4294901760
        %2568 = vmatpush.msra.mxu0 %v2567
        %v2569 = vand.u32 %v604, 4294901760
        %v2570 = vsub.f32 %v604, %v2569
        %v2571 = vand.u32 %v2570, 4294901760
        %2572 = vmatpush.msra.mxu0 %v2571
        %v2573 = vand.u32 %v591, 4294901760
        %v2574 = vsub.f32 %v591, %v2573
        %v2575 = vand.u32 %v2574, 4294901760
        %2576 = vmatpush.msra.mxu0 %v2575
        %v2577 = vand.u32 %v578, 4294901760
        %v2578 = vsub.f32 %v578, %v2577
        %v2579 = vand.u32 %v2578, 4294901760
        %2580 = vmatpush.msra.mxu0 %v2579
        %v2581 = vand.u32 %v565, 4294901760
        %v2582 = vsub.f32 %v565, %v2581
        %v2583 = vand.u32 %v2582, 4294901760
        %2584 = vmatpush.msra.mxu0 %v2583
        %v2585 = vand.u32 %v552, 4294901760
        %v2586 = vsub.f32 %v552, %v2585
        %v2587 = vand.u32 %v2586, 4294901760
        %2588 = vmatpush.msra.mxu0 %v2587
        %v2589 = vand.u32 %v539, 4294901760
        %v2590 = vsub.f32 %v539, %v2589
        %v2591 = vand.u32 %v2590, 4294901760
        %2592 = vmatpush.msra.mxu0 %v2591
        %v2593 = vand.u32 %v526, 4294901760
        %v2594 = vsub.f32 %v526, %v2593
        %v2595 = vand.u32 %v2594, 4294901760
        %2596 = vmatpush.msra.mxu0 %v2595
        %v2597 = vand.u32 %v513, 4294901760
        %v2598 = vsub.f32 %v513, %v2597
        %v2599 = vand.u32 %v2598, 4294901760
        %2600 = vmatpush.msra.mxu0 %v2599
        %v2601 = vand.u32 %v500, 4294901760
        %v2602 = vsub.f32 %v500, %v2601
        %v2603 = vand.u32 %v2602, 4294901760
        %2604 = vmatpush.msra.mxu0 %v2603
        %v2605 = vand.u32 %v487, 4294901760
        %v2606 = vsub.f32 %v487, %v2605
        %v2607 = vand.u32 %v2606, 4294901760
        %2608 = vmatpush.msra.mxu0 %v2607
        %v2609 = vand.u32 %v474, 4294901760
        %v2610 = vsub.f32 %v474, %v2609
        %v2611 = vand.u32 %v2610, 4294901760
        %2612 = vmatpush.msra.mxu0 %v2611
        %v2613 = vand.u32 %v461, 4294901760
        %v2614 = vsub.f32 %v461, %v2613
        %v2615 = vand.u32 %v2614, 4294901760
        %2616 = vmatpush.msra.mxu0 %v2615
        %v2617 = vand.u32 %v448, 4294901760
        %v2618 = vsub.f32 %v448, %v2617
        %v2619 = vand.u32 %v2618, 4294901760
        %2620 = vmatpush.msra.mxu0 %v2619
        %v2621 = vand.u32 %v435, 4294901760
        %v2622 = vsub.f32 %v435, %v2621
        %v2623 = vand.u32 %v2622, 4294901760
        %2624 = vmatpush.msra.mxu0 %v2623
        %v2625 = vand.u32 %v422, 4294901760
        %v2626 = vsub.f32 %v422, %v2625
        %v2627 = vand.u32 %v2626, 4294901760
        %2628 = vmatpush.msra.mxu0 %v2627
        %v2629 = vand.u32 %v416, 4294901760
        %2630 = vmatmul.f32.gmra.mxu0 %v2629
        %v2631 = vpop.f32.mrf.mxu0
        %v2632 = vadd.f32 %v2563, %v2631
        %2633 = vdwg.mxu0
        %v2634 = vand.u32 %v617, 4294901760
        %2635 = vmatpush.msra.mxu0 %v2634
        %v2636 = vand.u32 %v604, 4294901760
        %2637 = vmatpush.msra.mxu0 %v2636
        %v2638 = vand.u32 %v591, 4294901760
        %2639 = vmatpush.msra.mxu0 %v2638
        %v2640 = vand.u32 %v578, 4294901760
        %2641 = vmatpush.msra.mxu0 %v2640
        %v2642 = vand.u32 %v565, 4294901760
        %2643 = vmatpush.msra.mxu0 %v2642
        %v2644 = vand.u32 %v552, 4294901760
        %2645 = vmatpush.msra.mxu0 %v2644
        %v2646 = vand.u32 %v539, 4294901760
        %2647 = vmatpush.msra.mxu0 %v2646
        %v2648 = vand.u32 %v526, 4294901760
        %2649 = vmatpush.msra.mxu0 %v2648
        %v2650 = vand.u32 %v513, 4294901760
        %2651 = vmatpush.msra.mxu0 %v2650
        %v2652 = vand.u32 %v500, 4294901760
        %2653 = vmatpush.msra.mxu0 %v2652
        %v2654 = vand.u32 %v487, 4294901760
        %2655 = vmatpush.msra.mxu0 %v2654
        %v2656 = vand.u32 %v474, 4294901760
        %2657 = vmatpush.msra.mxu0 %v2656
        %v2658 = vand.u32 %v461, 4294901760
        %2659 = vmatpush.msra.mxu0 %v2658
        %v2660 = vand.u32 %v448, 4294901760
        %2661 = vmatpush.msra.mxu0 %v2660
        %v2662 = vand.u32 %v435, 4294901760
        %2663 = vmatpush.msra.mxu0 %v2662
        %v2664 = vand.u32 %v422, 4294901760
        %2665 = vmatpush.msra.mxu0 %v2664
        %v2666 = vand.u32 %v416, 4294901760
        %2667 = vmatmul.f32.gmra.mxu0 %v2666
        %v2668 = vpop.f32.mrf.mxu0
        %v2669 = vadd.f32 %v2632, %v2668
        %2670 = vdwg.mxu0
        %v2671 = vand.u32 %v618, 4294901760
        %2672 = vmatpush.msra.mxu0 %v2671
        %v2673 = vand.u32 %v605, 4294901760
        %2674 = vmatpush.msra.mxu0 %v2673
        %v2675 = vand.u32 %v592, 4294901760
        %2676 = vmatpush.msra.mxu0 %v2675
        %v2677 = vand.u32 %v579, 4294901760
        %2678 = vmatpush.msra.mxu0 %v2677
        %v2679 = vand.u32 %v566, 4294901760
        %2680 = vmatpush.msra.mxu0 %v2679
        %v2681 = vand.u32 %v553, 4294901760
        %2682 = vmatpush.msra.mxu0 %v2681
        %v2683 = vand.u32 %v540, 4294901760
        %2684 = vmatpush.msra.mxu0 %v2683
        %v2685 = vand.u32 %v527, 4294901760
        %2686 = vmatpush.msra.mxu0 %v2685
        %v2687 = vand.u32 %v514, 4294901760
        %2688 = vmatpush.msra.mxu0 %v2687
        %v2689 = vand.u32 %v501, 4294901760
        %2690 = vmatpush.msra.mxu0 %v2689
        %v2691 = vand.u32 %v488, 4294901760
        %2692 = vmatpush.msra.mxu0 %v2691
        %v2693 = vand.u32 %v475, 4294901760
        %2694 = vmatpush.msra.mxu0 %v2693
        %v2695 = vand.u32 %v462, 4294901760
        %2696 = vmatpush.msra.mxu0 %v2695
        %v2697 = vand.u32 %v449, 4294901760
        %2698 = vmatpush.msra.mxu0 %v2697
        %v2699 = vand.u32 %v436, 4294901760
        %2700 = vmatpush.msra.mxu0 %v2699
        %v2701 = vand.u32 %v423, 4294901760
        %2702 = vmatpush.msra.mxu0 %v2701
        %v2703 = vand.u32 %v416, 4294901760
        %v2704 = vsub.f32 %v416, %v2703
        %v2705 = vand.u32 %v2704, 4294901760
        %v2706 = vsub.f32 %v2704, %v2705
        %v2707 = vand.u32 %v2706, 4294901760
        %2708 = vmatmul.f32.gmra.mxu0 %v2707
        %v2709 = vpop.f32.mrf.mxu0
        %v2710 = vadd.f32 0.0, %v2709
        %2711 = vdwg.mxu0
        %v2712 = vand.u32 %v618, 4294901760
        %v2713 = vsub.f32 %v618, %v2712
        %v2714 = vand.u32 %v2713, 4294901760
        %v2715 = vsub.f32 %v2713, %v2714
        %v2716 = vand.u32 %v2715, 4294901760
        %2717 = vmatpush.msra.mxu0 %v2716
        %v2718 = vand.u32 %v605, 4294901760
        %v2719 = vsub.f32 %v605, %v2718
        %v2720 = vand.u32 %v2719, 4294901760
        %v2721 = vsub.f32 %v2719, %v2720
        %v2722 = vand.u32 %v2721, 4294901760
        %2723 = vmatpush.msra.mxu0 %v2722
        %v2724 = vand.u32 %v592, 4294901760
        %v2725 = vsub.f32 %v592, %v2724
        %v2726 = vand.u32 %v2725, 4294901760
        %v2727 = vsub.f32 %v2725, %v2726
        %v2728 = vand.u32 %v2727, 4294901760
        %2729 = vmatpush.msra.mxu0 %v2728
        %v2730 = vand.u32 %v579, 4294901760
        %v2731 = vsub.f32 %v579, %v2730
        %v2732 = vand.u32 %v2731, 4294901760
        %v2733 = vsub.f32 %v2731, %v2732
        %v2734 = vand.u32 %v2733, 4294901760
        %2735 = vmatpush.msra.mxu0 %v2734
        %v2736 = vand.u32 %v566, 4294901760
        %v2737 = vsub.f32 %v566, %v2736
        %v2738 = vand.u32 %v2737, 4294901760
        %v2739 = vsub.f32 %v2737, %v2738
        %v2740 = vand.u32 %v2739, 4294901760
        %2741 = vmatpush.msra.mxu0 %v2740
        %v2742 = vand.u32 %v553, 4294901760
        %v2743 = vsub.f32 %v553, %v2742
        %v2744 = vand.u32 %v2743, 4294901760
        %v2745 = vsub.f32 %v2743, %v2744
        %v2746 = vand.u32 %v2745, 4294901760
        %2747 = vmatpush.msra.mxu0 %v2746
        %v2748 = vand.u32 %v540, 4294901760
        %v2749 = vsub.f32 %v540, %v2748
        %v2750 = vand.u32 %v2749, 4294901760
        %v2751 = vsub.f32 %v2749, %v2750
        %v2752 = vand.u32 %v2751, 4294901760
        %2753 = vmatpush.msra.mxu0 %v2752
        %v2754 = vand.u32 %v527, 4294901760
        %v2755 = vsub.f32 %v527, %v2754
        %v2756 = vand.u32 %v2755, 4294901760
        %v2757 = vsub.f32 %v2755, %v2756
        %v2758 = vand.u32 %v2757, 4294901760
        %2759 = vmatpush.msra.mxu0 %v2758
        %v2760 = vand.u32 %v514, 4294901760
        %v2761 = vsub.f32 %v514, %v2760
        %v2762 = vand.u32 %v2761, 4294901760
        %v2763 = vsub.f32 %v2761, %v2762
        %v2764 = vand.u32 %v2763, 4294901760
        %2765 = vmatpush.msra.mxu0 %v2764
        %v2766 = vand.u32 %v501, 4294901760
        %v2767 = vsub.f32 %v501, %v2766
        %v2768 = vand.u32 %v2767, 4294901760
        %v2769 = vsub.f32 %v2767, %v2768
        %v2770 = vand.u32 %v2769, 4294901760
        %2771 = vmatpush.msra.mxu0 %v2770
        %v2772 = vand.u32 %v488, 4294901760
        %v2773 = vsub.f32 %v488, %v2772
        %v2774 = vand.u32 %v2773, 4294901760
        %v2775 = vsub.f32 %v2773, %v2774
        %v2776 = vand.u32 %v2775, 4294901760
        %2777 = vmatpush.msra.mxu0 %v2776
        %v2778 = vand.u32 %v475, 4294901760
        %v2779 = vsub.f32 %v475, %v2778
        %v2780 = vand.u32 %v2779, 4294901760
        %v2781 = vsub.f32 %v2779, %v2780
        %v2782 = vand.u32 %v2781, 4294901760
        %2783 = vmatpush.msra.mxu0 %v2782
        %v2784 = vand.u32 %v462, 4294901760
        %v2785 = vsub.f32 %v462, %v2784
        %v2786 = vand.u32 %v2785, 4294901760
        %v2787 = vsub.f32 %v2785, %v2786
        %v2788 = vand.u32 %v2787, 4294901760
        %2789 = vmatpush.msra.mxu0 %v2788
        %v2790 = vand.u32 %v449, 4294901760
        %v2791 = vsub.f32 %v449, %v2790
        %v2792 = vand.u32 %v2791, 4294901760
        %v2793 = vsub.f32 %v2791, %v2792
        %v2794 = vand.u32 %v2793, 4294901760
        %2795 = vmatpush.msra.mxu0 %v2794
        %v2796 = vand.u32 %v436, 4294901760
        %v2797 = vsub.f32 %v436, %v2796
        %v2798 = vand.u32 %v2797, 4294901760
        %v2799 = vsub.f32 %v2797, %v2798
        %v2800 = vand.u32 %v2799, 4294901760
        %2801 = vmatpush.msra.mxu0 %v2800
        %v2802 = vand.u32 %v423, 4294901760
        %v2803 = vsub.f32 %v423, %v2802
        %v2804 = vand.u32 %v2803, 4294901760
        %v2805 = vsub.f32 %v2803, %v2804
        %v2806 = vand.u32 %v2805, 4294901760
        %2807 = vmatpush.msra.mxu0 %v2806
        %v2808 = vand.u32 %v416, 4294901760
        %2809 = vmatmul.f32.gmra.mxu0 %v2808
        %v2810 = vpop.f32.mrf.mxu0
        %v2811 = vadd.f32 %v2710, %v2810
        %2812 = vdwg.mxu0
        %v2813 = vand.u32 %v618, 4294901760
        %v2814 = vsub.f32 %v618, %v2813
        %2815 = vmatpush.msra.mxu0 %v2814
        %v2816 = vand.u32 %v605, 4294901760
        %v2817 = vsub.f32 %v605, %v2816
        %2818 = vmatpush.msra.mxu0 %v2817
        %v2819 = vand.u32 %v592, 4294901760
        %v2820 = vsub.f32 %v592, %v2819
        %2821 = vmatpush.msra.mxu0 %v2820
        %v2822 = vand.u32 %v579, 4294901760
        %v2823 = vsub.f32 %v579, %v2822
        %2824 = vmatpush.msra.mxu0 %v2823
        %v2825 = vand.u32 %v566, 4294901760
        %v2826 = vsub.f32 %v566, %v2825
        %2827 = vmatpush.msra.mxu0 %v2826
        %v2828 = vand.u32 %v553, 4294901760
        %v2829 = vsub.f32 %v553, %v2828
        %2830 = vmatpush.msra.mxu0 %v2829
        %v2831 = vand.u32 %v540, 4294901760
        %v2832 = vsub.f32 %v540, %v2831
        %2833 = vmatpush.msra.mxu0 %v2832
        %v2834 = vand.u32 %v527, 4294901760
        %v2835 = vsub.f32 %v527, %v2834
        %2836 = vmatpush.msra.mxu0 %v2835
        %v2837 = vand.u32 %v514, 4294901760
        %v2838 = vsub.f32 %v514, %v2837
        %2839 = vmatpush.msra.mxu0 %v2838
        %v2840 = vand.u32 %v501, 4294901760
        %v2841 = vsub.f32 %v501, %v2840
        %2842 = vmatpush.msra.mxu0 %v2841
        %v2843 = vand.u32 %v488, 4294901760
        %v2844 = vsub.f32 %v488, %v2843
        %2845 = vmatpush.msra.mxu0 %v2844
        %v2846 = vand.u32 %v475, 4294901760
        %v2847 = vsub.f32 %v475, %v2846
        %2848 = vmatpush.msra.mxu0 %v2847
        %v2849 = vand.u32 %v462, 4294901760
        %v2850 = vsub.f32 %v462, %v2849
        %2851 = vmatpush.msra.mxu0 %v2850
        %v2852 = vand.u32 %v449, 4294901760
        %v2853 = vsub.f32 %v449, %v2852
        %2854 = vmatpush.msra.mxu0 %v2853
        %v2855 = vand.u32 %v436, 4294901760
        %v2856 = vsub.f32 %v436, %v2855
        %2857 = vmatpush.msra.mxu0 %v2856
        %v2858 = vand.u32 %v423, 4294901760
        %v2859 = vsub.f32 %v423, %v2858
        %2860 = vmatpush.msra.mxu0 %v2859
        %v2861 = vand.u32 %v416, 4294901760
        %v2862 = vsub.f32 %v416, %v2861
        %2863 = vmatmul.f32.gmra.mxu0 %v2862
        %v2864 = vpop.f32.mrf.mxu0
        %v2865 = vadd.f32 %v2811, %v2864
        %2866 = vdwg.mxu0
        %v2867 = vand.u32 %v618, 4294901760
        %2868 = vmatpush.msra.mxu0 %v2867
        %v2869 = vand.u32 %v605, 4294901760
        %2870 = vmatpush.msra.mxu0 %v2869
        %v2871 = vand.u32 %v592, 4294901760
        %2872 = vmatpush.msra.mxu0 %v2871
        %v2873 = vand.u32 %v579, 4294901760
        %2874 = vmatpush.msra.mxu0 %v2873
        %v2875 = vand.u32 %v566, 4294901760
        %2876 = vmatpush.msra.mxu0 %v2875
        %v2877 = vand.u32 %v553, 4294901760
        %2878 = vmatpush.msra.mxu0 %v2877
        %v2879 = vand.u32 %v540, 4294901760
        %2880 = vmatpush.msra.mxu0 %v2879
        %v2881 = vand.u32 %v527, 4294901760
        %2882 = vmatpush.msra.mxu0 %v2881
        %v2883 = vand.u32 %v514, 4294901760
        %2884 = vmatpush.msra.mxu0 %v2883
        %v2885 = vand.u32 %v501, 4294901760
        %2886 = vmatpush.msra.mxu0 %v2885
        %v2887 = vand.u32 %v488, 4294901760
        %2888 = vmatpush.msra.mxu0 %v2887
        %v2889 = vand.u32 %v475, 4294901760
        %2890 = vmatpush.msra.mxu0 %v2889
        %v2891 = vand.u32 %v462, 4294901760
        %2892 = vmatpush.msra.mxu0 %v2891
        %v2893 = vand.u32 %v449, 4294901760
        %2894 = vmatpush.msra.mxu0 %v2893
        %v2895 = vand.u32 %v436, 4294901760
        %2896 = vmatpush.msra.mxu0 %v2895
        %v2897 = vand.u32 %v423, 4294901760
        %2898 = vmatpush.msra.mxu0 %v2897
        %v2899 = vand.u32 %v416, 4294901760
        %v2900 = vsub.f32 %v416, %v2899
        %v2901 = vand.u32 %v2900, 4294901760
        %2902 = vmatmul.f32.gmra.mxu0 %v2901
        %v2903 = vpop.f32.mrf.mxu0
        %v2904 = vadd.f32 %v2865, %v2903
        %2905 = vdwg.mxu0
        %v2906 = vand.u32 %v618, 4294901760
        %v2907 = vsub.f32 %v618, %v2906
        %v2908 = vand.u32 %v2907, 4294901760
        %2909 = vmatpush.msra.mxu0 %v2908
        %v2910 = vand.u32 %v605, 4294901760
        %v2911 = vsub.f32 %v605, %v2910
        %v2912 = vand.u32 %v2911, 4294901760
        %2913 = vmatpush.msra.mxu0 %v2912
        %v2914 = vand.u32 %v592, 4294901760
        %v2915 = vsub.f32 %v592, %v2914
        %v2916 = vand.u32 %v2915, 4294901760
        %2917 = vmatpush.msra.mxu0 %v2916
        %v2918 = vand.u32 %v579, 4294901760
        %v2919 = vsub.f32 %v579, %v2918
        %v2920 = vand.u32 %v2919, 4294901760
        %2921 = vmatpush.msra.mxu0 %v2920
        %v2922 = vand.u32 %v566, 4294901760
        %v2923 = vsub.f32 %v566, %v2922
        %v2924 = vand.u32 %v2923, 4294901760
        %2925 = vmatpush.msra.mxu0 %v2924
        %v2926 = vand.u32 %v553, 4294901760
        %v2927 = vsub.f32 %v553, %v2926
        %v2928 = vand.u32 %v2927, 4294901760
        %2929 = vmatpush.msra.mxu0 %v2928
        %v2930 = vand.u32 %v540, 4294901760
        %v2931 = vsub.f32 %v540, %v2930
        %v2932 = vand.u32 %v2931, 4294901760
        %2933 = vmatpush.msra.mxu0 %v2932
        %v2934 = vand.u32 %v527, 4294901760
        %v2935 = vsub.f32 %v527, %v2934
        %v2936 = vand.u32 %v2935, 4294901760
        %2937 = vmatpush.msra.mxu0 %v2936
        %v2938 = vand.u32 %v514, 4294901760
        %v2939 = vsub.f32 %v514, %v2938
        %v2940 = vand.u32 %v2939, 4294901760
        %2941 = vmatpush.msra.mxu0 %v2940
        %v2942 = vand.u32 %v501, 4294901760
        %v2943 = vsub.f32 %v501, %v2942
        %v2944 = vand.u32 %v2943, 4294901760
        %2945 = vmatpush.msra.mxu0 %v2944
        %v2946 = vand.u32 %v488, 4294901760
        %v2947 = vsub.f32 %v488, %v2946
        %v2948 = vand.u32 %v2947, 4294901760
        %2949 = vmatpush.msra.mxu0 %v2948
        %v2950 = vand.u32 %v475, 4294901760
        %v2951 = vsub.f32 %v475, %v2950
        %v2952 = vand.u32 %v2951, 4294901760
        %2953 = vmatpush.msra.mxu0 %v2952
        %v2954 = vand.u32 %v462, 4294901760
        %v2955 = vsub.f32 %v462, %v2954
        %v2956 = vand.u32 %v2955, 4294901760
        %2957 = vmatpush.msra.mxu0 %v2956
        %v2958 = vand.u32 %v449, 4294901760
        %v2959 = vsub.f32 %v449, %v2958
        %v2960 = vand.u32 %v2959, 4294901760
        %2961 = vmatpush.msra.mxu0 %v2960
        %v2962 = vand.u32 %v436, 4294901760
        %v2963 = vsub.f32 %v436, %v2962
        %v2964 = vand.u32 %v2963, 4294901760
        %2965 = vmatpush.msra.mxu0 %v2964
        %v2966 = vand.u32 %v423, 4294901760
        %v2967 = vsub.f32 %v423, %v2966
        %v2968 = vand.u32 %v2967, 4294901760
        %2969 = vmatpush.msra.mxu0 %v2968
        %v2970 = vand.u32 %v416, 4294901760
        %2971 = vmatmul.f32.gmra.mxu0 %v2970
        %v2972 = vpop.f32.mrf.mxu0
        %v2973 = vadd.f32 %v2904, %v2972
        %2974 = vdwg.mxu0
        %v2975 = vand.u32 %v618, 4294901760
        %2976 = vmatpush.msra.mxu0 %v2975
        %v2977 = vand.u32 %v605, 4294901760
        %2978 = vmatpush.msra.mxu0 %v2977
        %v2979 = vand.u32 %v592, 4294901760
        %2980 = vmatpush.msra.mxu0 %v2979
        %v2981 = vand.u32 %v579, 4294901760
        %2982 = vmatpush.msra.mxu0 %v2981
        %v2983 = vand.u32 %v566, 4294901760
        %2984 = vmatpush.msra.mxu0 %v2983
        %v2985 = vand.u32 %v553, 4294901760
        %2986 = vmatpush.msra.mxu0 %v2985
        %v2987 = vand.u32 %v540, 4294901760
        %2988 = vmatpush.msra.mxu0 %v2987
        %v2989 = vand.u32 %v527, 4294901760
        %2990 = vmatpush.msra.mxu0 %v2989
        %v2991 = vand.u32 %v514, 4294901760
        %2992 = vmatpush.msra.mxu0 %v2991
        %v2993 = vand.u32 %v501, 4294901760
        %2994 = vmatpush.msra.mxu0 %v2993
        %v2995 = vand.u32 %v488, 4294901760
        %2996 = vmatpush.msra.mxu0 %v2995
        %v2997 = vand.u32 %v475, 4294901760
        %2998 = vmatpush.msra.mxu0 %v2997
        %v2999 = vand.u32 %v462, 4294901760
        %3000 = vmatpush.msra.mxu0 %v2999
        %v3001 = vand.u32 %v449, 4294901760
        %3002 = vmatpush.msra.mxu0 %v3001
        %v3003 = vand.u32 %v436, 4294901760
        %3004 = vmatpush.msra.mxu0 %v3003
        %v3005 = vand.u32 %v423, 4294901760
        %3006 = vmatpush.msra.mxu0 %v3005
        %v3007 = vand.u32 %v416, 4294901760
        %3008 = vmatmul.f32.gmra.mxu0 %v3007
        %v3009 = vpop.f32.mrf.mxu0
        %v3010 = vadd.f32 %v2973, %v3009
        %3011 = vdwg.mxu0
        %v3012 = vand.u32 %v619, 4294901760
        %3013 = vmatpush.msra.mxu0 %v3012
        %v3014 = vand.u32 %v606, 4294901760
        %3015 = vmatpush.msra.mxu0 %v3014
        %v3016 = vand.u32 %v593, 4294901760
        %3017 = vmatpush.msra.mxu0 %v3016
        %v3018 = vand.u32 %v580, 4294901760
        %3019 = vmatpush.msra.mxu0 %v3018
        %v3020 = vand.u32 %v567, 4294901760
        %3021 = vmatpush.msra.mxu0 %v3020
        %v3022 = vand.u32 %v554, 4294901760
        %3023 = vmatpush.msra.mxu0 %v3022
        %v3024 = vand.u32 %v541, 4294901760
        %3025 = vmatpush.msra.mxu0 %v3024
        %v3026 = vand.u32 %v528, 4294901760
        %3027 = vmatpush.msra.mxu0 %v3026
        %v3028 = vand.u32 %v515, 4294901760
        %3029 = vmatpush.msra.mxu0 %v3028
        %v3030 = vand.u32 %v502, 4294901760
        %3031 = vmatpush.msra.mxu0 %v3030
        %v3032 = vand.u32 %v489, 4294901760
        %3033 = vmatpush.msra.mxu0 %v3032
        %v3034 = vand.u32 %v476, 4294901760
        %3035 = vmatpush.msra.mxu0 %v3034
        %v3036 = vand.u32 %v463, 4294901760
        %3037 = vmatpush.msra.mxu0 %v3036
        %v3038 = vand.u32 %v450, 4294901760
        %3039 = vmatpush.msra.mxu0 %v3038
        %v3040 = vand.u32 %v437, 4294901760
        %3041 = vmatpush.msra.mxu0 %v3040
        %v3042 = vand.u32 %v424, 4294901760
        %3043 = vmatpush.msra.mxu0 %v3042
        %v3044 = vand.u32 %v416, 4294901760
        %v3045 = vsub.f32 %v416, %v3044
        %v3046 = vand.u32 %v3045, 4294901760
        %v3047 = vsub.f32 %v3045, %v3046
        %v3048 = vand.u32 %v3047, 4294901760
        %3049 = vmatmul.f32.gmra.mxu0 %v3048
        %v3050 = vpop.f32.mrf.mxu0
        %v3051 = vadd.f32 0.0, %v3050
        %3052 = vdwg.mxu0
        %v3053 = vand.u32 %v619, 4294901760
        %v3054 = vsub.f32 %v619, %v3053
        %v3055 = vand.u32 %v3054, 4294901760
        %v3056 = vsub.f32 %v3054, %v3055
        %v3057 = vand.u32 %v3056, 4294901760
        %3058 = vmatpush.msra.mxu0 %v3057
        %v3059 = vand.u32 %v606, 4294901760
        %v3060 = vsub.f32 %v606, %v3059
        %v3061 = vand.u32 %v3060, 4294901760
        %v3062 = vsub.f32 %v3060, %v3061
        %v3063 = vand.u32 %v3062, 4294901760
        %3064 = vmatpush.msra.mxu0 %v3063
        %v3065 = vand.u32 %v593, 4294901760
        %v3066 = vsub.f32 %v593, %v3065
        %v3067 = vand.u32 %v3066, 4294901760
        %v3068 = vsub.f32 %v3066, %v3067
        %v3069 = vand.u32 %v3068, 4294901760
        %3070 = vmatpush.msra.mxu0 %v3069
        %v3071 = vand.u32 %v580, 4294901760
        %v3072 = vsub.f32 %v580, %v3071
        %v3073 = vand.u32 %v3072, 4294901760
        %v3074 = vsub.f32 %v3072, %v3073
        %v3075 = vand.u32 %v3074, 4294901760
        %3076 = vmatpush.msra.mxu0 %v3075
        %v3077 = vand.u32 %v567, 4294901760
        %v3078 = vsub.f32 %v567, %v3077
        %v3079 = vand.u32 %v3078, 4294901760
        %v3080 = vsub.f32 %v3078, %v3079
        %v3081 = vand.u32 %v3080, 4294901760
        %3082 = vmatpush.msra.mxu0 %v3081
        %v3083 = vand.u32 %v554, 4294901760
        %v3084 = vsub.f32 %v554, %v3083
        %v3085 = vand.u32 %v3084, 4294901760
        %v3086 = vsub.f32 %v3084, %v3085
        %v3087 = vand.u32 %v3086, 4294901760
        %3088 = vmatpush.msra.mxu0 %v3087
        %v3089 = vand.u32 %v541, 4294901760
        %v3090 = vsub.f32 %v541, %v3089
        %v3091 = vand.u32 %v3090, 4294901760
        %v3092 = vsub.f32 %v3090, %v3091
        %v3093 = vand.u32 %v3092, 4294901760
        %3094 = vmatpush.msra.mxu0 %v3093
        %v3095 = vand.u32 %v528, 4294901760
        %v3096 = vsub.f32 %v528, %v3095
        %v3097 = vand.u32 %v3096, 4294901760
        %v3098 = vsub.f32 %v3096, %v3097
        %v3099 = vand.u32 %v3098, 4294901760
        %3100 = vmatpush.msra.mxu0 %v3099
        %v3101 = vand.u32 %v515, 4294901760
        %v3102 = vsub.f32 %v515, %v3101
        %v3103 = vand.u32 %v3102, 4294901760
        %v3104 = vsub.f32 %v3102, %v3103
        %v3105 = vand.u32 %v3104, 4294901760
        %3106 = vmatpush.msra.mxu0 %v3105
        %v3107 = vand.u32 %v502, 4294901760
        %v3108 = vsub.f32 %v502, %v3107
        %v3109 = vand.u32 %v3108, 4294901760
        %v3110 = vsub.f32 %v3108, %v3109
        %v3111 = vand.u32 %v3110, 4294901760
        %3112 = vmatpush.msra.mxu0 %v3111
        %v3113 = vand.u32 %v489, 4294901760
        %v3114 = vsub.f32 %v489, %v3113
        %v3115 = vand.u32 %v3114, 4294901760
        %v3116 = vsub.f32 %v3114, %v3115
        %v3117 = vand.u32 %v3116, 4294901760
        %3118 = vmatpush.msra.mxu0 %v3117
        %v3119 = vand.u32 %v476, 4294901760
        %v3120 = vsub.f32 %v476, %v3119
        %v3121 = vand.u32 %v3120, 4294901760
        %v3122 = vsub.f32 %v3120, %v3121
        %v3123 = vand.u32 %v3122, 4294901760
        %3124 = vmatpush.msra.mxu0 %v3123
        %v3125 = vand.u32 %v463, 4294901760
        %v3126 = vsub.f32 %v463, %v3125
        %v3127 = vand.u32 %v3126, 4294901760
        %v3128 = vsub.f32 %v3126, %v3127
        %v3129 = vand.u32 %v3128, 4294901760
        %3130 = vmatpush.msra.mxu0 %v3129
        %v3131 = vand.u32 %v450, 4294901760
        %v3132 = vsub.f32 %v450, %v3131
        %v3133 = vand.u32 %v3132, 4294901760
        %v3134 = vsub.f32 %v3132, %v3133
        %v3135 = vand.u32 %v3134, 4294901760
        %3136 = vmatpush.msra.mxu0 %v3135
        %v3137 = vand.u32 %v437, 4294901760
        %v3138 = vsub.f32 %v437, %v3137
        %v3139 = vand.u32 %v3138, 4294901760
        %v3140 = vsub.f32 %v3138, %v3139
        %v3141 = vand.u32 %v3140, 4294901760
        %3142 = vmatpush.msra.mxu0 %v3141
        %v3143 = vand.u32 %v424, 4294901760
        %v3144 = vsub.f32 %v424, %v3143
        %v3145 = vand.u32 %v3144, 4294901760
        %v3146 = vsub.f32 %v3144, %v3145
        %v3147 = vand.u32 %v3146, 4294901760
        %3148 = vmatpush.msra.mxu0 %v3147
        %v3149 = vand.u32 %v416, 4294901760
        %3150 = vmatmul.f32.gmra.mxu0 %v3149
        %v3151 = vpop.f32.mrf.mxu0
        %v3152 = vadd.f32 %v3051, %v3151
        %3153 = vdwg.mxu0
        %v3154 = vand.u32 %v619, 4294901760
        %v3155 = vsub.f32 %v619, %v3154
        %3156 = vmatpush.msra.mxu0 %v3155
        %v3157 = vand.u32 %v606, 4294901760
        %v3158 = vsub.f32 %v606, %v3157
        %3159 = vmatpush.msra.mxu0 %v3158
        %v3160 = vand.u32 %v593, 4294901760
        %v3161 = vsub.f32 %v593, %v3160
        %3162 = vmatpush.msra.mxu0 %v3161
        %v3163 = vand.u32 %v580, 4294901760
        %v3164 = vsub.f32 %v580, %v3163
        %3165 = vmatpush.msra.mxu0 %v3164
        %v3166 = vand.u32 %v567, 4294901760
        %v3167 = vsub.f32 %v567, %v3166
        %3168 = vmatpush.msra.mxu0 %v3167
        %v3169 = vand.u32 %v554, 4294901760
        %v3170 = vsub.f32 %v554, %v3169
        %3171 = vmatpush.msra.mxu0 %v3170
        %v3172 = vand.u32 %v541, 4294901760
        %v3173 = vsub.f32 %v541, %v3172
        %3174 = vmatpush.msra.mxu0 %v3173
        %v3175 = vand.u32 %v528, 4294901760
        %v3176 = vsub.f32 %v528, %v3175
        %3177 = vmatpush.msra.mxu0 %v3176
        %v3178 = vand.u32 %v515, 4294901760
        %v3179 = vsub.f32 %v515, %v3178
        %3180 = vmatpush.msra.mxu0 %v3179
        %v3181 = vand.u32 %v502, 4294901760
        %v3182 = vsub.f32 %v502, %v3181
        %3183 = vmatpush.msra.mxu0 %v3182
        %v3184 = vand.u32 %v489, 4294901760
        %v3185 = vsub.f32 %v489, %v3184
        %3186 = vmatpush.msra.mxu0 %v3185
        %v3187 = vand.u32 %v476, 4294901760
        %v3188 = vsub.f32 %v476, %v3187
        %3189 = vmatpush.msra.mxu0 %v3188
        %v3190 = vand.u32 %v463, 4294901760
        %v3191 = vsub.f32 %v463, %v3190
        %3192 = vmatpush.msra.mxu0 %v3191
        %v3193 = vand.u32 %v450, 4294901760
        %v3194 = vsub.f32 %v450, %v3193
        %3195 = vmatpush.msra.mxu0 %v3194
        %v3196 = vand.u32 %v437, 4294901760
        %v3197 = vsub.f32 %v437, %v3196
        %3198 = vmatpush.msra.mxu0 %v3197
        %v3199 = vand.u32 %v424, 4294901760
        %v3200 = vsub.f32 %v424, %v3199
        %3201 = vmatpush.msra.mxu0 %v3200
        %v3202 = vand.u32 %v416, 4294901760
        %v3203 = vsub.f32 %v416, %v3202
        %3204 = vmatmul.f32.gmra.mxu0 %v3203
        %v3205 = vpop.f32.mrf.mxu0
        %v3206 = vadd.f32 %v3152, %v3205
        %3207 = vdwg.mxu0
        %v3208 = vand.u32 %v619, 4294901760
        %3209 = vmatpush.msra.mxu0 %v3208
        %v3210 = vand.u32 %v606, 4294901760
        %3211 = vmatpush.msra.mxu0 %v3210
        %v3212 = vand.u32 %v593, 4294901760
        %3213 = vmatpush.msra.mxu0 %v3212
        %v3214 = vand.u32 %v580, 4294901760
        %3215 = vmatpush.msra.mxu0 %v3214
        %v3216 = vand.u32 %v567, 4294901760
        %3217 = vmatpush.msra.mxu0 %v3216
        %v3218 = vand.u32 %v554, 4294901760
        %3219 = vmatpush.msra.mxu0 %v3218
        %v3220 = vand.u32 %v541, 4294901760
        %3221 = vmatpush.msra.mxu0 %v3220
        %v3222 = vand.u32 %v528, 4294901760
        %3223 = vmatpush.msra.mxu0 %v3222
        %v3224 = vand.u32 %v515, 4294901760
        %3225 = vmatpush.msra.mxu0 %v3224
        %v3226 = vand.u32 %v502, 4294901760
        %3227 = vmatpush.msra.mxu0 %v3226
        %v3228 = vand.u32 %v489, 4294901760
        %3229 = vmatpush.msra.mxu0 %v3228
        %v3230 = vand.u32 %v476, 4294901760
        %3231 = vmatpush.msra.mxu0 %v3230
        %v3232 = vand.u32 %v463, 4294901760
        %3233 = vmatpush.msra.mxu0 %v3232
        %v3234 = vand.u32 %v450, 4294901760
        %3235 = vmatpush.msra.mxu0 %v3234
        %v3236 = vand.u32 %v437, 4294901760
        %3237 = vmatpush.msra.mxu0 %v3236
        %v3238 = vand.u32 %v424, 4294901760
        %3239 = vmatpush.msra.mxu0 %v3238
        %v3240 = vand.u32 %v416, 4294901760
        %v3241 = vsub.f32 %v416, %v3240
        %v3242 = vand.u32 %v3241, 4294901760
        %3243 = vmatmul.f32.gmra.mxu0 %v3242
        %v3244 = vpop.f32.mrf.mxu0
        %v3245 = vadd.f32 %v3206, %v3244
        %3246 = vdwg.mxu0
        %v3247 = vand.u32 %v619, 4294901760
        %v3248 = vsub.f32 %v619, %v3247
        %v3249 = vand.u32 %v3248, 4294901760
        %3250 = vmatpush.msra.mxu0 %v3249
        %v3251 = vand.u32 %v606, 4294901760
        %v3252 = vsub.f32 %v606, %v3251
        %v3253 = vand.u32 %v3252, 4294901760
        %3254 = vmatpush.msra.mxu0 %v3253
        %v3255 = vand.u32 %v593, 4294901760
        %v3256 = vsub.f32 %v593, %v3255
        %v3257 = vand.u32 %v3256, 4294901760
        %3258 = vmatpush.msra.mxu0 %v3257
        %v3259 = vand.u32 %v580, 4294901760
        %v3260 = vsub.f32 %v580, %v3259
        %v3261 = vand.u32 %v3260, 4294901760
        %3262 = vmatpush.msra.mxu0 %v3261
        %v3263 = vand.u32 %v567, 4294901760
        %v3264 = vsub.f32 %v567, %v3263
        %v3265 = vand.u32 %v3264, 4294901760
        %3266 = vmatpush.msra.mxu0 %v3265
        %v3267 = vand.u32 %v554, 4294901760
        %v3268 = vsub.f32 %v554, %v3267
        %v3269 = vand.u32 %v3268, 4294901760
        %3270 = vmatpush.msra.mxu0 %v3269
        %v3271 = vand.u32 %v541, 4294901760
        %v3272 = vsub.f32 %v541, %v3271
        %v3273 = vand.u32 %v3272, 4294901760
        %3274 = vmatpush.msra.mxu0 %v3273
        %v3275 = vand.u32 %v528, 4294901760
        %v3276 = vsub.f32 %v528, %v3275
        %v3277 = vand.u32 %v3276, 4294901760
        %3278 = vmatpush.msra.mxu0 %v3277
        %v3279 = vand.u32 %v515, 4294901760
        %v3280 = vsub.f32 %v515, %v3279
        %v3281 = vand.u32 %v3280, 4294901760
        %3282 = vmatpush.msra.mxu0 %v3281
        %v3283 = vand.u32 %v502, 4294901760
        %v3284 = vsub.f32 %v502, %v3283
        %v3285 = vand.u32 %v3284, 4294901760
        %3286 = vmatpush.msra.mxu0 %v3285
        %v3287 = vand.u32 %v489, 4294901760
        %v3288 = vsub.f32 %v489, %v3287
        %v3289 = vand.u32 %v3288, 4294901760
        %3290 = vmatpush.msra.mxu0 %v3289
        %v3291 = vand.u32 %v476, 4294901760
        %v3292 = vsub.f32 %v476, %v3291
        %v3293 = vand.u32 %v3292, 4294901760
        %3294 = vmatpush.msra.mxu0 %v3293
        %v3295 = vand.u32 %v463, 4294901760
        %v3296 = vsub.f32 %v463, %v3295
        %v3297 = vand.u32 %v3296, 4294901760
        %3298 = vmatpush.msra.mxu0 %v3297
        %v3299 = vand.u32 %v450, 4294901760
        %v3300 = vsub.f32 %v450, %v3299
        %v3301 = vand.u32 %v3300, 4294901760
        %3302 = vmatpush.msra.mxu0 %v3301
        %v3303 = vand.u32 %v437, 4294901760
        %v3304 = vsub.f32 %v437, %v3303
        %v3305 = vand.u32 %v3304, 4294901760
        %3306 = vmatpush.msra.mxu0 %v3305
        %v3307 = vand.u32 %v424, 4294901760
        %v3308 = vsub.f32 %v424, %v3307
        %v3309 = vand.u32 %v3308, 4294901760
        %3310 = vmatpush.msra.mxu0 %v3309
        %v3311 = vand.u32 %v416, 4294901760
        %3312 = vmatmul.f32.gmra.mxu0 %v3311
        %v3313 = vpop.f32.mrf.mxu0
        %v3314 = vadd.f32 %v3245, %v3313
        %3315 = vdwg.mxu0
        %v3316 = vand.u32 %v619, 4294901760
        %3317 = vmatpush.msra.mxu0 %v3316
        %v3318 = vand.u32 %v606, 4294901760
        %3319 = vmatpush.msra.mxu0 %v3318
        %v3320 = vand.u32 %v593, 4294901760
        %3321 = vmatpush.msra.mxu0 %v3320
        %v3322 = vand.u32 %v580, 4294901760
        %3323 = vmatpush.msra.mxu0 %v3322
        %v3324 = vand.u32 %v567, 4294901760
        %3325 = vmatpush.msra.mxu0 %v3324
        %v3326 = vand.u32 %v554, 4294901760
        %3327 = vmatpush.msra.mxu0 %v3326
        %v3328 = vand.u32 %v541, 4294901760
        %3329 = vmatpush.msra.mxu0 %v3328
        %v3330 = vand.u32 %v528, 4294901760
        %3331 = vmatpush.msra.mxu0 %v3330
        %v3332 = vand.u32 %v515, 4294901760
        %3333 = vmatpush.msra.mxu0 %v3332
        %v3334 = vand.u32 %v502, 4294901760
        %3335 = vmatpush.msra.mxu0 %v3334
        %v3336 = vand.u32 %v489, 4294901760
        %3337 = vmatpush.msra.mxu0 %v3336
        %v3338 = vand.u32 %v476, 4294901760
        %3339 = vmatpush.msra.mxu0 %v3338
        %v3340 = vand.u32 %v463, 4294901760
        %3341 = vmatpush.msra.mxu0 %v3340
        %v3342 = vand.u32 %v450, 4294901760
        %3343 = vmatpush.msra.mxu0 %v3342
        %v3344 = vand.u32 %v437, 4294901760
        %3345 = vmatpush.msra.mxu0 %v3344
        %v3346 = vand.u32 %v424, 4294901760
        %3347 = vmatpush.msra.mxu0 %v3346
        %v3348 = vand.u32 %v416, 4294901760
        %3349 = vmatmul.f32.gmra.mxu0 %v3348
        %v3350 = vpop.f32.mrf.mxu0
        %v3351 = vadd.f32 %v3314, %v3350
        %3352 = vdwg.mxu0
        %v3353 = vand.u32 %v620, 4294901760
        %3354 = vmatpush.msra.mxu0 %v3353
        %v3355 = vand.u32 %v607, 4294901760
        %3356 = vmatpush.msra.mxu0 %v3355
        %v3357 = vand.u32 %v594, 4294901760
        %3358 = vmatpush.msra.mxu0 %v3357
        %v3359 = vand.u32 %v581, 4294901760
        %3360 = vmatpush.msra.mxu0 %v3359
        %v3361 = vand.u32 %v568, 4294901760
        %3362 = vmatpush.msra.mxu0 %v3361
        %v3363 = vand.u32 %v555, 4294901760
        %3364 = vmatpush.msra.mxu0 %v3363
        %v3365 = vand.u32 %v542, 4294901760
        %3366 = vmatpush.msra.mxu0 %v3365
        %v3367 = vand.u32 %v529, 4294901760
        %3368 = vmatpush.msra.mxu0 %v3367
        %v3369 = vand.u32 %v516, 4294901760
        %3370 = vmatpush.msra.mxu0 %v3369
        %v3371 = vand.u32 %v503, 4294901760
        %3372 = vmatpush.msra.mxu0 %v3371
        %v3373 = vand.u32 %v490, 4294901760
        %3374 = vmatpush.msra.mxu0 %v3373
        %v3375 = vand.u32 %v477, 4294901760
        %3376 = vmatpush.msra.mxu0 %v3375
        %v3377 = vand.u32 %v464, 4294901760
        %3378 = vmatpush.msra.mxu0 %v3377
        %v3379 = vand.u32 %v451, 4294901760
        %3380 = vmatpush.msra.mxu0 %v3379
        %v3381 = vand.u32 %v438, 4294901760
        %3382 = vmatpush.msra.mxu0 %v3381
        %v3383 = vand.u32 %v425, 4294901760
        %3384 = vmatpush.msra.mxu0 %v3383
        %v3385 = vand.u32 %v416, 4294901760
        %v3386 = vsub.f32 %v416, %v3385
        %v3387 = vand.u32 %v3386, 4294901760
        %v3388 = vsub.f32 %v3386, %v3387
        %v3389 = vand.u32 %v3388, 4294901760
        %3390 = vmatmul.f32.gmra.mxu0 %v3389
        %v3391 = vpop.f32.mrf.mxu0
        %v3392 = vadd.f32 0.0, %v3391
        %3393 = vdwg.mxu0
        %v3394 = vand.u32 %v620, 4294901760
        %v3395 = vsub.f32 %v620, %v3394
        %v3396 = vand.u32 %v3395, 4294901760
        %v3397 = vsub.f32 %v3395, %v3396
        %v3398 = vand.u32 %v3397, 4294901760
        %3399 = vmatpush.msra.mxu0 %v3398
        %v3400 = vand.u32 %v607, 4294901760
        %v3401 = vsub.f32 %v607, %v3400
        %v3402 = vand.u32 %v3401, 4294901760
        %v3403 = vsub.f32 %v3401, %v3402
        %v3404 = vand.u32 %v3403, 4294901760
        %3405 = vmatpush.msra.mxu0 %v3404
        %v3406 = vand.u32 %v594, 4294901760
        %v3407 = vsub.f32 %v594, %v3406
        %v3408 = vand.u32 %v3407, 4294901760
        %v3409 = vsub.f32 %v3407, %v3408
        %v3410 = vand.u32 %v3409, 4294901760
        %3411 = vmatpush.msra.mxu0 %v3410
        %v3412 = vand.u32 %v581, 4294901760
        %v3413 = vsub.f32 %v581, %v3412
        %v3414 = vand.u32 %v3413, 4294901760
        %v3415 = vsub.f32 %v3413, %v3414
        %v3416 = vand.u32 %v3415, 4294901760
        %3417 = vmatpush.msra.mxu0 %v3416
        %v3418 = vand.u32 %v568, 4294901760
        %v3419 = vsub.f32 %v568, %v3418
        %v3420 = vand.u32 %v3419, 4294901760
        %v3421 = vsub.f32 %v3419, %v3420
        %v3422 = vand.u32 %v3421, 4294901760
        %3423 = vmatpush.msra.mxu0 %v3422
        %v3424 = vand.u32 %v555, 4294901760
        %v3425 = vsub.f32 %v555, %v3424
        %v3426 = vand.u32 %v3425, 4294901760
        %v3427 = vsub.f32 %v3425, %v3426
        %v3428 = vand.u32 %v3427, 4294901760
        %3429 = vmatpush.msra.mxu0 %v3428
        %v3430 = vand.u32 %v542, 4294901760
        %v3431 = vsub.f32 %v542, %v3430
        %v3432 = vand.u32 %v3431, 4294901760
        %v3433 = vsub.f32 %v3431, %v3432
        %v3434 = vand.u32 %v3433, 4294901760
        %3435 = vmatpush.msra.mxu0 %v3434
        %v3436 = vand.u32 %v529, 4294901760
        %v3437 = vsub.f32 %v529, %v3436
        %v3438 = vand.u32 %v3437, 4294901760
        %v3439 = vsub.f32 %v3437, %v3438
        %v3440 = vand.u32 %v3439, 4294901760
        %3441 = vmatpush.msra.mxu0 %v3440
        %v3442 = vand.u32 %v516, 4294901760
        %v3443 = vsub.f32 %v516, %v3442
        %v3444 = vand.u32 %v3443, 4294901760
        %v3445 = vsub.f32 %v3443, %v3444
        %v3446 = vand.u32 %v3445, 4294901760
        %3447 = vmatpush.msra.mxu0 %v3446
        %v3448 = vand.u32 %v503, 4294901760
        %v3449 = vsub.f32 %v503, %v3448
        %v3450 = vand.u32 %v3449, 4294901760
        %v3451 = vsub.f32 %v3449, %v3450
        %v3452 = vand.u32 %v3451, 4294901760
        %3453 = vmatpush.msra.mxu0 %v3452
        %v3454 = vand.u32 %v490, 4294901760
        %v3455 = vsub.f32 %v490, %v3454
        %v3456 = vand.u32 %v3455, 4294901760
        %v3457 = vsub.f32 %v3455, %v3456
        %v3458 = vand.u32 %v3457, 4294901760
        %3459 = vmatpush.msra.mxu0 %v3458
        %v3460 = vand.u32 %v477, 4294901760
        %v3461 = vsub.f32 %v477, %v3460
        %v3462 = vand.u32 %v3461, 4294901760
        %v3463 = vsub.f32 %v3461, %v3462
        %v3464 = vand.u32 %v3463, 4294901760
        %3465 = vmatpush.msra.mxu0 %v3464
        %v3466 = vand.u32 %v464, 4294901760
        %v3467 = vsub.f32 %v464, %v3466
        %v3468 = vand.u32 %v3467, 4294901760
        %v3469 = vsub.f32 %v3467, %v3468
        %v3470 = vand.u32 %v3469, 4294901760
        %3471 = vmatpush.msra.mxu0 %v3470
        %v3472 = vand.u32 %v451, 4294901760
        %v3473 = vsub.f32 %v451, %v3472
        %v3474 = vand.u32 %v3473, 4294901760
        %v3475 = vsub.f32 %v3473, %v3474
        %v3476 = vand.u32 %v3475, 4294901760
        %3477 = vmatpush.msra.mxu0 %v3476
        %v3478 = vand.u32 %v438, 4294901760
        %v3479 = vsub.f32 %v438, %v3478
        %v3480 = vand.u32 %v3479, 4294901760
        %v3481 = vsub.f32 %v3479, %v3480
        %v3482 = vand.u32 %v3481, 4294901760
        %3483 = vmatpush.msra.mxu0 %v3482
        %v3484 = vand.u32 %v425, 4294901760
        %v3485 = vsub.f32 %v425, %v3484
        %v3486 = vand.u32 %v3485, 4294901760
        %v3487 = vsub.f32 %v3485, %v3486
        %v3488 = vand.u32 %v3487, 4294901760
        %3489 = vmatpush.msra.mxu0 %v3488
        %v3490 = vand.u32 %v416, 4294901760
        %3491 = vmatmul.f32.gmra.mxu0 %v3490
        %v3492 = vpop.f32.mrf.mxu0
        %v3493 = vadd.f32 %v3392, %v3492
        %3494 = vdwg.mxu0
        %v3495 = vand.u32 %v620, 4294901760
        %v3496 = vsub.f32 %v620, %v3495
        %3497 = vmatpush.msra.mxu0 %v3496
        %v3498 = vand.u32 %v607, 4294901760
        %v3499 = vsub.f32 %v607, %v3498
        %3500 = vmatpush.msra.mxu0 %v3499
        %v3501 = vand.u32 %v594, 4294901760
        %v3502 = vsub.f32 %v594, %v3501
        %3503 = vmatpush.msra.mxu0 %v3502
        %v3504 = vand.u32 %v581, 4294901760
        %v3505 = vsub.f32 %v581, %v3504
        %3506 = vmatpush.msra.mxu0 %v3505
        %v3507 = vand.u32 %v568, 4294901760
        %v3508 = vsub.f32 %v568, %v3507
        %3509 = vmatpush.msra.mxu0 %v3508
        %v3510 = vand.u32 %v555, 4294901760
        %v3511 = vsub.f32 %v555, %v3510
        %3512 = vmatpush.msra.mxu0 %v3511
        %v3513 = vand.u32 %v542, 4294901760
        %v3514 = vsub.f32 %v542, %v3513
        %3515 = vmatpush.msra.mxu0 %v3514
        %v3516 = vand.u32 %v529, 4294901760
        %v3517 = vsub.f32 %v529, %v3516
        %3518 = vmatpush.msra.mxu0 %v3517
        %v3519 = vand.u32 %v516, 4294901760
        %v3520 = vsub.f32 %v516, %v3519
        %3521 = vmatpush.msra.mxu0 %v3520
        %v3522 = vand.u32 %v503, 4294901760
        %v3523 = vsub.f32 %v503, %v3522
        %3524 = vmatpush.msra.mxu0 %v3523
        %v3525 = vand.u32 %v490, 4294901760
        %v3526 = vsub.f32 %v490, %v3525
        %3527 = vmatpush.msra.mxu0 %v3526
        %v3528 = vand.u32 %v477, 4294901760
        %v3529 = vsub.f32 %v477, %v3528
        %3530 = vmatpush.msra.mxu0 %v3529
        %v3531 = vand.u32 %v464, 4294901760
        %v3532 = vsub.f32 %v464, %v3531
        %3533 = vmatpush.msra.mxu0 %v3532
        %v3534 = vand.u32 %v451, 4294901760
        %v3535 = vsub.f32 %v451, %v3534
        %3536 = vmatpush.msra.mxu0 %v3535
        %v3537 = vand.u32 %v438, 4294901760
        %v3538 = vsub.f32 %v438, %v3537
        %3539 = vmatpush.msra.mxu0 %v3538
        %v3540 = vand.u32 %v425, 4294901760
        %v3541 = vsub.f32 %v425, %v3540
        %3542 = vmatpush.msra.mxu0 %v3541
        %v3543 = vand.u32 %v416, 4294901760
        %v3544 = vsub.f32 %v416, %v3543
        %3545 = vmatmul.f32.gmra.mxu0 %v3544
        %v3546 = vpop.f32.mrf.mxu0
        %v3547 = vadd.f32 %v3493, %v3546
        %3548 = vdwg.mxu0
        %v3549 = vand.u32 %v620, 4294901760
        %3550 = vmatpush.msra.mxu0 %v3549
        %v3551 = vand.u32 %v607, 4294901760
        %3552 = vmatpush.msra.mxu0 %v3551
        %v3553 = vand.u32 %v594, 4294901760
        %3554 = vmatpush.msra.mxu0 %v3553
        %v3555 = vand.u32 %v581, 4294901760
        %3556 = vmatpush.msra.mxu0 %v3555
        %v3557 = vand.u32 %v568, 4294901760
        %3558 = vmatpush.msra.mxu0 %v3557
        %v3559 = vand.u32 %v555, 4294901760
        %3560 = vmatpush.msra.mxu0 %v3559
        %v3561 = vand.u32 %v542, 4294901760
        %3562 = vmatpush.msra.mxu0 %v3561
        %v3563 = vand.u32 %v529, 4294901760
        %3564 = vmatpush.msra.mxu0 %v3563
        %v3565 = vand.u32 %v516, 4294901760
        %3566 = vmatpush.msra.mxu0 %v3565
        %v3567 = vand.u32 %v503, 4294901760
        %3568 = vmatpush.msra.mxu0 %v3567
        %v3569 = vand.u32 %v490, 4294901760
        %3570 = vmatpush.msra.mxu0 %v3569
        %v3571 = vand.u32 %v477, 4294901760
        %3572 = vmatpush.msra.mxu0 %v3571
        %v3573 = vand.u32 %v464, 4294901760
        %3574 = vmatpush.msra.mxu0 %v3573
        %v3575 = vand.u32 %v451, 4294901760
        %3576 = vmatpush.msra.mxu0 %v3575
        %v3577 = vand.u32 %v438, 4294901760
        %3578 = vmatpush.msra.mxu0 %v3577
        %v3579 = vand.u32 %v425, 4294901760
        %3580 = vmatpush.msra.mxu0 %v3579
        %v3581 = vand.u32 %v416, 4294901760
        %v3582 = vsub.f32 %v416, %v3581
        %v3583 = vand.u32 %v3582, 4294901760
        %3584 = vmatmul.f32.gmra.mxu0 %v3583
        %v3585 = vpop.f32.mrf.mxu0
        %v3586 = vadd.f32 %v3547, %v3585
        %3587 = vdwg.mxu0
        %v3588 = vand.u32 %v620, 4294901760
        %v3589 = vsub.f32 %v620, %v3588
        %v3590 = vand.u32 %v3589, 4294901760
        %3591 = vmatpush.msra.mxu0 %v3590
        %v3592 = vand.u32 %v607, 4294901760
        %v3593 = vsub.f32 %v607, %v3592
        %v3594 = vand.u32 %v3593, 4294901760
        %3595 = vmatpush.msra.mxu0 %v3594
        %v3596 = vand.u32 %v594, 4294901760
        %v3597 = vsub.f32 %v594, %v3596
        %v3598 = vand.u32 %v3597, 4294901760
        %3599 = vmatpush.msra.mxu0 %v3598
        %v3600 = vand.u32 %v581, 4294901760
        %v3601 = vsub.f32 %v581, %v3600
        %v3602 = vand.u32 %v3601, 4294901760
        %3603 = vmatpush.msra.mxu0 %v3602
        %v3604 = vand.u32 %v568, 4294901760
        %v3605 = vsub.f32 %v568, %v3604
        %v3606 = vand.u32 %v3605, 4294901760
        %3607 = vmatpush.msra.mxu0 %v3606
        %v3608 = vand.u32 %v555, 4294901760
        %v3609 = vsub.f32 %v555, %v3608
        %v3610 = vand.u32 %v3609, 4294901760
        %3611 = vmatpush.msra.mxu0 %v3610
        %v3612 = vand.u32 %v542, 4294901760
        %v3613 = vsub.f32 %v542, %v3612
        %v3614 = vand.u32 %v3613, 4294901760
        %3615 = vmatpush.msra.mxu0 %v3614
        %v3616 = vand.u32 %v529, 4294901760
        %v3617 = vsub.f32 %v529, %v3616
        %v3618 = vand.u32 %v3617, 4294901760
        %3619 = vmatpush.msra.mxu0 %v3618
        %v3620 = vand.u32 %v516, 4294901760
        %v3621 = vsub.f32 %v516, %v3620
        %v3622 = vand.u32 %v3621, 4294901760
        %3623 = vmatpush.msra.mxu0 %v3622
        %v3624 = vand.u32 %v503, 4294901760
        %v3625 = vsub.f32 %v503, %v3624
        %v3626 = vand.u32 %v3625, 4294901760
        %3627 = vmatpush.msra.mxu0 %v3626
        %v3628 = vand.u32 %v490, 4294901760
        %v3629 = vsub.f32 %v490, %v3628
        %v3630 = vand.u32 %v3629, 4294901760
        %3631 = vmatpush.msra.mxu0 %v3630
        %v3632 = vand.u32 %v477, 4294901760
        %v3633 = vsub.f32 %v477, %v3632
        %v3634 = vand.u32 %v3633, 4294901760
        %3635 = vmatpush.msra.mxu0 %v3634
        %v3636 = vand.u32 %v464, 4294901760
        %v3637 = vsub.f32 %v464, %v3636
        %v3638 = vand.u32 %v3637, 4294901760
        %3639 = vmatpush.msra.mxu0 %v3638
        %v3640 = vand.u32 %v451, 4294901760
        %v3641 = vsub.f32 %v451, %v3640
        %v3642 = vand.u32 %v3641, 4294901760
        %3643 = vmatpush.msra.mxu0 %v3642
        %v3644 = vand.u32 %v438, 4294901760
        %v3645 = vsub.f32 %v438, %v3644
        %v3646 = vand.u32 %v3645, 4294901760
        %3647 = vmatpush.msra.mxu0 %v3646
        %v3648 = vand.u32 %v425, 4294901760
        %v3649 = vsub.f32 %v425, %v3648
        %v3650 = vand.u32 %v3649, 4294901760
        %3651 = vmatpush.msra.mxu0 %v3650
        %v3652 = vand.u32 %v416, 4294901760
        %3653 = vmatmul.f32.gmra.mxu0 %v3652
        %v3654 = vpop.f32.mrf.mxu0
        %v3655 = vadd.f32 %v3586, %v3654
        %3656 = vdwg.mxu0
        %v3657 = vand.u32 %v620, 4294901760
        %3658 = vmatpush.msra.mxu0 %v3657
        %v3659 = vand.u32 %v607, 4294901760
        %3660 = vmatpush.msra.mxu0 %v3659
        %v3661 = vand.u32 %v594, 4294901760
        %3662 = vmatpush.msra.mxu0 %v3661
        %v3663 = vand.u32 %v581, 4294901760
        %3664 = vmatpush.msra.mxu0 %v3663
        %v3665 = vand.u32 %v568, 4294901760
        %3666 = vmatpush.msra.mxu0 %v3665
        %v3667 = vand.u32 %v555, 4294901760
        %3668 = vmatpush.msra.mxu0 %v3667
        %v3669 = vand.u32 %v542, 4294901760
        %3670 = vmatpush.msra.mxu0 %v3669
        %v3671 = vand.u32 %v529, 4294901760
        %3672 = vmatpush.msra.mxu0 %v3671
        %v3673 = vand.u32 %v516, 4294901760
        %3674 = vmatpush.msra.mxu0 %v3673
        %v3675 = vand.u32 %v503, 4294901760
        %3676 = vmatpush.msra.mxu0 %v3675
        %v3677 = vand.u32 %v490, 4294901760
        %3678 = vmatpush.msra.mxu0 %v3677
        %v3679 = vand.u32 %v477, 4294901760
        %3680 = vmatpush.msra.mxu0 %v3679
        %v3681 = vand.u32 %v464, 4294901760
        %3682 = vmatpush.msra.mxu0 %v3681
        %v3683 = vand.u32 %v451, 4294901760
        %3684 = vmatpush.msra.mxu0 %v3683
        %v3685 = vand.u32 %v438, 4294901760
        %3686 = vmatpush.msra.mxu0 %v3685
        %v3687 = vand.u32 %v425, 4294901760
        %3688 = vmatpush.msra.mxu0 %v3687
        %v3689 = vand.u32 %v416, 4294901760
        %3690 = vmatmul.f32.gmra.mxu0 %v3689
        %v3691 = vpop.f32.mrf.mxu0
        %v3692 = vadd.f32 %v3655, %v3691
        %3693 = vdwg.mxu0
        %v3694 = vand.u32 %v621, 4294901760
        %3695 = vmatpush.msra.mxu0 %v3694
        %v3696 = vand.u32 %v608, 4294901760
        %3697 = vmatpush.msra.mxu0 %v3696
        %v3698 = vand.u32 %v595, 4294901760
        %3699 = vmatpush.msra.mxu0 %v3698
        %v3700 = vand.u32 %v582, 4294901760
        %3701 = vmatpush.msra.mxu0 %v3700
        %v3702 = vand.u32 %v569, 4294901760
        %3703 = vmatpush.msra.mxu0 %v3702
        %v3704 = vand.u32 %v556, 4294901760
        %3705 = vmatpush.msra.mxu0 %v3704
        %v3706 = vand.u32 %v543, 4294901760
        %3707 = vmatpush.msra.mxu0 %v3706
        %v3708 = vand.u32 %v530, 4294901760
        %3709 = vmatpush.msra.mxu0 %v3708
        %v3710 = vand.u32 %v517, 4294901760
        %3711 = vmatpush.msra.mxu0 %v3710
        %v3712 = vand.u32 %v504, 4294901760
        %3713 = vmatpush.msra.mxu0 %v3712
        %v3714 = vand.u32 %v491, 4294901760
        %3715 = vmatpush.msra.mxu0 %v3714
        %v3716 = vand.u32 %v478, 4294901760
        %3717 = vmatpush.msra.mxu0 %v3716
        %v3718 = vand.u32 %v465, 4294901760
        %3719 = vmatpush.msra.mxu0 %v3718
        %v3720 = vand.u32 %v452, 4294901760
        %3721 = vmatpush.msra.mxu0 %v3720
        %v3722 = vand.u32 %v439, 4294901760
        %3723 = vmatpush.msra.mxu0 %v3722
        %v3724 = vand.u32 %v426, 4294901760
        %3725 = vmatpush.msra.mxu0 %v3724
        %v3726 = vand.u32 %v416, 4294901760
        %v3727 = vsub.f32 %v416, %v3726
        %v3728 = vand.u32 %v3727, 4294901760
        %v3729 = vsub.f32 %v3727, %v3728
        %v3730 = vand.u32 %v3729, 4294901760
        %3731 = vmatmul.f32.gmra.mxu0 %v3730
        %v3732 = vpop.f32.mrf.mxu0
        %v3733 = vadd.f32 0.0, %v3732
        %3734 = vdwg.mxu0
        %v3735 = vand.u32 %v621, 4294901760
        %v3736 = vsub.f32 %v621, %v3735
        %v3737 = vand.u32 %v3736, 4294901760
        %v3738 = vsub.f32 %v3736, %v3737
        %v3739 = vand.u32 %v3738, 4294901760
        %3740 = vmatpush.msra.mxu0 %v3739
        %v3741 = vand.u32 %v608, 4294901760
        %v3742 = vsub.f32 %v608, %v3741
        %v3743 = vand.u32 %v3742, 4294901760
        %v3744 = vsub.f32 %v3742, %v3743
        %v3745 = vand.u32 %v3744, 4294901760
        %3746 = vmatpush.msra.mxu0 %v3745
        %v3747 = vand.u32 %v595, 4294901760
        %v3748 = vsub.f32 %v595, %v3747
        %v3749 = vand.u32 %v3748, 4294901760
        %v3750 = vsub.f32 %v3748, %v3749
        %v3751 = vand.u32 %v3750, 4294901760
        %3752 = vmatpush.msra.mxu0 %v3751
        %v3753 = vand.u32 %v582, 4294901760
        %v3754 = vsub.f32 %v582, %v3753
        %v3755 = vand.u32 %v3754, 4294901760
        %v3756 = vsub.f32 %v3754, %v3755
        %v3757 = vand.u32 %v3756, 4294901760
        %3758 = vmatpush.msra.mxu0 %v3757
        %v3759 = vand.u32 %v569, 4294901760
        %v3760 = vsub.f32 %v569, %v3759
        %v3761 = vand.u32 %v3760, 4294901760
        %v3762 = vsub.f32 %v3760, %v3761
        %v3763 = vand.u32 %v3762, 4294901760
        %3764 = vmatpush.msra.mxu0 %v3763
        %v3765 = vand.u32 %v556, 4294901760
        %v3766 = vsub.f32 %v556, %v3765
        %v3767 = vand.u32 %v3766, 4294901760
        %v3768 = vsub.f32 %v3766, %v3767
        %v3769 = vand.u32 %v3768, 4294901760
        %3770 = vmatpush.msra.mxu0 %v3769
        %v3771 = vand.u32 %v543, 4294901760
        %v3772 = vsub.f32 %v543, %v3771
        %v3773 = vand.u32 %v3772, 4294901760
        %v3774 = vsub.f32 %v3772, %v3773
        %v3775 = vand.u32 %v3774, 4294901760
        %3776 = vmatpush.msra.mxu0 %v3775
        %v3777 = vand.u32 %v530, 4294901760
        %v3778 = vsub.f32 %v530, %v3777
        %v3779 = vand.u32 %v3778, 4294901760
        %v3780 = vsub.f32 %v3778, %v3779
        %v3781 = vand.u32 %v3780, 4294901760
        %3782 = vmatpush.msra.mxu0 %v3781
        %v3783 = vand.u32 %v517, 4294901760
        %v3784 = vsub.f32 %v517, %v3783
        %v3785 = vand.u32 %v3784, 4294901760
        %v3786 = vsub.f32 %v3784, %v3785
        %v3787 = vand.u32 %v3786, 4294901760
        %3788 = vmatpush.msra.mxu0 %v3787
        %v3789 = vand.u32 %v504, 4294901760
        %v3790 = vsub.f32 %v504, %v3789
        %v3791 = vand.u32 %v3790, 4294901760
        %v3792 = vsub.f32 %v3790, %v3791
        %v3793 = vand.u32 %v3792, 4294901760
        %3794 = vmatpush.msra.mxu0 %v3793
        %v3795 = vand.u32 %v491, 4294901760
        %v3796 = vsub.f32 %v491, %v3795
        %v3797 = vand.u32 %v3796, 4294901760
        %v3798 = vsub.f32 %v3796, %v3797
        %v3799 = vand.u32 %v3798, 4294901760
        %3800 = vmatpush.msra.mxu0 %v3799
        %v3801 = vand.u32 %v478, 4294901760
        %v3802 = vsub.f32 %v478, %v3801
        %v3803 = vand.u32 %v3802, 4294901760
        %v3804 = vsub.f32 %v3802, %v3803
        %v3805 = vand.u32 %v3804, 4294901760
        %3806 = vmatpush.msra.mxu0 %v3805
        %v3807 = vand.u32 %v465, 4294901760
        %v3808 = vsub.f32 %v465, %v3807
        %v3809 = vand.u32 %v3808, 4294901760
        %v3810 = vsub.f32 %v3808, %v3809
        %v3811 = vand.u32 %v3810, 4294901760
        %3812 = vmatpush.msra.mxu0 %v3811
        %v3813 = vand.u32 %v452, 4294901760
        %v3814 = vsub.f32 %v452, %v3813
        %v3815 = vand.u32 %v3814, 4294901760
        %v3816 = vsub.f32 %v3814, %v3815
        %v3817 = vand.u32 %v3816, 4294901760
        %3818 = vmatpush.msra.mxu0 %v3817
        %v3819 = vand.u32 %v439, 4294901760
        %v3820 = vsub.f32 %v439, %v3819
        %v3821 = vand.u32 %v3820, 4294901760
        %v3822 = vsub.f32 %v3820, %v3821
        %v3823 = vand.u32 %v3822, 4294901760
        %3824 = vmatpush.msra.mxu0 %v3823
        %v3825 = vand.u32 %v426, 4294901760
        %v3826 = vsub.f32 %v426, %v3825
        %v3827 = vand.u32 %v3826, 4294901760
        %v3828 = vsub.f32 %v3826, %v3827
        %v3829 = vand.u32 %v3828, 4294901760
        %3830 = vmatpush.msra.mxu0 %v3829
        %v3831 = vand.u32 %v416, 4294901760
        %3832 = vmatmul.f32.gmra.mxu0 %v3831
        %v3833 = vpop.f32.mrf.mxu0
        %v3834 = vadd.f32 %v3733, %v3833
        %3835 = vdwg.mxu0
        %v3836 = vand.u32 %v621, 4294901760
        %v3837 = vsub.f32 %v621, %v3836
        %3838 = vmatpush.msra.mxu0 %v3837
        %v3839 = vand.u32 %v608, 4294901760
        %v3840 = vsub.f32 %v608, %v3839
        %3841 = vmatpush.msra.mxu0 %v3840
        %v3842 = vand.u32 %v595, 4294901760
        %v3843 = vsub.f32 %v595, %v3842
        %3844 = vmatpush.msra.mxu0 %v3843
        %v3845 = vand.u32 %v582, 4294901760
        %v3846 = vsub.f32 %v582, %v3845
        %3847 = vmatpush.msra.mxu0 %v3846
        %v3848 = vand.u32 %v569, 4294901760
        %v3849 = vsub.f32 %v569, %v3848
        %3850 = vmatpush.msra.mxu0 %v3849
        %v3851 = vand.u32 %v556, 4294901760
        %v3852 = vsub.f32 %v556, %v3851
        %3853 = vmatpush.msra.mxu0 %v3852
        %v3854 = vand.u32 %v543, 4294901760
        %v3855 = vsub.f32 %v543, %v3854
        %3856 = vmatpush.msra.mxu0 %v3855
        %v3857 = vand.u32 %v530, 4294901760
        %v3858 = vsub.f32 %v530, %v3857
        %3859 = vmatpush.msra.mxu0 %v3858
        %v3860 = vand.u32 %v517, 4294901760
        %v3861 = vsub.f32 %v517, %v3860
        %3862 = vmatpush.msra.mxu0 %v3861
        %v3863 = vand.u32 %v504, 4294901760
        %v3864 = vsub.f32 %v504, %v3863
        %3865 = vmatpush.msra.mxu0 %v3864
        %v3866 = vand.u32 %v491, 4294901760
        %v3867 = vsub.f32 %v491, %v3866
        %3868 = vmatpush.msra.mxu0 %v3867
        %v3869 = vand.u32 %v478, 4294901760
        %v3870 = vsub.f32 %v478, %v3869
        %3871 = vmatpush.msra.mxu0 %v3870
        %v3872 = vand.u32 %v465, 4294901760
        %v3873 = vsub.f32 %v465, %v3872
        %3874 = vmatpush.msra.mxu0 %v3873
        %v3875 = vand.u32 %v452, 4294901760
        %v3876 = vsub.f32 %v452, %v3875
        %3877 = vmatpush.msra.mxu0 %v3876
        %v3878 = vand.u32 %v439, 4294901760
        %v3879 = vsub.f32 %v439, %v3878
        %3880 = vmatpush.msra.mxu0 %v3879
        %v3881 = vand.u32 %v426, 4294901760
        %v3882 = vsub.f32 %v426, %v3881
        %3883 = vmatpush.msra.mxu0 %v3882
        %v3884 = vand.u32 %v416, 4294901760
        %v3885 = vsub.f32 %v416, %v3884
        %3886 = vmatmul.f32.gmra.mxu0 %v3885
        %v3887 = vpop.f32.mrf.mxu0
        %v3888 = vadd.f32 %v3834, %v3887
        %3889 = vdwg.mxu0
        %v3890 = vand.u32 %v621, 4294901760
        %3891 = vmatpush.msra.mxu0 %v3890
        %v3892 = vand.u32 %v608, 4294901760
        %3893 = vmatpush.msra.mxu0 %v3892
        %v3894 = vand.u32 %v595, 4294901760
        %3895 = vmatpush.msra.mxu0 %v3894
        %v3896 = vand.u32 %v582, 4294901760
        %3897 = vmatpush.msra.mxu0 %v3896
        %v3898 = vand.u32 %v569, 4294901760
        %3899 = vmatpush.msra.mxu0 %v3898
        %v3900 = vand.u32 %v556, 4294901760
        %3901 = vmatpush.msra.mxu0 %v3900
        %v3902 = vand.u32 %v543, 4294901760
        %3903 = vmatpush.msra.mxu0 %v3902
        %v3904 = vand.u32 %v530, 4294901760
        %3905 = vmatpush.msra.mxu0 %v3904
        %v3906 = vand.u32 %v517, 4294901760
        %3907 = vmatpush.msra.mxu0 %v3906
        %v3908 = vand.u32 %v504, 4294901760
        %3909 = vmatpush.msra.mxu0 %v3908
        %v3910 = vand.u32 %v491, 4294901760
        %3911 = vmatpush.msra.mxu0 %v3910
        %v3912 = vand.u32 %v478, 4294901760
        %3913 = vmatpush.msra.mxu0 %v3912
        %v3914 = vand.u32 %v465, 4294901760
        %3915 = vmatpush.msra.mxu0 %v3914
        %v3916 = vand.u32 %v452, 4294901760
        %3917 = vmatpush.msra.mxu0 %v3916
        %v3918 = vand.u32 %v439, 4294901760
        %3919 = vmatpush.msra.mxu0 %v3918
        %v3920 = vand.u32 %v426, 4294901760
        %3921 = vmatpush.msra.mxu0 %v3920
        %v3922 = vand.u32 %v416, 4294901760
        %v3923 = vsub.f32 %v416, %v3922
        %v3924 = vand.u32 %v3923, 4294901760
        %3925 = vmatmul.f32.gmra.mxu0 %v3924
        %v3926 = vpop.f32.mrf.mxu0
        %v3927 = vadd.f32 %v3888, %v3926
        %3928 = vdwg.mxu0
        %v3929 = vand.u32 %v621, 4294901760
        %v3930 = vsub.f32 %v621, %v3929
        %v3931 = vand.u32 %v3930, 4294901760
        %3932 = vmatpush.msra.mxu0 %v3931
        %v3933 = vand.u32 %v608, 4294901760
        %v3934 = vsub.f32 %v608, %v3933
        %v3935 = vand.u32 %v3934, 4294901760
        %3936 = vmatpush.msra.mxu0 %v3935
        %v3937 = vand.u32 %v595, 4294901760
        %v3938 = vsub.f32 %v595, %v3937
        %v3939 = vand.u32 %v3938, 4294901760
        %3940 = vmatpush.msra.mxu0 %v3939
        %v3941 = vand.u32 %v582, 4294901760
        %v3942 = vsub.f32 %v582, %v3941
        %v3943 = vand.u32 %v3942, 4294901760
        %3944 = vmatpush.msra.mxu0 %v3943
        %v3945 = vand.u32 %v569, 4294901760
        %v3946 = vsub.f32 %v569, %v3945
        %v3947 = vand.u32 %v3946, 4294901760
        %3948 = vmatpush.msra.mxu0 %v3947
        %v3949 = vand.u32 %v556, 4294901760
        %v3950 = vsub.f32 %v556, %v3949
        %v3951 = vand.u32 %v3950, 4294901760
        %3952 = vmatpush.msra.mxu0 %v3951
        %v3953 = vand.u32 %v543, 4294901760
        %v3954 = vsub.f32 %v543, %v3953
        %v3955 = vand.u32 %v3954, 4294901760
        %3956 = vmatpush.msra.mxu0 %v3955
        %v3957 = vand.u32 %v530, 4294901760
        %v3958 = vsub.f32 %v530, %v3957
        %v3959 = vand.u32 %v3958, 4294901760
        %3960 = vmatpush.msra.mxu0 %v3959
        %v3961 = vand.u32 %v517, 4294901760
        %v3962 = vsub.f32 %v517, %v3961
        %v3963 = vand.u32 %v3962, 4294901760
        %3964 = vmatpush.msra.mxu0 %v3963
        %v3965 = vand.u32 %v504, 4294901760
        %v3966 = vsub.f32 %v504, %v3965
        %v3967 = vand.u32 %v3966, 4294901760
        %3968 = vmatpush.msra.mxu0 %v3967
        %v3969 = vand.u32 %v491, 4294901760
        %v3970 = vsub.f32 %v491, %v3969
        %v3971 = vand.u32 %v3970, 4294901760
        %3972 = vmatpush.msra.mxu0 %v3971
        %v3973 = vand.u32 %v478, 4294901760
        %v3974 = vsub.f32 %v478, %v3973
        %v3975 = vand.u32 %v3974, 4294901760
        %3976 = vmatpush.msra.mxu0 %v3975
        %v3977 = vand.u32 %v465, 4294901760
        %v3978 = vsub.f32 %v465, %v3977
        %v3979 = vand.u32 %v3978, 4294901760
        %3980 = vmatpush.msra.mxu0 %v3979
        %v3981 = vand.u32 %v452, 4294901760
        %v3982 = vsub.f32 %v452, %v3981
        %v3983 = vand.u32 %v3982, 4294901760
        %3984 = vmatpush.msra.mxu0 %v3983
        %v3985 = vand.u32 %v439, 4294901760
        %v3986 = vsub.f32 %v439, %v3985
        %v3987 = vand.u32 %v3986, 4294901760
        %3988 = vmatpush.msra.mxu0 %v3987
        %v3989 = vand.u32 %v426, 4294901760
        %v3990 = vsub.f32 %v426, %v3989
        %v3991 = vand.u32 %v3990, 4294901760
        %3992 = vmatpush.msra.mxu0 %v3991
        %v3993 = vand.u32 %v416, 4294901760
        %3994 = vmatmul.f32.gmra.mxu0 %v3993
        %v3995 = vpop.f32.mrf.mxu0
        %v3996 = vadd.f32 %v3927, %v3995
        %3997 = vdwg.mxu0
        %v3998 = vand.u32 %v621, 4294901760
        %3999 = vmatpush.msra.mxu0 %v3998
        %v4000 = vand.u32 %v608, 4294901760
        %4001 = vmatpush.msra.mxu0 %v4000
        %v4002 = vand.u32 %v595, 4294901760
        %4003 = vmatpush.msra.mxu0 %v4002
        %v4004 = vand.u32 %v582, 4294901760
        %4005 = vmatpush.msra.mxu0 %v4004
        %v4006 = vand.u32 %v569, 4294901760
        %4007 = vmatpush.msra.mxu0 %v4006
        %v4008 = vand.u32 %v556, 4294901760
        %4009 = vmatpush.msra.mxu0 %v4008
        %v4010 = vand.u32 %v543, 4294901760
        %4011 = vmatpush.msra.mxu0 %v4010
        %v4012 = vand.u32 %v530, 4294901760
        %4013 = vmatpush.msra.mxu0 %v4012
        %v4014 = vand.u32 %v517, 4294901760
        %4015 = vmatpush.msra.mxu0 %v4014
        %v4016 = vand.u32 %v504, 4294901760
        %4017 = vmatpush.msra.mxu0 %v4016
        %v4018 = vand.u32 %v491, 4294901760
        %4019 = vmatpush.msra.mxu0 %v4018
        %v4020 = vand.u32 %v478, 4294901760
        %4021 = vmatpush.msra.mxu0 %v4020
        %v4022 = vand.u32 %v465, 4294901760
        %4023 = vmatpush.msra.mxu0 %v4022
        %v4024 = vand.u32 %v452, 4294901760
        %4025 = vmatpush.msra.mxu0 %v4024
        %v4026 = vand.u32 %v439, 4294901760
        %4027 = vmatpush.msra.mxu0 %v4026
        %v4028 = vand.u32 %v426, 4294901760
        %4029 = vmatpush.msra.mxu0 %v4028
        %v4030 = vand.u32 %v416, 4294901760
        %4031 = vmatmul.f32.gmra.mxu0 %v4030
        %v4032 = vpop.f32.mrf.mxu0
        %v4033 = vadd.f32 %v3996, %v4032
        %4034 = vdwg.mxu0
        %v4035 = vand.u32 %v622, 4294901760
        %4036 = vmatpush.msra.mxu0 %v4035
        %v4037 = vand.u32 %v609, 4294901760
        %4038 = vmatpush.msra.mxu0 %v4037
        %v4039 = vand.u32 %v596, 4294901760
        %4040 = vmatpush.msra.mxu0 %v4039
        %v4041 = vand.u32 %v583, 4294901760
        %4042 = vmatpush.msra.mxu0 %v4041
        %v4043 = vand.u32 %v570, 4294901760
        %4044 = vmatpush.msra.mxu0 %v4043
        %v4045 = vand.u32 %v557, 4294901760
        %4046 = vmatpush.msra.mxu0 %v4045
        %v4047 = vand.u32 %v544, 4294901760
        %4048 = vmatpush.msra.mxu0 %v4047
        %v4049 = vand.u32 %v531, 4294901760
        %4050 = vmatpush.msra.mxu0 %v4049
        %v4051 = vand.u32 %v518, 4294901760
        %4052 = vmatpush.msra.mxu0 %v4051
        %v4053 = vand.u32 %v505, 4294901760
        %4054 = vmatpush.msra.mxu0 %v4053
        %v4055 = vand.u32 %v492, 4294901760
        %4056 = vmatpush.msra.mxu0 %v4055
        %v4057 = vand.u32 %v479, 4294901760
        %4058 = vmatpush.msra.mxu0 %v4057
        %v4059 = vand.u32 %v466, 4294901760
        %4060 = vmatpush.msra.mxu0 %v4059
        %v4061 = vand.u32 %v453, 4294901760
        %4062 = vmatpush.msra.mxu0 %v4061
        %v4063 = vand.u32 %v440, 4294901760
        %4064 = vmatpush.msra.mxu0 %v4063
        %v4065 = vand.u32 %v427, 4294901760
        %4066 = vmatpush.msra.mxu0 %v4065
        %v4067 = vand.u32 %v416, 4294901760
        %v4068 = vsub.f32 %v416, %v4067
        %v4069 = vand.u32 %v4068, 4294901760
        %v4070 = vsub.f32 %v4068, %v4069
        %v4071 = vand.u32 %v4070, 4294901760
        %4072 = vmatmul.f32.gmra.mxu0 %v4071
        %v4073 = vpop.f32.mrf.mxu0
        %v4074 = vadd.f32 0.0, %v4073
        %4075 = vdwg.mxu0
        %v4076 = vand.u32 %v622, 4294901760
        %v4077 = vsub.f32 %v622, %v4076
        %v4078 = vand.u32 %v4077, 4294901760
        %v4079 = vsub.f32 %v4077, %v4078
        %v4080 = vand.u32 %v4079, 4294901760
        %4081 = vmatpush.msra.mxu0 %v4080
        %v4082 = vand.u32 %v609, 4294901760
        %v4083 = vsub.f32 %v609, %v4082
        %v4084 = vand.u32 %v4083, 4294901760
        %v4085 = vsub.f32 %v4083, %v4084
        %v4086 = vand.u32 %v4085, 4294901760
        %4087 = vmatpush.msra.mxu0 %v4086
        %v4088 = vand.u32 %v596, 4294901760
        %v4089 = vsub.f32 %v596, %v4088
        %v4090 = vand.u32 %v4089, 4294901760
        %v4091 = vsub.f32 %v4089, %v4090
        %v4092 = vand.u32 %v4091, 4294901760
        %4093 = vmatpush.msra.mxu0 %v4092
        %v4094 = vand.u32 %v583, 4294901760
        %v4095 = vsub.f32 %v583, %v4094
        %v4096 = vand.u32 %v4095, 4294901760
        %v4097 = vsub.f32 %v4095, %v4096
        %v4098 = vand.u32 %v4097, 4294901760
        %4099 = vmatpush.msra.mxu0 %v4098
        %v4100 = vand.u32 %v570, 4294901760
        %v4101 = vsub.f32 %v570, %v4100
        %v4102 = vand.u32 %v4101, 4294901760
        %v4103 = vsub.f32 %v4101, %v4102
        %v4104 = vand.u32 %v4103, 4294901760
        %4105 = vmatpush.msra.mxu0 %v4104
        %v4106 = vand.u32 %v557, 4294901760
        %v4107 = vsub.f32 %v557, %v4106
        %v4108 = vand.u32 %v4107, 4294901760
        %v4109 = vsub.f32 %v4107, %v4108
        %v4110 = vand.u32 %v4109, 4294901760
        %4111 = vmatpush.msra.mxu0 %v4110
        %v4112 = vand.u32 %v544, 4294901760
        %v4113 = vsub.f32 %v544, %v4112
        %v4114 = vand.u32 %v4113, 4294901760
        %v4115 = vsub.f32 %v4113, %v4114
        %v4116 = vand.u32 %v4115, 4294901760
        %4117 = vmatpush.msra.mxu0 %v4116
        %v4118 = vand.u32 %v531, 4294901760
        %v4119 = vsub.f32 %v531, %v4118
        %v4120 = vand.u32 %v4119, 4294901760
        %v4121 = vsub.f32 %v4119, %v4120
        %v4122 = vand.u32 %v4121, 4294901760
        %4123 = vmatpush.msra.mxu0 %v4122
        %v4124 = vand.u32 %v518, 4294901760
        %v4125 = vsub.f32 %v518, %v4124
        %v4126 = vand.u32 %v4125, 4294901760
        %v4127 = vsub.f32 %v4125, %v4126
        %v4128 = vand.u32 %v4127, 4294901760
        %4129 = vmatpush.msra.mxu0 %v4128
        %v4130 = vand.u32 %v505, 4294901760
        %v4131 = vsub.f32 %v505, %v4130
        %v4132 = vand.u32 %v4131, 4294901760
        %v4133 = vsub.f32 %v4131, %v4132
        %v4134 = vand.u32 %v4133, 4294901760
        %4135 = vmatpush.msra.mxu0 %v4134
        %v4136 = vand.u32 %v492, 4294901760
        %v4137 = vsub.f32 %v492, %v4136
        %v4138 = vand.u32 %v4137, 4294901760
        %v4139 = vsub.f32 %v4137, %v4138
        %v4140 = vand.u32 %v4139, 4294901760
        %4141 = vmatpush.msra.mxu0 %v4140
        %v4142 = vand.u32 %v479, 4294901760
        %v4143 = vsub.f32 %v479, %v4142
        %v4144 = vand.u32 %v4143, 4294901760
        %v4145 = vsub.f32 %v4143, %v4144
        %v4146 = vand.u32 %v4145, 4294901760
        %4147 = vmatpush.msra.mxu0 %v4146
        %v4148 = vand.u32 %v466, 4294901760
        %v4149 = vsub.f32 %v466, %v4148
        %v4150 = vand.u32 %v4149, 4294901760
        %v4151 = vsub.f32 %v4149, %v4150
        %v4152 = vand.u32 %v4151, 4294901760
        %4153 = vmatpush.msra.mxu0 %v4152
        %v4154 = vand.u32 %v453, 4294901760
        %v4155 = vsub.f32 %v453, %v4154
        %v4156 = vand.u32 %v4155, 4294901760
        %v4157 = vsub.f32 %v4155, %v4156
        %v4158 = vand.u32 %v4157, 4294901760
        %4159 = vmatpush.msra.mxu0 %v4158
        %v4160 = vand.u32 %v440, 4294901760
        %v4161 = vsub.f32 %v440, %v4160
        %v4162 = vand.u32 %v4161, 4294901760
        %v4163 = vsub.f32 %v4161, %v4162
        %v4164 = vand.u32 %v4163, 4294901760
        %4165 = vmatpush.msra.mxu0 %v4164
        %v4166 = vand.u32 %v427, 4294901760
        %v4167 = vsub.f32 %v427, %v4166
        %v4168 = vand.u32 %v4167, 4294901760
        %v4169 = vsub.f32 %v4167, %v4168
        %v4170 = vand.u32 %v4169, 4294901760
        %4171 = vmatpush.msra.mxu0 %v4170
        %v4172 = vand.u32 %v416, 4294901760
        %4173 = vmatmul.f32.gmra.mxu0 %v4172
        %v4174 = vpop.f32.mrf.mxu0
        %v4175 = vadd.f32 %v4074, %v4174
        %4176 = vdwg.mxu0
        %v4177 = vand.u32 %v622, 4294901760
        %v4178 = vsub.f32 %v622, %v4177
        %4179 = vmatpush.msra.mxu0 %v4178
        %v4180 = vand.u32 %v609, 4294901760
        %v4181 = vsub.f32 %v609, %v4180
        %4182 = vmatpush.msra.mxu0 %v4181
        %v4183 = vand.u32 %v596, 4294901760
        %v4184 = vsub.f32 %v596, %v4183
        %4185 = vmatpush.msra.mxu0 %v4184
        %v4186 = vand.u32 %v583, 4294901760
        %v4187 = vsub.f32 %v583, %v4186
        %4188 = vmatpush.msra.mxu0 %v4187
        %v4189 = vand.u32 %v570, 4294901760
        %v4190 = vsub.f32 %v570, %v4189
        %4191 = vmatpush.msra.mxu0 %v4190
        %v4192 = vand.u32 %v557, 4294901760
        %v4193 = vsub.f32 %v557, %v4192
        %4194 = vmatpush.msra.mxu0 %v4193
        %v4195 = vand.u32 %v544, 4294901760
        %v4196 = vsub.f32 %v544, %v4195
        %4197 = vmatpush.msra.mxu0 %v4196
        %v4198 = vand.u32 %v531, 4294901760
        %v4199 = vsub.f32 %v531, %v4198
        %4200 = vmatpush.msra.mxu0 %v4199
        %v4201 = vand.u32 %v518, 4294901760
        %v4202 = vsub.f32 %v518, %v4201
        %4203 = vmatpush.msra.mxu0 %v4202
        %v4204 = vand.u32 %v505, 4294901760
        %v4205 = vsub.f32 %v505, %v4204
        %4206 = vmatpush.msra.mxu0 %v4205
        %v4207 = vand.u32 %v492, 4294901760
        %v4208 = vsub.f32 %v492, %v4207
        %4209 = vmatpush.msra.mxu0 %v4208
        %v4210 = vand.u32 %v479, 4294901760
        %v4211 = vsub.f32 %v479, %v4210
        %4212 = vmatpush.msra.mxu0 %v4211
        %v4213 = vand.u32 %v466, 4294901760
        %v4214 = vsub.f32 %v466, %v4213
        %4215 = vmatpush.msra.mxu0 %v4214
        %v4216 = vand.u32 %v453, 4294901760
        %v4217 = vsub.f32 %v453, %v4216
        %4218 = vmatpush.msra.mxu0 %v4217
        %v4219 = vand.u32 %v440, 4294901760
        %v4220 = vsub.f32 %v440, %v4219
        %4221 = vmatpush.msra.mxu0 %v4220
        %v4222 = vand.u32 %v427, 4294901760
        %v4223 = vsub.f32 %v427, %v4222
        %4224 = vmatpush.msra.mxu0 %v4223
        %v4225 = vand.u32 %v416, 4294901760
        %v4226 = vsub.f32 %v416, %v4225
        %4227 = vmatmul.f32.gmra.mxu0 %v4226
        %v4228 = vpop.f32.mrf.mxu0
        %v4229 = vadd.f32 %v4175, %v4228
        %4230 = vdwg.mxu0
        %v4231 = vand.u32 %v622, 4294901760
        %4232 = vmatpush.msra.mxu0 %v4231
        %v4233 = vand.u32 %v609, 4294901760
        %4234 = vmatpush.msra.mxu0 %v4233
        %v4235 = vand.u32 %v596, 4294901760
        %4236 = vmatpush.msra.mxu0 %v4235
        %v4237 = vand.u32 %v583, 4294901760
        %4238 = vmatpush.msra.mxu0 %v4237
        %v4239 = vand.u32 %v570, 4294901760
        %4240 = vmatpush.msra.mxu0 %v4239
        %v4241 = vand.u32 %v557, 4294901760
        %4242 = vmatpush.msra.mxu0 %v4241
        %v4243 = vand.u32 %v544, 4294901760
        %4244 = vmatpush.msra.mxu0 %v4243
        %v4245 = vand.u32 %v531, 4294901760
        %4246 = vmatpush.msra.mxu0 %v4245
        %v4247 = vand.u32 %v518, 4294901760
        %4248 = vmatpush.msra.mxu0 %v4247
        %v4249 = vand.u32 %v505, 4294901760
        %4250 = vmatpush.msra.mxu0 %v4249
        %v4251 = vand.u32 %v492, 4294901760
        %4252 = vmatpush.msra.mxu0 %v4251
        %v4253 = vand.u32 %v479, 4294901760
        %4254 = vmatpush.msra.mxu0 %v4253
        %v4255 = vand.u32 %v466, 4294901760
        %4256 = vmatpush.msra.mxu0 %v4255
        %v4257 = vand.u32 %v453, 4294901760
        %4258 = vmatpush.msra.mxu0 %v4257
        %v4259 = vand.u32 %v440, 4294901760
        %4260 = vmatpush.msra.mxu0 %v4259
        %v4261 = vand.u32 %v427, 4294901760
        %4262 = vmatpush.msra.mxu0 %v4261
        %v4263 = vand.u32 %v416, 4294901760
        %v4264 = vsub.f32 %v416, %v4263
        %v4265 = vand.u32 %v4264, 4294901760
        %4266 = vmatmul.f32.gmra.mxu0 %v4265
        %v4267 = vpop.f32.mrf.mxu0
        %v4268 = vadd.f32 %v4229, %v4267
        %4269 = vdwg.mxu0
        %v4270 = vand.u32 %v622, 4294901760
        %v4271 = vsub.f32 %v622, %v4270
        %v4272 = vand.u32 %v4271, 4294901760
        %4273 = vmatpush.msra.mxu0 %v4272
        %v4274 = vand.u32 %v609, 4294901760
        %v4275 = vsub.f32 %v609, %v4274
        %v4276 = vand.u32 %v4275, 4294901760
        %4277 = vmatpush.msra.mxu0 %v4276
        %v4278 = vand.u32 %v596, 4294901760
        %v4279 = vsub.f32 %v596, %v4278
        %v4280 = vand.u32 %v4279, 4294901760
        %4281 = vmatpush.msra.mxu0 %v4280
        %v4282 = vand.u32 %v583, 4294901760
        %v4283 = vsub.f32 %v583, %v4282
        %v4284 = vand.u32 %v4283, 4294901760
        %4285 = vmatpush.msra.mxu0 %v4284
        %v4286 = vand.u32 %v570, 4294901760
        %v4287 = vsub.f32 %v570, %v4286
        %v4288 = vand.u32 %v4287, 4294901760
        %4289 = vmatpush.msra.mxu0 %v4288
        %v4290 = vand.u32 %v557, 4294901760
        %v4291 = vsub.f32 %v557, %v4290
        %v4292 = vand.u32 %v4291, 4294901760
        %4293 = vmatpush.msra.mxu0 %v4292
        %v4294 = vand.u32 %v544, 4294901760
        %v4295 = vsub.f32 %v544, %v4294
        %v4296 = vand.u32 %v4295, 4294901760
        %4297 = vmatpush.msra.mxu0 %v4296
        %v4298 = vand.u32 %v531, 4294901760
        %v4299 = vsub.f32 %v531, %v4298
        %v4300 = vand.u32 %v4299, 4294901760
        %4301 = vmatpush.msra.mxu0 %v4300
        %v4302 = vand.u32 %v518, 4294901760
        %v4303 = vsub.f32 %v518, %v4302
        %v4304 = vand.u32 %v4303, 4294901760
        %4305 = vmatpush.msra.mxu0 %v4304
        %v4306 = vand.u32 %v505, 4294901760
        %v4307 = vsub.f32 %v505, %v4306
        %v4308 = vand.u32 %v4307, 4294901760
        %4309 = vmatpush.msra.mxu0 %v4308
        %v4310 = vand.u32 %v492, 4294901760
        %v4311 = vsub.f32 %v492, %v4310
        %v4312 = vand.u32 %v4311, 4294901760
        %4313 = vmatpush.msra.mxu0 %v4312
        %v4314 = vand.u32 %v479, 4294901760
        %v4315 = vsub.f32 %v479, %v4314
        %v4316 = vand.u32 %v4315, 4294901760
        %4317 = vmatpush.msra.mxu0 %v4316
        %v4318 = vand.u32 %v466, 4294901760
        %v4319 = vsub.f32 %v466, %v4318
        %v4320 = vand.u32 %v4319, 4294901760
        %4321 = vmatpush.msra.mxu0 %v4320
        %v4322 = vand.u32 %v453, 4294901760
        %v4323 = vsub.f32 %v453, %v4322
        %v4324 = vand.u32 %v4323, 4294901760
        %4325 = vmatpush.msra.mxu0 %v4324
        %v4326 = vand.u32 %v440, 4294901760
        %v4327 = vsub.f32 %v440, %v4326
        %v4328 = vand.u32 %v4327, 4294901760
        %4329 = vmatpush.msra.mxu0 %v4328
        %v4330 = vand.u32 %v427, 4294901760
        %v4331 = vsub.f32 %v427, %v4330
        %v4332 = vand.u32 %v4331, 4294901760
        %4333 = vmatpush.msra.mxu0 %v4332
        %v4334 = vand.u32 %v416, 4294901760
        %4335 = vmatmul.f32.gmra.mxu0 %v4334
        %v4336 = vpop.f32.mrf.mxu0
        %v4337 = vadd.f32 %v4268, %v4336
        %4338 = vdwg.mxu0
        %v4339 = vand.u32 %v622, 4294901760
        %4340 = vmatpush.msra.mxu0 %v4339
        %v4341 = vand.u32 %v609, 4294901760
        %4342 = vmatpush.msra.mxu0 %v4341
        %v4343 = vand.u32 %v596, 4294901760
        %4344 = vmatpush.msra.mxu0 %v4343
        %v4345 = vand.u32 %v583, 4294901760
        %4346 = vmatpush.msra.mxu0 %v4345
        %v4347 = vand.u32 %v570, 4294901760
        %4348 = vmatpush.msra.mxu0 %v4347
        %v4349 = vand.u32 %v557, 4294901760
        %4350 = vmatpush.msra.mxu0 %v4349
        %v4351 = vand.u32 %v544, 4294901760
        %4352 = vmatpush.msra.mxu0 %v4351
        %v4353 = vand.u32 %v531, 4294901760
        %4354 = vmatpush.msra.mxu0 %v4353
        %v4355 = vand.u32 %v518, 4294901760
        %4356 = vmatpush.msra.mxu0 %v4355
        %v4357 = vand.u32 %v505, 4294901760
        %4358 = vmatpush.msra.mxu0 %v4357
        %v4359 = vand.u32 %v492, 4294901760
        %4360 = vmatpush.msra.mxu0 %v4359
        %v4361 = vand.u32 %v479, 4294901760
        %4362 = vmatpush.msra.mxu0 %v4361
        %v4363 = vand.u32 %v466, 4294901760
        %4364 = vmatpush.msra.mxu0 %v4363
        %v4365 = vand.u32 %v453, 4294901760
        %4366 = vmatpush.msra.mxu0 %v4365
        %v4367 = vand.u32 %v440, 4294901760
        %4368 = vmatpush.msra.mxu0 %v4367
        %v4369 = vand.u32 %v427, 4294901760
        %4370 = vmatpush.msra.mxu0 %v4369
        %v4371 = vand.u32 %v416, 4294901760
        %4372 = vmatmul.f32.gmra.mxu0 %v4371
        %v4373 = vpop.f32.mrf.mxu0
        %v4374 = vadd.f32 %v4337, %v4373
        %4375 = vdwg.mxu0
        %v4376 = vand.u32 %v623, 4294901760
        %4377 = vmatpush.msra.mxu0 %v4376
        %v4378 = vand.u32 %v610, 4294901760
        %4379 = vmatpush.msra.mxu0 %v4378
        %v4380 = vand.u32 %v597, 4294901760
        %4381 = vmatpush.msra.mxu0 %v4380
        %v4382 = vand.u32 %v584, 4294901760
        %4383 = vmatpush.msra.mxu0 %v4382
        %v4384 = vand.u32 %v571, 4294901760
        %4385 = vmatpush.msra.mxu0 %v4384
        %v4386 = vand.u32 %v558, 4294901760
        %4387 = vmatpush.msra.mxu0 %v4386
        %v4388 = vand.u32 %v545, 4294901760
        %4389 = vmatpush.msra.mxu0 %v4388
        %v4390 = vand.u32 %v532, 4294901760
        %4391 = vmatpush.msra.mxu0 %v4390
        %v4392 = vand.u32 %v519, 4294901760
        %4393 = vmatpush.msra.mxu0 %v4392
        %v4394 = vand.u32 %v506, 4294901760
        %4395 = vmatpush.msra.mxu0 %v4394
        %v4396 = vand.u32 %v493, 4294901760
        %4397 = vmatpush.msra.mxu0 %v4396
        %v4398 = vand.u32 %v480, 4294901760
        %4399 = vmatpush.msra.mxu0 %v4398
        %v4400 = vand.u32 %v467, 4294901760
        %4401 = vmatpush.msra.mxu0 %v4400
        %v4402 = vand.u32 %v454, 4294901760
        %4403 = vmatpush.msra.mxu0 %v4402
        %v4404 = vand.u32 %v441, 4294901760
        %4405 = vmatpush.msra.mxu0 %v4404
        %v4406 = vand.u32 %v428, 4294901760
        %4407 = vmatpush.msra.mxu0 %v4406
        %v4408 = vand.u32 %v416, 4294901760
        %v4409 = vsub.f32 %v416, %v4408
        %v4410 = vand.u32 %v4409, 4294901760
        %v4411 = vsub.f32 %v4409, %v4410
        %v4412 = vand.u32 %v4411, 4294901760
        %4413 = vmatmul.f32.gmra.mxu0 %v4412
        %v4414 = vpop.f32.mrf.mxu0
        %v4415 = vadd.f32 0.0, %v4414
        %4416 = vdwg.mxu0
        %v4417 = vand.u32 %v623, 4294901760
        %v4418 = vsub.f32 %v623, %v4417
        %v4419 = vand.u32 %v4418, 4294901760
        %v4420 = vsub.f32 %v4418, %v4419
        %v4421 = vand.u32 %v4420, 4294901760
        %4422 = vmatpush.msra.mxu0 %v4421
        %v4423 = vand.u32 %v610, 4294901760
        %v4424 = vsub.f32 %v610, %v4423
        %v4425 = vand.u32 %v4424, 4294901760
        %v4426 = vsub.f32 %v4424, %v4425
        %v4427 = vand.u32 %v4426, 4294901760
        %4428 = vmatpush.msra.mxu0 %v4427
        %v4429 = vand.u32 %v597, 4294901760
        %v4430 = vsub.f32 %v597, %v4429
        %v4431 = vand.u32 %v4430, 4294901760
        %v4432 = vsub.f32 %v4430, %v4431
        %v4433 = vand.u32 %v4432, 4294901760
        %4434 = vmatpush.msra.mxu0 %v4433
        %v4435 = vand.u32 %v584, 4294901760
        %v4436 = vsub.f32 %v584, %v4435
        %v4437 = vand.u32 %v4436, 4294901760
        %v4438 = vsub.f32 %v4436, %v4437
        %v4439 = vand.u32 %v4438, 4294901760
        %4440 = vmatpush.msra.mxu0 %v4439
        %v4441 = vand.u32 %v571, 4294901760
        %v4442 = vsub.f32 %v571, %v4441
        %v4443 = vand.u32 %v4442, 4294901760
        %v4444 = vsub.f32 %v4442, %v4443
        %v4445 = vand.u32 %v4444, 4294901760
        %4446 = vmatpush.msra.mxu0 %v4445
        %v4447 = vand.u32 %v558, 4294901760
        %v4448 = vsub.f32 %v558, %v4447
        %v4449 = vand.u32 %v4448, 4294901760
        %v4450 = vsub.f32 %v4448, %v4449
        %v4451 = vand.u32 %v4450, 4294901760
        %4452 = vmatpush.msra.mxu0 %v4451
        %v4453 = vand.u32 %v545, 4294901760
        %v4454 = vsub.f32 %v545, %v4453
        %v4455 = vand.u32 %v4454, 4294901760
        %v4456 = vsub.f32 %v4454, %v4455
        %v4457 = vand.u32 %v4456, 4294901760
        %4458 = vmatpush.msra.mxu0 %v4457
        %v4459 = vand.u32 %v532, 4294901760
        %v4460 = vsub.f32 %v532, %v4459
        %v4461 = vand.u32 %v4460, 4294901760
        %v4462 = vsub.f32 %v4460, %v4461
        %v4463 = vand.u32 %v4462, 4294901760
        %4464 = vmatpush.msra.mxu0 %v4463
        %v4465 = vand.u32 %v519, 4294901760
        %v4466 = vsub.f32 %v519, %v4465
        %v4467 = vand.u32 %v4466, 4294901760
        %v4468 = vsub.f32 %v4466, %v4467
        %v4469 = vand.u32 %v4468, 4294901760
        %4470 = vmatpush.msra.mxu0 %v4469
        %v4471 = vand.u32 %v506, 4294901760
        %v4472 = vsub.f32 %v506, %v4471
        %v4473 = vand.u32 %v4472, 4294901760
        %v4474 = vsub.f32 %v4472, %v4473
        %v4475 = vand.u32 %v4474, 4294901760
        %4476 = vmatpush.msra.mxu0 %v4475
        %v4477 = vand.u32 %v493, 4294901760
        %v4478 = vsub.f32 %v493, %v4477
        %v4479 = vand.u32 %v4478, 4294901760
        %v4480 = vsub.f32 %v4478, %v4479
        %v4481 = vand.u32 %v4480, 4294901760
        %4482 = vmatpush.msra.mxu0 %v4481
        %v4483 = vand.u32 %v480, 4294901760
        %v4484 = vsub.f32 %v480, %v4483
        %v4485 = vand.u32 %v4484, 4294901760
        %v4486 = vsub.f32 %v4484, %v4485
        %v4487 = vand.u32 %v4486, 4294901760
        %4488 = vmatpush.msra.mxu0 %v4487
        %v4489 = vand.u32 %v467, 4294901760
        %v4490 = vsub.f32 %v467, %v4489
        %v4491 = vand.u32 %v4490, 4294901760
        %v4492 = vsub.f32 %v4490, %v4491
        %v4493 = vand.u32 %v4492, 4294901760
        %4494 = vmatpush.msra.mxu0 %v4493
        %v4495 = vand.u32 %v454, 4294901760
        %v4496 = vsub.f32 %v454, %v4495
        %v4497 = vand.u32 %v4496, 4294901760
        %v4498 = vsub.f32 %v4496, %v4497
        %v4499 = vand.u32 %v4498, 4294901760
        %4500 = vmatpush.msra.mxu0 %v4499
        %v4501 = vand.u32 %v441, 4294901760
        %v4502 = vsub.f32 %v441, %v4501
        %v4503 = vand.u32 %v4502, 4294901760
        %v4504 = vsub.f32 %v4502, %v4503
        %v4505 = vand.u32 %v4504, 4294901760
        %4506 = vmatpush.msra.mxu0 %v4505
        %v4507 = vand.u32 %v428, 4294901760
        %v4508 = vsub.f32 %v428, %v4507
        %v4509 = vand.u32 %v4508, 4294901760
        %v4510 = vsub.f32 %v4508, %v4509
        %v4511 = vand.u32 %v4510, 4294901760
        %4512 = vmatpush.msra.mxu0 %v4511
        %v4513 = vand.u32 %v416, 4294901760
        %4514 = vmatmul.f32.gmra.mxu0 %v4513
        %v4515 = vpop.f32.mrf.mxu0
        %v4516 = vadd.f32 %v4415, %v4515
        %4517 = vdwg.mxu0
        %v4518 = vand.u32 %v623, 4294901760
        %v4519 = vsub.f32 %v623, %v4518
        %4520 = vmatpush.msra.mxu0 %v4519
        %v4521 = vand.u32 %v610, 4294901760
        %v4522 = vsub.f32 %v610, %v4521
        %4523 = vmatpush.msra.mxu0 %v4522
        %v4524 = vand.u32 %v597, 4294901760
        %v4525 = vsub.f32 %v597, %v4524
        %4526 = vmatpush.msra.mxu0 %v4525
        %v4527 = vand.u32 %v584, 4294901760
        %v4528 = vsub.f32 %v584, %v4527
        %4529 = vmatpush.msra.mxu0 %v4528
        %v4530 = vand.u32 %v571, 4294901760
        %v4531 = vsub.f32 %v571, %v4530
        %4532 = vmatpush.msra.mxu0 %v4531
        %v4533 = vand.u32 %v558, 4294901760
        %v4534 = vsub.f32 %v558, %v4533
        %4535 = vmatpush.msra.mxu0 %v4534
        %v4536 = vand.u32 %v545, 4294901760
        %v4537 = vsub.f32 %v545, %v4536
        %4538 = vmatpush.msra.mxu0 %v4537
        %v4539 = vand.u32 %v532, 4294901760
        %v4540 = vsub.f32 %v532, %v4539
        %4541 = vmatpush.msra.mxu0 %v4540
        %v4542 = vand.u32 %v519, 4294901760
        %v4543 = vsub.f32 %v519, %v4542
        %4544 = vmatpush.msra.mxu0 %v4543
        %v4545 = vand.u32 %v506, 4294901760
        %v4546 = vsub.f32 %v506, %v4545
        %4547 = vmatpush.msra.mxu0 %v4546
        %v4548 = vand.u32 %v493, 4294901760
        %v4549 = vsub.f32 %v493, %v4548
        %4550 = vmatpush.msra.mxu0 %v4549
        %v4551 = vand.u32 %v480, 4294901760
        %v4552 = vsub.f32 %v480, %v4551
        %4553 = vmatpush.msra.mxu0 %v4552
        %v4554 = vand.u32 %v467, 4294901760
        %v4555 = vsub.f32 %v467, %v4554
        %4556 = vmatpush.msra.mxu0 %v4555
        %v4557 = vand.u32 %v454, 4294901760
        %v4558 = vsub.f32 %v454, %v4557
        %4559 = vmatpush.msra.mxu0 %v4558
        %v4560 = vand.u32 %v441, 4294901760
        %v4561 = vsub.f32 %v441, %v4560
        %4562 = vmatpush.msra.mxu0 %v4561
        %v4563 = vand.u32 %v428, 4294901760
        %v4564 = vsub.f32 %v428, %v4563
        %4565 = vmatpush.msra.mxu0 %v4564
        %v4566 = vand.u32 %v416, 4294901760
        %v4567 = vsub.f32 %v416, %v4566
        %4568 = vmatmul.f32.gmra.mxu0 %v4567
        %v4569 = vpop.f32.mrf.mxu0
        %v4570 = vadd.f32 %v4516, %v4569
        %4571 = vdwg.mxu0
        %v4572 = vand.u32 %v623, 4294901760
        %4573 = vmatpush.msra.mxu0 %v4572
        %v4574 = vand.u32 %v610, 4294901760
        %4575 = vmatpush.msra.mxu0 %v4574
        %v4576 = vand.u32 %v597, 4294901760
        %4577 = vmatpush.msra.mxu0 %v4576
        %v4578 = vand.u32 %v584, 4294901760
        %4579 = vmatpush.msra.mxu0 %v4578
        %v4580 = vand.u32 %v571, 4294901760
        %4581 = vmatpush.msra.mxu0 %v4580
        %v4582 = vand.u32 %v558, 4294901760
        %4583 = vmatpush.msra.mxu0 %v4582
        %v4584 = vand.u32 %v545, 4294901760
        %4585 = vmatpush.msra.mxu0 %v4584
        %v4586 = vand.u32 %v532, 4294901760
        %4587 = vmatpush.msra.mxu0 %v4586
        %v4588 = vand.u32 %v519, 4294901760
        %4589 = vmatpush.msra.mxu0 %v4588
        %v4590 = vand.u32 %v506, 4294901760
        %4591 = vmatpush.msra.mxu0 %v4590
        %v4592 = vand.u32 %v493, 4294901760
        %4593 = vmatpush.msra.mxu0 %v4592
        %v4594 = vand.u32 %v480, 4294901760
        %4595 = vmatpush.msra.mxu0 %v4594
        %v4596 = vand.u32 %v467, 4294901760
        %4597 = vmatpush.msra.mxu0 %v4596
        %v4598 = vand.u32 %v454, 4294901760
        %4599 = vmatpush.msra.mxu0 %v4598
        %v4600 = vand.u32 %v441, 4294901760
        %4601 = vmatpush.msra.mxu0 %v4600
        %v4602 = vand.u32 %v428, 4294901760
        %4603 = vmatpush.msra.mxu0 %v4602
        %v4604 = vand.u32 %v416, 4294901760
        %v4605 = vsub.f32 %v416, %v4604
        %v4606 = vand.u32 %v4605, 4294901760
        %4607 = vmatmul.f32.gmra.mxu0 %v4606
        %v4608 = vpop.f32.mrf.mxu0
        %v4609 = vadd.f32 %v4570, %v4608
        %4610 = vdwg.mxu0
        %v4611 = vand.u32 %v623, 4294901760
        %v4612 = vsub.f32 %v623, %v4611
        %v4613 = vand.u32 %v4612, 4294901760
        %4614 = vmatpush.msra.mxu0 %v4613
        %v4615 = vand.u32 %v610, 4294901760
        %v4616 = vsub.f32 %v610, %v4615
        %v4617 = vand.u32 %v4616, 4294901760
        %4618 = vmatpush.msra.mxu0 %v4617
        %v4619 = vand.u32 %v597, 4294901760
        %v4620 = vsub.f32 %v597, %v4619
        %v4621 = vand.u32 %v4620, 4294901760
        %4622 = vmatpush.msra.mxu0 %v4621
        %v4623 = vand.u32 %v584, 4294901760
        %v4624 = vsub.f32 %v584, %v4623
        %v4625 = vand.u32 %v4624, 4294901760
        %4626 = vmatpush.msra.mxu0 %v4625
        %v4627 = vand.u32 %v571, 4294901760
        %v4628 = vsub.f32 %v571, %v4627
        %v4629 = vand.u32 %v4628, 4294901760
        %4630 = vmatpush.msra.mxu0 %v4629
        %v4631 = vand.u32 %v558, 4294901760
        %v4632 = vsub.f32 %v558, %v4631
        %v4633 = vand.u32 %v4632, 4294901760
        %4634 = vmatpush.msra.mxu0 %v4633
        %v4635 = vand.u32 %v545, 4294901760
        %v4636 = vsub.f32 %v545, %v4635
        %v4637 = vand.u32 %v4636, 4294901760
        %4638 = vmatpush.msra.mxu0 %v4637
        %v4639 = vand.u32 %v532, 4294901760
        %v4640 = vsub.f32 %v532, %v4639
        %v4641 = vand.u32 %v4640, 4294901760
        %4642 = vmatpush.msra.mxu0 %v4641
        %v4643 = vand.u32 %v519, 4294901760
        %v4644 = vsub.f32 %v519, %v4643
        %v4645 = vand.u32 %v4644, 4294901760
        %4646 = vmatpush.msra.mxu0 %v4645
        %v4647 = vand.u32 %v506, 4294901760
        %v4648 = vsub.f32 %v506, %v4647
        %v4649 = vand.u32 %v4648, 4294901760
        %4650 = vmatpush.msra.mxu0 %v4649
        %v4651 = vand.u32 %v493, 4294901760
        %v4652 = vsub.f32 %v493, %v4651
        %v4653 = vand.u32 %v4652, 4294901760
        %4654 = vmatpush.msra.mxu0 %v4653
        %v4655 = vand.u32 %v480, 4294901760
        %v4656 = vsub.f32 %v480, %v4655
        %v4657 = vand.u32 %v4656, 4294901760
        %4658 = vmatpush.msra.mxu0 %v4657
        %v4659 = vand.u32 %v467, 4294901760
        %v4660 = vsub.f32 %v467, %v4659
        %v4661 = vand.u32 %v4660, 4294901760
        %4662 = vmatpush.msra.mxu0 %v4661
        %v4663 = vand.u32 %v454, 4294901760
        %v4664 = vsub.f32 %v454, %v4663
        %v4665 = vand.u32 %v4664, 4294901760
        %4666 = vmatpush.msra.mxu0 %v4665
        %v4667 = vand.u32 %v441, 4294901760
        %v4668 = vsub.f32 %v441, %v4667
        %v4669 = vand.u32 %v4668, 4294901760
        %4670 = vmatpush.msra.mxu0 %v4669
        %v4671 = vand.u32 %v428, 4294901760
        %v4672 = vsub.f32 %v428, %v4671
        %v4673 = vand.u32 %v4672, 4294901760
        %4674 = vmatpush.msra.mxu0 %v4673
        %v4675 = vand.u32 %v416, 4294901760
        %4676 = vmatmul.f32.gmra.mxu0 %v4675
        %v4677 = vpop.f32.mrf.mxu0
        %v4678 = vadd.f32 %v4609, %v4677
        %4679 = vdwg.mxu0
        %v4680 = vand.u32 %v623, 4294901760
        %4681 = vmatpush.msra.mxu0 %v4680
        %v4682 = vand.u32 %v610, 4294901760
        %4683 = vmatpush.msra.mxu0 %v4682
        %v4684 = vand.u32 %v597, 4294901760
        %4685 = vmatpush.msra.mxu0 %v4684
        %v4686 = vand.u32 %v584, 4294901760
        %4687 = vmatpush.msra.mxu0 %v4686
        %v4688 = vand.u32 %v571, 4294901760
        %4689 = vmatpush.msra.mxu0 %v4688
        %v4690 = vand.u32 %v558, 4294901760
        %4691 = vmatpush.msra.mxu0 %v4690
        %v4692 = vand.u32 %v545, 4294901760
        %4693 = vmatpush.msra.mxu0 %v4692
        %v4694 = vand.u32 %v532, 4294901760
        %4695 = vmatpush.msra.mxu0 %v4694
        %v4696 = vand.u32 %v519, 4294901760
        %4697 = vmatpush.msra.mxu0 %v4696
        %v4698 = vand.u32 %v506, 4294901760
        %4699 = vmatpush.msra.mxu0 %v4698
        %v4700 = vand.u32 %v493, 4294901760
        %4701 = vmatpush.msra.mxu0 %v4700
        %v4702 = vand.u32 %v480, 4294901760
        %4703 = vmatpush.msra.mxu0 %v4702
        %v4704 = vand.u32 %v467, 4294901760
        %4705 = vmatpush.msra.mxu0 %v4704
        %v4706 = vand.u32 %v454, 4294901760
        %4707 = vmatpush.msra.mxu0 %v4706
        %v4708 = vand.u32 %v441, 4294901760
        %4709 = vmatpush.msra.mxu0 %v4708
        %v4710 = vand.u32 %v428, 4294901760
        %4711 = vmatpush.msra.mxu0 %v4710
        %v4712 = vand.u32 %v416, 4294901760
        %4713 = vmatmul.f32.gmra.mxu0 %v4712
        %v4714 = vpop.f32.mrf.mxu0
        %v4715 = vadd.f32 %v4678, %v4714
        %4716 = vdwg.mxu0
        %v4717 = vand.u32 %v624, 4294901760
        %4718 = vmatpush.msra.mxu0 %v4717
        %v4719 = vand.u32 %v611, 4294901760
        %4720 = vmatpush.msra.mxu0 %v4719
        %v4721 = vand.u32 %v598, 4294901760
        %4722 = vmatpush.msra.mxu0 %v4721
        %v4723 = vand.u32 %v585, 4294901760
        %4724 = vmatpush.msra.mxu0 %v4723
        %v4725 = vand.u32 %v572, 4294901760
        %4726 = vmatpush.msra.mxu0 %v4725
        %v4727 = vand.u32 %v559, 4294901760
        %4728 = vmatpush.msra.mxu0 %v4727
        %v4729 = vand.u32 %v546, 4294901760
        %4730 = vmatpush.msra.mxu0 %v4729
        %v4731 = vand.u32 %v533, 4294901760
        %4732 = vmatpush.msra.mxu0 %v4731
        %v4733 = vand.u32 %v520, 4294901760
        %4734 = vmatpush.msra.mxu0 %v4733
        %v4735 = vand.u32 %v507, 4294901760
        %4736 = vmatpush.msra.mxu0 %v4735
        %v4737 = vand.u32 %v494, 4294901760
        %4738 = vmatpush.msra.mxu0 %v4737
        %v4739 = vand.u32 %v481, 4294901760
        %4740 = vmatpush.msra.mxu0 %v4739
        %v4741 = vand.u32 %v468, 4294901760
        %4742 = vmatpush.msra.mxu0 %v4741
        %v4743 = vand.u32 %v455, 4294901760
        %4744 = vmatpush.msra.mxu0 %v4743
        %v4745 = vand.u32 %v442, 4294901760
        %4746 = vmatpush.msra.mxu0 %v4745
        %v4747 = vand.u32 %v429, 4294901760
        %4748 = vmatpush.msra.mxu0 %v4747
        %v4749 = vand.u32 %v416, 4294901760
        %v4750 = vsub.f32 %v416, %v4749
        %v4751 = vand.u32 %v4750, 4294901760
        %v4752 = vsub.f32 %v4750, %v4751
        %v4753 = vand.u32 %v4752, 4294901760
        %4754 = vmatmul.f32.gmra.mxu0 %v4753
        %v4755 = vpop.f32.mrf.mxu0
        %v4756 = vadd.f32 0.0, %v4755
        %4757 = vdwg.mxu0
        %v4758 = vand.u32 %v624, 4294901760
        %v4759 = vsub.f32 %v624, %v4758
        %v4760 = vand.u32 %v4759, 4294901760
        %v4761 = vsub.f32 %v4759, %v4760
        %v4762 = vand.u32 %v4761, 4294901760
        %4763 = vmatpush.msra.mxu0 %v4762
        %v4764 = vand.u32 %v611, 4294901760
        %v4765 = vsub.f32 %v611, %v4764
        %v4766 = vand.u32 %v4765, 4294901760
        %v4767 = vsub.f32 %v4765, %v4766
        %v4768 = vand.u32 %v4767, 4294901760
        %4769 = vmatpush.msra.mxu0 %v4768
        %v4770 = vand.u32 %v598, 4294901760
        %v4771 = vsub.f32 %v598, %v4770
        %v4772 = vand.u32 %v4771, 4294901760
        %v4773 = vsub.f32 %v4771, %v4772
        %v4774 = vand.u32 %v4773, 4294901760
        %4775 = vmatpush.msra.mxu0 %v4774
        %v4776 = vand.u32 %v585, 4294901760
        %v4777 = vsub.f32 %v585, %v4776
        %v4778 = vand.u32 %v4777, 4294901760
        %v4779 = vsub.f32 %v4777, %v4778
        %v4780 = vand.u32 %v4779, 4294901760
        %4781 = vmatpush.msra.mxu0 %v4780
        %v4782 = vand.u32 %v572, 4294901760
        %v4783 = vsub.f32 %v572, %v4782
        %v4784 = vand.u32 %v4783, 4294901760
        %v4785 = vsub.f32 %v4783, %v4784
        %v4786 = vand.u32 %v4785, 4294901760
        %4787 = vmatpush.msra.mxu0 %v4786
        %v4788 = vand.u32 %v559, 4294901760
        %v4789 = vsub.f32 %v559, %v4788
        %v4790 = vand.u32 %v4789, 4294901760
        %v4791 = vsub.f32 %v4789, %v4790
        %v4792 = vand.u32 %v4791, 4294901760
        %4793 = vmatpush.msra.mxu0 %v4792
        %v4794 = vand.u32 %v546, 4294901760
        %v4795 = vsub.f32 %v546, %v4794
        %v4796 = vand.u32 %v4795, 4294901760
        %v4797 = vsub.f32 %v4795, %v4796
        %v4798 = vand.u32 %v4797, 4294901760
        %4799 = vmatpush.msra.mxu0 %v4798
        %v4800 = vand.u32 %v533, 4294901760
        %v4801 = vsub.f32 %v533, %v4800
        %v4802 = vand.u32 %v4801, 4294901760
        %v4803 = vsub.f32 %v4801, %v4802
        %v4804 = vand.u32 %v4803, 4294901760
        %4805 = vmatpush.msra.mxu0 %v4804
        %v4806 = vand.u32 %v520, 4294901760
        %v4807 = vsub.f32 %v520, %v4806
        %v4808 = vand.u32 %v4807, 4294901760
        %v4809 = vsub.f32 %v4807, %v4808
        %v4810 = vand.u32 %v4809, 4294901760
        %4811 = vmatpush.msra.mxu0 %v4810
        %v4812 = vand.u32 %v507, 4294901760
        %v4813 = vsub.f32 %v507, %v4812
        %v4814 = vand.u32 %v4813, 4294901760
        %v4815 = vsub.f32 %v4813, %v4814
        %v4816 = vand.u32 %v4815, 4294901760
        %4817 = vmatpush.msra.mxu0 %v4816
        %v4818 = vand.u32 %v494, 4294901760
        %v4819 = vsub.f32 %v494, %v4818
        %v4820 = vand.u32 %v4819, 4294901760
        %v4821 = vsub.f32 %v4819, %v4820
        %v4822 = vand.u32 %v4821, 4294901760
        %4823 = vmatpush.msra.mxu0 %v4822
        %v4824 = vand.u32 %v481, 4294901760
        %v4825 = vsub.f32 %v481, %v4824
        %v4826 = vand.u32 %v4825, 4294901760
        %v4827 = vsub.f32 %v4825, %v4826
        %v4828 = vand.u32 %v4827, 4294901760
        %4829 = vmatpush.msra.mxu0 %v4828
        %v4830 = vand.u32 %v468, 4294901760
        %v4831 = vsub.f32 %v468, %v4830
        %v4832 = vand.u32 %v4831, 4294901760
        %v4833 = vsub.f32 %v4831, %v4832
        %v4834 = vand.u32 %v4833, 4294901760
        %4835 = vmatpush.msra.mxu0 %v4834
        %v4836 = vand.u32 %v455, 4294901760
        %v4837 = vsub.f32 %v455, %v4836
        %v4838 = vand.u32 %v4837, 4294901760
        %v4839 = vsub.f32 %v4837, %v4838
        %v4840 = vand.u32 %v4839, 4294901760
        %4841 = vmatpush.msra.mxu0 %v4840
        %v4842 = vand.u32 %v442, 4294901760
        %v4843 = vsub.f32 %v442, %v4842
        %v4844 = vand.u32 %v4843, 4294901760
        %v4845 = vsub.f32 %v4843, %v4844
        %v4846 = vand.u32 %v4845, 4294901760
        %4847 = vmatpush.msra.mxu0 %v4846
        %v4848 = vand.u32 %v429, 4294901760
        %v4849 = vsub.f32 %v429, %v4848
        %v4850 = vand.u32 %v4849, 4294901760
        %v4851 = vsub.f32 %v4849, %v4850
        %v4852 = vand.u32 %v4851, 4294901760
        %4853 = vmatpush.msra.mxu0 %v4852
        %v4854 = vand.u32 %v416, 4294901760
        %4855 = vmatmul.f32.gmra.mxu0 %v4854
        %v4856 = vpop.f32.mrf.mxu0
        %v4857 = vadd.f32 %v4756, %v4856
        %4858 = vdwg.mxu0
        %v4859 = vand.u32 %v624, 4294901760
        %v4860 = vsub.f32 %v624, %v4859
        %4861 = vmatpush.msra.mxu0 %v4860
        %v4862 = vand.u32 %v611, 4294901760
        %v4863 = vsub.f32 %v611, %v4862
        %4864 = vmatpush.msra.mxu0 %v4863
        %v4865 = vand.u32 %v598, 4294901760
        %v4866 = vsub.f32 %v598, %v4865
        %4867 = vmatpush.msra.mxu0 %v4866
        %v4868 = vand.u32 %v585, 4294901760
        %v4869 = vsub.f32 %v585, %v4868
        %4870 = vmatpush.msra.mxu0 %v4869
        %v4871 = vand.u32 %v572, 4294901760
        %v4872 = vsub.f32 %v572, %v4871
        %4873 = vmatpush.msra.mxu0 %v4872
        %v4874 = vand.u32 %v559, 4294901760
        %v4875 = vsub.f32 %v559, %v4874
        %4876 = vmatpush.msra.mxu0 %v4875
        %v4877 = vand.u32 %v546, 4294901760
        %v4878 = vsub.f32 %v546, %v4877
        %4879 = vmatpush.msra.mxu0 %v4878
        %v4880 = vand.u32 %v533, 4294901760
        %v4881 = vsub.f32 %v533, %v4880
        %4882 = vmatpush.msra.mxu0 %v4881
        %v4883 = vand.u32 %v520, 4294901760
        %v4884 = vsub.f32 %v520, %v4883
        %4885 = vmatpush.msra.mxu0 %v4884
        %v4886 = vand.u32 %v507, 4294901760
        %v4887 = vsub.f32 %v507, %v4886
        %4888 = vmatpush.msra.mxu0 %v4887
        %v4889 = vand.u32 %v494, 4294901760
        %v4890 = vsub.f32 %v494, %v4889
        %4891 = vmatpush.msra.mxu0 %v4890
        %v4892 = vand.u32 %v481, 4294901760
        %v4893 = vsub.f32 %v481, %v4892
        %4894 = vmatpush.msra.mxu0 %v4893
        %v4895 = vand.u32 %v468, 4294901760
        %v4896 = vsub.f32 %v468, %v4895
        %4897 = vmatpush.msra.mxu0 %v4896
        %v4898 = vand.u32 %v455, 4294901760
        %v4899 = vsub.f32 %v455, %v4898
        %4900 = vmatpush.msra.mxu0 %v4899
        %v4901 = vand.u32 %v442, 4294901760
        %v4902 = vsub.f32 %v442, %v4901
        %4903 = vmatpush.msra.mxu0 %v4902
        %v4904 = vand.u32 %v429, 4294901760
        %v4905 = vsub.f32 %v429, %v4904
        %4906 = vmatpush.msra.mxu0 %v4905
        %v4907 = vand.u32 %v416, 4294901760
        %v4908 = vsub.f32 %v416, %v4907
        %4909 = vmatmul.f32.gmra.mxu0 %v4908
        %v4910 = vpop.f32.mrf.mxu0
        %v4911 = vadd.f32 %v4857, %v4910
        %4912 = vdwg.mxu0
        %v4913 = vand.u32 %v624, 4294901760
        %4914 = vmatpush.msra.mxu0 %v4913
        %v4915 = vand.u32 %v611, 4294901760
        %4916 = vmatpush.msra.mxu0 %v4915
        %v4917 = vand.u32 %v598, 4294901760
        %4918 = vmatpush.msra.mxu0 %v4917
        %v4919 = vand.u32 %v585, 4294901760
        %4920 = vmatpush.msra.mxu0 %v4919
        %v4921 = vand.u32 %v572, 4294901760
        %4922 = vmatpush.msra.mxu0 %v4921
        %v4923 = vand.u32 %v559, 4294901760
        %4924 = vmatpush.msra.mxu0 %v4923
        %v4925 = vand.u32 %v546, 4294901760
        %4926 = vmatpush.msra.mxu0 %v4925
        %v4927 = vand.u32 %v533, 4294901760
        %4928 = vmatpush.msra.mxu0 %v4927
        %v4929 = vand.u32 %v520, 4294901760
        %4930 = vmatpush.msra.mxu0 %v4929
        %v4931 = vand.u32 %v507, 4294901760
        %4932 = vmatpush.msra.mxu0 %v4931
        %v4933 = vand.u32 %v494, 4294901760
        %4934 = vmatpush.msra.mxu0 %v4933
        %v4935 = vand.u32 %v481, 4294901760
        %4936 = vmatpush.msra.mxu0 %v4935
        %v4937 = vand.u32 %v468, 4294901760
        %4938 = vmatpush.msra.mxu0 %v4937
        %v4939 = vand.u32 %v455, 4294901760
        %4940 = vmatpush.msra.mxu0 %v4939
        %v4941 = vand.u32 %v442, 4294901760
        %4942 = vmatpush.msra.mxu0 %v4941
        %v4943 = vand.u32 %v429, 4294901760
        %4944 = vmatpush.msra.mxu0 %v4943
        %v4945 = vand.u32 %v416, 4294901760
        %v4946 = vsub.f32 %v416, %v4945
        %v4947 = vand.u32 %v4946, 4294901760
        %4948 = vmatmul.f32.gmra.mxu0 %v4947
        %v4949 = vpop.f32.mrf.mxu0
        %v4950 = vadd.f32 %v4911, %v4949
        %4951 = vdwg.mxu0
        %v4952 = vand.u32 %v624, 4294901760
        %v4953 = vsub.f32 %v624, %v4952
        %v4954 = vand.u32 %v4953, 4294901760
        %4955 = vmatpush.msra.mxu0 %v4954
        %v4956 = vand.u32 %v611, 4294901760
        %v4957 = vsub.f32 %v611, %v4956
        %v4958 = vand.u32 %v4957, 4294901760
        %4959 = vmatpush.msra.mxu0 %v4958
        %v4960 = vand.u32 %v598, 4294901760
        %v4961 = vsub.f32 %v598, %v4960
        %v4962 = vand.u32 %v4961, 4294901760
        %4963 = vmatpush.msra.mxu0 %v4962
        %v4964 = vand.u32 %v585, 4294901760
        %v4965 = vsub.f32 %v585, %v4964
        %v4966 = vand.u32 %v4965, 4294901760
        %4967 = vmatpush.msra.mxu0 %v4966
        %v4968 = vand.u32 %v572, 4294901760
        %v4969 = vsub.f32 %v572, %v4968
        %v4970 = vand.u32 %v4969, 4294901760
        %4971 = vmatpush.msra.mxu0 %v4970
        %v4972 = vand.u32 %v559, 4294901760
        %v4973 = vsub.f32 %v559, %v4972
        %v4974 = vand.u32 %v4973, 4294901760
        %4975 = vmatpush.msra.mxu0 %v4974
        %v4976 = vand.u32 %v546, 4294901760
        %v4977 = vsub.f32 %v546, %v4976
        %v4978 = vand.u32 %v4977, 4294901760
        %4979 = vmatpush.msra.mxu0 %v4978
        %v4980 = vand.u32 %v533, 4294901760
        %v4981 = vsub.f32 %v533, %v4980
        %v4982 = vand.u32 %v4981, 4294901760
        %4983 = vmatpush.msra.mxu0 %v4982
        %v4984 = vand.u32 %v520, 4294901760
        %v4985 = vsub.f32 %v520, %v4984
        %v4986 = vand.u32 %v4985, 4294901760
        %4987 = vmatpush.msra.mxu0 %v4986
        %v4988 = vand.u32 %v507, 4294901760
        %v4989 = vsub.f32 %v507, %v4988
        %v4990 = vand.u32 %v4989, 4294901760
        %4991 = vmatpush.msra.mxu0 %v4990
        %v4992 = vand.u32 %v494, 4294901760
        %v4993 = vsub.f32 %v494, %v4992
        %v4994 = vand.u32 %v4993, 4294901760
        %4995 = vmatpush.msra.mxu0 %v4994
        %v4996 = vand.u32 %v481, 4294901760
        %v4997 = vsub.f32 %v481, %v4996
        %v4998 = vand.u32 %v4997, 4294901760
        %4999 = vmatpush.msra.mxu0 %v4998
        %v5000 = vand.u32 %v468, 4294901760
        %v5001 = vsub.f32 %v468, %v5000
        %v5002 = vand.u32 %v5001, 4294901760
        %5003 = vmatpush.msra.mxu0 %v5002
        %v5004 = vand.u32 %v455, 4294901760
        %v5005 = vsub.f32 %v455, %v5004
        %v5006 = vand.u32 %v5005, 4294901760
        %5007 = vmatpush.msra.mxu0 %v5006
        %v5008 = vand.u32 %v442, 4294901760
        %v5009 = vsub.f32 %v442, %v5008
        %v5010 = vand.u32 %v5009, 4294901760
        %5011 = vmatpush.msra.mxu0 %v5010
        %v5012 = vand.u32 %v429, 4294901760
        %v5013 = vsub.f32 %v429, %v5012
        %v5014 = vand.u32 %v5013, 4294901760
        %5015 = vmatpush.msra.mxu0 %v5014
        %v5016 = vand.u32 %v416, 4294901760
        %5017 = vmatmul.f32.gmra.mxu0 %v5016
        %v5018 = vpop.f32.mrf.mxu0
        %v5019 = vadd.f32 %v4950, %v5018
        %5020 = vdwg.mxu0
        %v5021 = vand.u32 %v624, 4294901760
        %5022 = vmatpush.msra.mxu0 %v5021
        %v5023 = vand.u32 %v611, 4294901760
        %5024 = vmatpush.msra.mxu0 %v5023
        %v5025 = vand.u32 %v598, 4294901760
        %5026 = vmatpush.msra.mxu0 %v5025
        %v5027 = vand.u32 %v585, 4294901760
        %5028 = vmatpush.msra.mxu0 %v5027
        %v5029 = vand.u32 %v572, 4294901760
        %5030 = vmatpush.msra.mxu0 %v5029
        %v5031 = vand.u32 %v559, 4294901760
        %5032 = vmatpush.msra.mxu0 %v5031
        %v5033 = vand.u32 %v546, 4294901760
        %5034 = vmatpush.msra.mxu0 %v5033
        %v5035 = vand.u32 %v533, 4294901760
        %5036 = vmatpush.msra.mxu0 %v5035
        %v5037 = vand.u32 %v520, 4294901760
        %5038 = vmatpush.msra.mxu0 %v5037
        %v5039 = vand.u32 %v507, 4294901760
        %5040 = vmatpush.msra.mxu0 %v5039
        %v5041 = vand.u32 %v494, 4294901760
        %5042 = vmatpush.msra.mxu0 %v5041
        %v5043 = vand.u32 %v481, 4294901760
        %5044 = vmatpush.msra.mxu0 %v5043
        %v5045 = vand.u32 %v468, 4294901760
        %5046 = vmatpush.msra.mxu0 %v5045
        %v5047 = vand.u32 %v455, 4294901760
        %5048 = vmatpush.msra.mxu0 %v5047
        %v5049 = vand.u32 %v442, 4294901760
        %5050 = vmatpush.msra.mxu0 %v5049
        %v5051 = vand.u32 %v429, 4294901760
        %5052 = vmatpush.msra.mxu0 %v5051
        %v5053 = vand.u32 %v416, 4294901760
        %5054 = vmatmul.f32.gmra.mxu0 %v5053
        %v5055 = vpop.f32.mrf.mxu0
        %v5056 = vadd.f32 %v5019, %v5055
        %5057 = vdwg.mxu0
        %v5058 = vld [vmem:[%s2] sm:$0x1]
        %v5060 = vperm.slane %v5058, 0
        %v5062 = vadd.f32 %v964, %v5060
        %5064 = vset.pattern.permute.xlu0 61
        %5065 = vperm.xlu0 %5064, %v416
        %v5066 = vpop.permute.xlu0 %5065
        %v5068 = vmul.f32 %v5066, %v1305
        %v5069 = vadd.f32 %v5062, %v5068
        %5070 = vset.pattern.permute.xlu0 62
        %5071 = vperm.xlu0 %5070, %v416
        %v5072 = vpop.permute.xlu0 %5071
        %v5074 = vmul.f32 %v5072, %v1646
        %v5075 = vadd.f32 %v5069, %v5074
        %5076 = vset.pattern.permute.xlu0 63
        %5077 = vperm.xlu0 %5076, %v416
        %v5078 = vpop.permute.xlu0 %5077
        %v5080 = vmul.f32 %v5078, %v1987
        %v5081 = vadd.f32 %v5075, %v5080
        %5082 = vset.pattern.permute.xlu0 64
        %5083 = vperm.xlu0 %5082, %v416
        %v5084 = vpop.permute.xlu0 %5083
        %v5086 = vmul.f32 %v5084, %v2328
        %v5087 = vadd.f32 %v5081, %v5086
        %5088 = vset.pattern.permute.xlu0 65
        %5089 = vperm.xlu0 %5088, %v416
        %v5090 = vpop.permute.xlu0 %5089
        %v5092 = vmul.f32 %v5090, %v2669
        %v5093 = vadd.f32 %v5087, %v5092
        %5094 = vset.pattern.permute.xlu0 66
        %5095 = vperm.xlu0 %5094, %v416
        %v5096 = vpop.permute.xlu0 %5095
        %v5098 = vmul.f32 %v5096, %v3010
        %v5099 = vadd.f32 %v5093, %v5098
        %5100 = vset.pattern.permute.xlu0 67
        %5101 = vperm.xlu0 %5100, %v416
        %v5102 = vpop.permute.xlu0 %5101
        %v5104 = vmul.f32 %v5102, %v3351
        %v5105 = vadd.f32 %v5099, %v5104
        %5106 = vset.pattern.permute.xlu0 68
        %5107 = vperm.xlu0 %5106, %v416
        %v5108 = vpop.permute.xlu0 %5107
        %v5110 = vmul.f32 %v5108, %v3692
        %v5111 = vadd.f32 %v5105, %v5110
        %5112 = vset.pattern.permute.xlu0 69
        %5113 = vperm.xlu0 %5112, %v416
        %v5114 = vpop.permute.xlu0 %5113
        %v5116 = vmul.f32 %v5114, %v4033
        %v5117 = vadd.f32 %v5111, %v5116
        %5118 = vset.pattern.permute.xlu0 70
        %5119 = vperm.xlu0 %5118, %v416
        %v5120 = vpop.permute.xlu0 %5119
        %v5122 = vmul.f32 %v5120, %v4374
        %v5123 = vadd.f32 %v5117, %v5122
        %5124 = vset.pattern.permute.xlu0 71
        %5125 = vperm.xlu0 %5124, %v416
        %v5126 = vpop.permute.xlu0 %5125
        %v5128 = vmul.f32 %v5126, %v4715
        %v5129 = vadd.f32 %v5123, %v5128
        %5130 = vset.pattern.permute.xlu0 72
        %5131 = vperm.xlu0 %5130, %v416
        %v5132 = vpop.permute.xlu0 %5131
        %v5134 = vmul.f32 %v5132, %v5056
        %v5135 = vadd.f32 %v5129, %v5134
        %v5136 = vmax.f32 %v5135, 0.0
        %v5137 = vld [vmem:[#allocation7] sm:$0xff]
        %v5138 = vld [vmem:[#allocation7 + $0x8] sm:$0xff]
        %v5139 = vld [vmem:[#allocation7 + $0x10] sm:$0xff]
        %v5140 = vld [vmem:[#allocation7 + $0x18] sm:$0xff]
        %v5141 = vld [vmem:[#allocation7 + $0x20] sm:$0xff]
        %v5142 = vld [vmem:[#allocation7 + $0x28] sm:$0xff]
        %v5143 = vld [vmem:[#allocation7 + $0x30] sm:$0xff]
        %v5144 = vld [vmem:[#allocation7 + $0x38] sm:$0xff]
        %v5145 = vld [vmem:[#allocation7 + $0x40] sm:$0xff]
        %v5146 = vld [vmem:[#allocation7 + $0x48] sm:$0xff]
        %v5147 = vld [vmem:[#allocation7 + $0x50] sm:$0xff]
        %v5148 = vld [vmem:[#allocation7 + $0x58] sm:$0xff]
        %v5149 = vld [vmem:[#allocation7 + $0x60] sm:$0xff]
        %v5150 = vld [vmem:[#allocation7 + $0x68] sm:$0xff]
        %v5151 = vld [vmem:[#allocation7 + $0x70] sm:$0xff]
        %v5152 = vld [vmem:[#allocation7 + $0x78] sm:$0xff]
        %v5153 = vld [vmem:[%s4] sm:$0x1]
        %v5155 = vperm.slane %v5153, 0
        %v5157 = vand.u32 %v5152, 4294901760
        %5158 = vmatpush.msra.mxu0 %v5157
        %v5159 = vand.u32 %v5151, 4294901760
        %5160 = vmatpush.msra.mxu0 %v5159
        %v5161 = vand.u32 %v5150, 4294901760
        %5162 = vmatpush.msra.mxu0 %v5161
        %v5163 = vand.u32 %v5149, 4294901760
        %5164 = vmatpush.msra.mxu0 %v5163
        %v5165 = vand.u32 %v5148, 4294901760
        %5166 = vmatpush.msra.mxu0 %v5165
        %v5167 = vand.u32 %v5147, 4294901760
        %5168 = vmatpush.msra.mxu0 %v5167
        %v5169 = vand.u32 %v5146, 4294901760
        %5170 = vmatpush.msra.mxu0 %v5169
        %v5171 = vand.u32 %v5145, 4294901760
        %5172 = vmatpush.msra.mxu0 %v5171
        %v5173 = vand.u32 %v5144, 4294901760
        %5174 = vmatpush.msra.mxu0 %v5173
        %v5175 = vand.u32 %v5143, 4294901760
        %5176 = vmatpush.msra.mxu0 %v5175
        %v5177 = vand.u32 %v5142, 4294901760
        %5178 = vmatpush.msra.mxu0 %v5177
        %v5179 = vand.u32 %v5141, 4294901760
        %5180 = vmatpush.msra.mxu0 %v5179
        %v5181 = vand.u32 %v5140, 4294901760
        %5182 = vmatpush.msra.mxu0 %v5181
        %v5183 = vand.u32 %v5139, 4294901760
        %5184 = vmatpush.msra.mxu0 %v5183
        %v5185 = vand.u32 %v5138, 4294901760
        %5186 = vmatpush.msra.mxu0 %v5185
        %v5187 = vand.u32 %v5137, 4294901760
        %5188 = vmatpush.msra.mxu0 %v5187
        %v5189 = vand.u32 %v5136, 4294901760
        %v5190 = vsub.f32 %v5136, %v5189
        %v5191 = vand.u32 %v5190, 4294901760
        %v5192 = vsub.f32 %v5190, %v5191
        %v5193 = vand.u32 %v5192, 4294901760
        %5194 = vmatmul.f32.gmra.mxu0 %v5193
        %v5195 = vpop.f32.mrf.mxu0
        %v5196 = vadd.f32 %v5155, %v5195
        %5197 = vdwg.mxu0
        %v5198 = vand.u32 %v5152, 4294901760
        %v5199 = vsub.f32 %v5152, %v5198
        %v5200 = vand.u32 %v5199, 4294901760
        %v5201 = vsub.f32 %v5199, %v5200
        %v5202 = vand.u32 %v5201, 4294901760
        %5203 = vmatpush.msra.mxu0 %v5202
        %v5204 = vand.u32 %v5151, 4294901760
        %v5205 = vsub.f32 %v5151, %v5204
        %v5206 = vand.u32 %v5205, 4294901760
        %v5207 = vsub.f32 %v5205, %v5206
        %v5208 = vand.u32 %v5207, 4294901760
        %5209 = vmatpush.msra.mxu0 %v5208
        %v5210 = vand.u32 %v5150, 4294901760
        %v5211 = vsub.f32 %v5150, %v5210
        %v5212 = vand.u32 %v5211, 4294901760
        %v5213 = vsub.f32 %v5211, %v5212
        %v5214 = vand.u32 %v5213, 4294901760
        %5215 = vmatpush.msra.mxu0 %v5214
        %v5216 = vand.u32 %v5149, 4294901760
        %v5217 = vsub.f32 %v5149, %v5216
        %v5218 = vand.u32 %v5217, 4294901760
        %v5219 = vsub.f32 %v5217, %v5218
        %v5220 = vand.u32 %v5219, 4294901760
        %5221 = vmatpush.msra.mxu0 %v5220
        %v5222 = vand.u32 %v5148, 4294901760
        %v5223 = vsub.f32 %v5148, %v5222
        %v5224 = vand.u32 %v5223, 4294901760
        %v5225 = vsub.f32 %v5223, %v5224
        %v5226 = vand.u32 %v5225, 4294901760
        %5227 = vmatpush.msra.mxu0 %v5226
        %v5228 = vand.u32 %v5147, 4294901760
        %v5229 = vsub.f32 %v5147, %v5228
        %v5230 = vand.u32 %v5229, 4294901760
        %v5231 = vsub.f32 %v5229, %v5230
        %v5232 = vand.u32 %v5231, 4294901760
        %5233 = vmatpush.msra.mxu0 %v5232
        %v5234 = vand.u32 %v5146, 4294901760
        %v5235 = vsub.f32 %v5146, %v5234
        %v5236 = vand.u32 %v5235, 4294901760
        %v5237 = vsub.f32 %v5235, %v5236
        %v5238 = vand.u32 %v5237, 4294901760
        %5239 = vmatpush.msra.mxu0 %v5238
        %v5240 = vand.u32 %v5145, 4294901760
        %v5241 = vsub.f32 %v5145, %v5240
        %v5242 = vand.u32 %v5241, 4294901760
        %v5243 = vsub.f32 %v5241, %v5242
        %v5244 = vand.u32 %v5243, 4294901760
        %5245 = vmatpush.msra.mxu0 %v5244
        %v5246 = vand.u32 %v5144, 4294901760
        %v5247 = vsub.f32 %v5144, %v5246
        %v5248 = vand.u32 %v5247, 4294901760
        %v5249 = vsub.f32 %v5247, %v5248
        %v5250 = vand.u32 %v5249, 4294901760
        %5251 = vmatpush.msra.mxu0 %v5250
        %v5252 = vand.u32 %v5143, 4294901760
        %v5253 = vsub.f32 %v5143, %v5252
        %v5254 = vand.u32 %v5253, 4294901760
        %v5255 = vsub.f32 %v5253, %v5254
        %v5256 = vand.u32 %v5255, 4294901760
        %5257 = vmatpush.msra.mxu0 %v5256
        %v5258 = vand.u32 %v5142, 4294901760
        %v5259 = vsub.f32 %v5142, %v5258
        %v5260 = vand.u32 %v5259, 4294901760
        %v5261 = vsub.f32 %v5259, %v5260
        %v5262 = vand.u32 %v5261, 4294901760
        %5263 = vmatpush.msra.mxu0 %v5262
        %v5264 = vand.u32 %v5141, 4294901760
        %v5265 = vsub.f32 %v5141, %v5264
        %v5266 = vand.u32 %v5265, 4294901760
        %v5267 = vsub.f32 %v5265, %v5266
        %v5268 = vand.u32 %v5267, 4294901760
        %5269 = vmatpush.msra.mxu0 %v5268
        %v5270 = vand.u32 %v5140, 4294901760
        %v5271 = vsub.f32 %v5140, %v5270
        %v5272 = vand.u32 %v5271, 4294901760
        %v5273 = vsub.f32 %v5271, %v5272
        %v5274 = vand.u32 %v5273, 4294901760
        %5275 = vmatpush.msra.mxu0 %v5274
        %v5276 = vand.u32 %v5139, 4294901760
        %v5277 = vsub.f32 %v5139, %v5276
        %v5278 = vand.u32 %v5277, 4294901760
        %v5279 = vsub.f32 %v5277, %v5278
        %v5280 = vand.u32 %v5279, 4294901760
        %5281 = vmatpush.msra.mxu0 %v5280
        %v5282 = vand.u32 %v5138, 4294901760
        %v5283 = vsub.f32 %v5138, %v5282
        %v5284 = vand.u32 %v5283, 4294901760
        %v5285 = vsub.f32 %v5283, %v5284
        %v5286 = vand.u32 %v5285, 4294901760
        %5287 = vmatpush.msra.mxu0 %v5286
        %v5288 = vand.u32 %v5137, 4294901760
        %v5289 = vsub.f32 %v5137, %v5288
        %v5290 = vand.u32 %v5289, 4294901760
        %v5291 = vsub.f32 %v5289, %v5290
        %v5292 = vand.u32 %v5291, 4294901760
        %5293 = vmatpush.msra.mxu0 %v5292
        %v5294 = vand.u32 %v5136, 4294901760
        %5295 = vmatmul.f32.gmra.mxu0 %v5294
        %v5296 = vpop.f32.mrf.mxu0
        %v5297 = vadd.f32 %v5196, %v5296
        %5298 = vdwg.mxu0
        %v5299 = vand.u32 %v5152, 4294901760
        %v5300 = vsub.f32 %v5152, %v5299
        %5301 = vmatpush.msra.mxu0 %v5300
        %v5302 = vand.u32 %v5151, 4294901760
        %v5303 = vsub.f32 %v5151, %v5302
        %5304 = vmatpush.msra.mxu0 %v5303
        %v5305 = vand.u32 %v5150, 4294901760
        %v5306 = vsub.f32 %v5150, %v5305
        %5307 = vmatpush.msra.mxu0 %v5306
        %v5308 = vand.u32 %v5149, 4294901760
        %v5309 = vsub.f32 %v5149, %v5308
        %5310 = vmatpush.msra.mxu0 %v5309
        %v5311 = vand.u32 %v5148, 4294901760
        %v5312 = vsub.f32 %v5148, %v5311
        %5313 = vmatpush.msra.mxu0 %v5312
        %v5314 = vand.u32 %v5147, 4294901760
        %v5315 = vsub.f32 %v5147, %v5314
        %5316 = vmatpush.msra.mxu0 %v5315
        %v5317 = vand.u32 %v5146, 4294901760
        %v5318 = vsub.f32 %v5146, %v5317
        %5319 = vmatpush.msra.mxu0 %v5318
        %v5320 = vand.u32 %v5145, 4294901760
        %v5321 = vsub.f32 %v5145, %v5320
        %5322 = vmatpush.msra.mxu0 %v5321
        %v5323 = vand.u32 %v5144, 4294901760
        %v5324 = vsub.f32 %v5144, %v5323
        %5325 = vmatpush.msra.mxu0 %v5324
        %v5326 = vand.u32 %v5143, 4294901760
        %v5327 = vsub.f32 %v5143, %v5326
        %5328 = vmatpush.msra.mxu0 %v5327
        %v5329 = vand.u32 %v5142, 4294901760
        %v5330 = vsub.f32 %v5142, %v5329
        %5331 = vmatpush.msra.mxu0 %v5330
        %v5332 = vand.u32 %v5141, 4294901760
        %v5333 = vsub.f32 %v5141, %v5332
        %5334 = vmatpush.msra.mxu0 %v5333
        %v5335 = vand.u32 %v5140, 4294901760
        %v5336 = vsub.f32 %v5140, %v5335
        %5337 = vmatpush.msra.mxu0 %v5336
        %v5338 = vand.u32 %v5139, 4294901760
        %v5339 = vsub.f32 %v5139, %v5338
        %5340 = vmatpush.msra.mxu0 %v5339
        %v5341 = vand.u32 %v5138, 4294901760
        %v5342 = vsub.f32 %v5138, %v5341
        %5343 = vmatpush.msra.mxu0 %v5342
        %v5344 = vand.u32 %v5137, 4294901760
        %v5345 = vsub.f32 %v5137, %v5344
        %5346 = vmatpush.msra.mxu0 %v5345
        %v5347 = vand.u32 %v5136, 4294901760
        %v5348 = vsub.f32 %v5136, %v5347
        %5349 = vmatmul.f32.gmra.mxu0 %v5348
        %v5350 = vpop.f32.mrf.mxu0
        %v5351 = vadd.f32 %v5297, %v5350
        %5352 = vdwg.mxu0
        %v5353 = vand.u32 %v5152, 4294901760
        %5354 = vmatpush.msra.mxu0 %v5353
        %v5355 = vand.u32 %v5151, 4294901760
        %5356 = vmatpush.msra.mxu0 %v5355
        %v5357 = vand.u32 %v5150, 4294901760
        %5358 = vmatpush.msra.mxu0 %v5357
        %v5359 = vand.u32 %v5149, 4294901760
        %5360 = vmatpush.msra.mxu0 %v5359
        %v5361 = vand.u32 %v5148, 4294901760
        %5362 = vmatpush.msra.mxu0 %v5361
        %v5363 = vand.u32 %v5147, 4294901760
        %5364 = vmatpush.msra.mxu0 %v5363
        %v5365 = vand.u32 %v5146, 4294901760
        %5366 = vmatpush.msra.mxu0 %v5365
        %v5367 = vand.u32 %v5145, 4294901760
        %5368 = vmatpush.msra.mxu0 %v5367
        %v5369 = vand.u32 %v5144, 4294901760
        %5370 = vmatpush.msra.mxu0 %v5369
        %v5371 = vand.u32 %v5143, 4294901760
        %5372 = vmatpush.msra.mxu0 %v5371
        %v5373 = vand.u32 %v5142, 4294901760
        %5374 = vmatpush.msra.mxu0 %v5373
        %v5375 = vand.u32 %v5141, 4294901760
        %5376 = vmatpush.msra.mxu0 %v5375
        %v5377 = vand.u32 %v5140, 4294901760
        %5378 = vmatpush.msra.mxu0 %v5377
        %v5379 = vand.u32 %v5139, 4294901760
        %5380 = vmatpush.msra.mxu0 %v5379
        %v5381 = vand.u32 %v5138, 4294901760
        %5382 = vmatpush.msra.mxu0 %v5381
        %v5383 = vand.u32 %v5137, 4294901760
        %5384 = vmatpush.msra.mxu0 %v5383
        %v5385 = vand.u32 %v5136, 4294901760
        %v5386 = vsub.f32 %v5136, %v5385
        %v5387 = vand.u32 %v5386, 4294901760
        %5388 = vmatmul.f32.gmra.mxu0 %v5387
        %v5389 = vpop.f32.mrf.mxu0
        %v5390 = vadd.f32 %v5351, %v5389
        %5391 = vdwg.mxu0
        %v5392 = vand.u32 %v5152, 4294901760
        %v5393 = vsub.f32 %v5152, %v5392
        %v5394 = vand.u32 %v5393, 4294901760
        %5395 = vmatpush.msra.mxu0 %v5394
        %v5396 = vand.u32 %v5151, 4294901760
        %v5397 = vsub.f32 %v5151, %v5396
        %v5398 = vand.u32 %v5397, 4294901760
        %5399 = vmatpush.msra.mxu0 %v5398
        %v5400 = vand.u32 %v5150, 4294901760
        %v5401 = vsub.f32 %v5150, %v5400
        %v5402 = vand.u32 %v5401, 4294901760
        %5403 = vmatpush.msra.mxu0 %v5402
        %v5404 = vand.u32 %v5149, 4294901760
        %v5405 = vsub.f32 %v5149, %v5404
        %v5406 = vand.u32 %v5405, 4294901760
        %5407 = vmatpush.msra.mxu0 %v5406
        %v5408 = vand.u32 %v5148, 4294901760
        %v5409 = vsub.f32 %v5148, %v5408
        %v5410 = vand.u32 %v5409, 4294901760
        %5411 = vmatpush.msra.mxu0 %v5410
        %v5412 = vand.u32 %v5147, 4294901760
        %v5413 = vsub.f32 %v5147, %v5412
        %v5414 = vand.u32 %v5413, 4294901760
        %5415 = vmatpush.msra.mxu0 %v5414
        %v5416 = vand.u32 %v5146, 4294901760
        %v5417 = vsub.f32 %v5146, %v5416
        %v5418 = vand.u32 %v5417, 4294901760
        %5419 = vmatpush.msra.mxu0 %v5418
        %v5420 = vand.u32 %v5145, 4294901760
        %v5421 = vsub.f32 %v5145, %v5420
        %v5422 = vand.u32 %v5421, 4294901760
        %5423 = vmatpush.msra.mxu0 %v5422
        %v5424 = vand.u32 %v5144, 4294901760
        %v5425 = vsub.f32 %v5144, %v5424
        %v5426 = vand.u32 %v5425, 4294901760
        %5427 = vmatpush.msra.mxu0 %v5426
        %v5428 = vand.u32 %v5143, 4294901760
        %v5429 = vsub.f32 %v5143, %v5428
        %v5430 = vand.u32 %v5429, 4294901760
        %5431 = vmatpush.msra.mxu0 %v5430
        %v5432 = vand.u32 %v5142, 4294901760
        %v5433 = vsub.f32 %v5142, %v5432
        %v5434 = vand.u32 %v5433, 4294901760
        %5435 = vmatpush.msra.mxu0 %v5434
        %v5436 = vand.u32 %v5141, 4294901760
        %v5437 = vsub.f32 %v5141, %v5436
        %v5438 = vand.u32 %v5437, 4294901760
        %5439 = vmatpush.msra.mxu0 %v5438
        %v5440 = vand.u32 %v5140, 4294901760
        %v5441 = vsub.f32 %v5140, %v5440
        %v5442 = vand.u32 %v5441, 4294901760
        %5443 = vmatpush.msra.mxu0 %v5442
        %v5444 = vand.u32 %v5139, 4294901760
        %v5445 = vsub.f32 %v5139, %v5444
        %v5446 = vand.u32 %v5445, 4294901760
        %5447 = vmatpush.msra.mxu0 %v5446
        %v5448 = vand.u32 %v5138, 4294901760
        %v5449 = vsub.f32 %v5138, %v5448
        %v5450 = vand.u32 %v5449, 4294901760
        %5451 = vmatpush.msra.mxu0 %v5450
        %v5452 = vand.u32 %v5137, 4294901760
        %v5453 = vsub.f32 %v5137, %v5452
        %v5454 = vand.u32 %v5453, 4294901760
        %5455 = vmatpush.msra.mxu0 %v5454
        %v5456 = vand.u32 %v5136, 4294901760
        %5457 = vmatmul.f32.gmra.mxu0 %v5456
        %v5458 = vpop.f32.mrf.mxu0
        %v5459 = vadd.f32 %v5390, %v5458
        %5460 = vdwg.mxu0
        %v5461 = vand.u32 %v5152, 4294901760
        %5462 = vmatpush.msra.mxu0 %v5461
        %v5463 = vand.u32 %v5151, 4294901760
        %5464 = vmatpush.msra.mxu0 %v5463
        %v5465 = vand.u32 %v5150, 4294901760
        %5466 = vmatpush.msra.mxu0 %v5465
        %v5467 = vand.u32 %v5149, 4294901760
        %5468 = vmatpush.msra.mxu0 %v5467
        %v5469 = vand.u32 %v5148, 4294901760
        %5470 = vmatpush.msra.mxu0 %v5469
        %v5471 = vand.u32 %v5147, 4294901760
        %5472 = vmatpush.msra.mxu0 %v5471
        %v5473 = vand.u32 %v5146, 4294901760
        %5474 = vmatpush.msra.mxu0 %v5473
        %v5475 = vand.u32 %v5145, 4294901760
        %5476 = vmatpush.msra.mxu0 %v5475
        %v5477 = vand.u32 %v5144, 4294901760
        %5478 = vmatpush.msra.mxu0 %v5477
        %v5479 = vand.u32 %v5143, 4294901760
        %5480 = vmatpush.msra.mxu0 %v5479
        %v5481 = vand.u32 %v5142, 4294901760
        %5482 = vmatpush.msra.mxu0 %v5481
        %v5483 = vand.u32 %v5141, 4294901760
        %5484 = vmatpush.msra.mxu0 %v5483
        %v5485 = vand.u32 %v5140, 4294901760
        %5486 = vmatpush.msra.mxu0 %v5485
        %v5487 = vand.u32 %v5139, 4294901760
        %5488 = vmatpush.msra.mxu0 %v5487
        %v5489 = vand.u32 %v5138, 4294901760
        %5490 = vmatpush.msra.mxu0 %v5489
        %v5491 = vand.u32 %v5137, 4294901760
        %5492 = vmatpush.msra.mxu0 %v5491
        %v5493 = vand.u32 %v5136, 4294901760
        %5494 = vmatmul.f32.gmra.mxu0 %v5493
        %v5495 = vpop.f32.mrf.mxu0
        %v5496 = vadd.f32 %v5459, %v5495
        %5497 = vdwg.mxu0
        %v5498 = vmax.f32 %v5496, 0.0
        %v5499 = vld [vmem:[#allocation8] sm:$0xff]
        %v5500 = vld [vmem:[#allocation8 + $0x8] sm:$0xff]
        %v5501 = vld [vmem:[#allocation8 + $0x10] sm:$0xff]
        %v5502 = vld [vmem:[#allocation8 + $0x18] sm:$0xff]
        %v5503 = vld [vmem:[#allocation8 + $0x20] sm:$0xff]
        %v5504 = vld [vmem:[#allocation8 + $0x28] sm:$0xff]
        %v5505 = vld [vmem:[#allocation8 + $0x30] sm:$0xff]
        %v5506 = vld [vmem:[#allocation8 + $0x38] sm:$0xff]
        %v5507 = vld [vmem:[#allocation8 + $0x40] sm:$0xff]
        %v5508 = vld [vmem:[#allocation8 + $0x48] sm:$0xff]
        %v5509 = vld [vmem:[#allocation8 + $0x50] sm:$0xff]
        %v5510 = vld [vmem:[#allocation8 + $0x58] sm:$0xff]
        %v5511 = vld [vmem:[#allocation8 + $0x60] sm:$0xff]
        %v5512 = vld [vmem:[#allocation8 + $0x68] sm:$0xff]
        %v5513 = vld [vmem:[#allocation8 + $0x70] sm:$0xff]
        %v5514 = vld [vmem:[#allocation8 + $0x78] sm:$0xff]
        %v5515 = vld [vmem:[%s6] sm:$0x1]
        %v5517 = vperm.slane %v5515, 0
        %v5519 = vand.u32 %v5514, 4294901760
        %5520 = vmatpush.msra.mxu0 %v5519
        %v5521 = vand.u32 %v5513, 4294901760
        %5522 = vmatpush.msra.mxu0 %v5521
        %v5523 = vand.u32 %v5512, 4294901760
        %5524 = vmatpush.msra.mxu0 %v5523
        %v5525 = vand.u32 %v5511, 4294901760
        %5526 = vmatpush.msra.mxu0 %v5525
        %v5527 = vand.u32 %v5510, 4294901760
        %5528 = vmatpush.msra.mxu0 %v5527
        %v5529 = vand.u32 %v5509, 4294901760
        %5530 = vmatpush.msra.mxu0 %v5529
        %v5531 = vand.u32 %v5508, 4294901760
        %5532 = vmatpush.msra.mxu0 %v5531
        %v5533 = vand.u32 %v5507, 4294901760
        %5534 = vmatpush.msra.mxu0 %v5533
        %v5535 = vand.u32 %v5506, 4294901760
        %5536 = vmatpush.msra.mxu0 %v5535
        %v5537 = vand.u32 %v5505, 4294901760
        %5538 = vmatpush.msra.mxu0 %v5537
        %v5539 = vand.u32 %v5504, 4294901760
        %5540 = vmatpush.msra.mxu0 %v5539
        %v5541 = vand.u32 %v5503, 4294901760
        %5542 = vmatpush.msra.mxu0 %v5541
        %v5543 = vand.u32 %v5502, 4294901760
        %5544 = vmatpush.msra.mxu0 %v5543
        %v5545 = vand.u32 %v5501, 4294901760
        %5546 = vmatpush.msra.mxu0 %v5545
        %v5547 = vand.u32 %v5500, 4294901760
        %5548 = vmatpush.msra.mxu0 %v5547
        %v5549 = vand.u32 %v5499, 4294901760
        %5550 = vmatpush.msra.mxu0 %v5549
        %v5551 = vand.u32 %v5498, 4294901760
        %v5552 = vsub.f32 %v5498, %v5551
        %v5553 = vand.u32 %v5552, 4294901760
        %v5554 = vsub.f32 %v5552, %v5553
        %v5555 = vand.u32 %v5554, 4294901760
        %5556 = vmatmul.f32.gmra.mxu0 %v5555
        %v5557 = vpop.f32.mrf.mxu0
        %v5558 = vadd.f32 %v5517, %v5557
        %5559 = vdwg.mxu0
        %v5560 = vand.u32 %v5514, 4294901760
        %v5561 = vsub.f32 %v5514, %v5560
        %v5562 = vand.u32 %v5561, 4294901760
        %v5563 = vsub.f32 %v5561, %v5562
        %v5564 = vand.u32 %v5563, 4294901760
        %5565 = vmatpush.msra.mxu0 %v5564
        %v5566 = vand.u32 %v5513, 4294901760
        %v5567 = vsub.f32 %v5513, %v5566
        %v5568 = vand.u32 %v5567, 4294901760
        %v5569 = vsub.f32 %v5567, %v5568
        %v5570 = vand.u32 %v5569, 4294901760
        %5571 = vmatpush.msra.mxu0 %v5570
        %v5572 = vand.u32 %v5512, 4294901760
        %v5573 = vsub.f32 %v5512, %v5572
        %v5574 = vand.u32 %v5573, 4294901760
        %v5575 = vsub.f32 %v5573, %v5574
        %v5576 = vand.u32 %v5575, 4294901760
        %5577 = vmatpush.msra.mxu0 %v5576
        %v5578 = vand.u32 %v5511, 4294901760
        %v5579 = vsub.f32 %v5511, %v5578
        %v5580 = vand.u32 %v5579, 4294901760
        %v5581 = vsub.f32 %v5579, %v5580
        %v5582 = vand.u32 %v5581, 4294901760
        %5583 = vmatpush.msra.mxu0 %v5582
        %v5584 = vand.u32 %v5510, 4294901760
        %v5585 = vsub.f32 %v5510, %v5584
        %v5586 = vand.u32 %v5585, 4294901760
        %v5587 = vsub.f32 %v5585, %v5586
        %v5588 = vand.u32 %v5587, 4294901760
        %5589 = vmatpush.msra.mxu0 %v5588
        %v5590 = vand.u32 %v5509, 4294901760
        %v5591 = vsub.f32 %v5509, %v5590
        %v5592 = vand.u32 %v5591, 4294901760
        %v5593 = vsub.f32 %v5591, %v5592
        %v5594 = vand.u32 %v5593, 4294901760
        %5595 = vmatpush.msra.mxu0 %v5594
        %v5596 = vand.u32 %v5508, 4294901760
        %v5597 = vsub.f32 %v5508, %v5596
        %v5598 = vand.u32 %v5597, 4294901760
        %v5599 = vsub.f32 %v5597, %v5598
        %v5600 = vand.u32 %v5599, 4294901760
        %5601 = vmatpush.msra.mxu0 %v5600
        %v5602 = vand.u32 %v5507, 4294901760
        %v5603 = vsub.f32 %v5507, %v5602
        %v5604 = vand.u32 %v5603, 4294901760
        %v5605 = vsub.f32 %v5603, %v5604
        %v5606 = vand.u32 %v5605, 4294901760
        %5607 = vmatpush.msra.mxu0 %v5606
        %v5608 = vand.u32 %v5506, 4294901760
        %v5609 = vsub.f32 %v5506, %v5608
        %v5610 = vand.u32 %v5609, 4294901760
        %v5611 = vsub.f32 %v5609, %v5610
        %v5612 = vand.u32 %v5611, 4294901760
        %5613 = vmatpush.msra.mxu0 %v5612
        %v5614 = vand.u32 %v5505, 4294901760
        %v5615 = vsub.f32 %v5505, %v5614
        %v5616 = vand.u32 %v5615, 4294901760
        %v5617 = vsub.f32 %v5615, %v5616
        %v5618 = vand.u32 %v5617, 4294901760
        %5619 = vmatpush.msra.mxu0 %v5618
        %v5620 = vand.u32 %v5504, 4294901760
        %v5621 = vsub.f32 %v5504, %v5620
        %v5622 = vand.u32 %v5621, 4294901760
        %v5623 = vsub.f32 %v5621, %v5622
        %v5624 = vand.u32 %v5623, 4294901760
        %5625 = vmatpush.msra.mxu0 %v5624
        %v5626 = vand.u32 %v5503, 4294901760
        %v5627 = vsub.f32 %v5503, %v5626
        %v5628 = vand.u32 %v5627, 4294901760
        %v5629 = vsub.f32 %v5627, %v5628
        %v5630 = vand.u32 %v5629, 4294901760
        %5631 = vmatpush.msra.mxu0 %v5630
        %v5632 = vand.u32 %v5502, 4294901760
        %v5633 = vsub.f32 %v5502, %v5632
        %v5634 = vand.u32 %v5633, 4294901760
        %v5635 = vsub.f32 %v5633, %v5634
        %v5636 = vand.u32 %v5635, 4294901760
        %5637 = vmatpush.msra.mxu0 %v5636
        %v5638 = vand.u32 %v5501, 4294901760
        %v5639 = vsub.f32 %v5501, %v5638
        %v5640 = vand.u32 %v5639, 4294901760
        %v5641 = vsub.f32 %v5639, %v5640
        %v5642 = vand.u32 %v5641, 4294901760
        %5643 = vmatpush.msra.mxu0 %v5642
        %v5644 = vand.u32 %v5500, 4294901760
        %v5645 = vsub.f32 %v5500, %v5644
        %v5646 = vand.u32 %v5645, 4294901760
        %v5647 = vsub.f32 %v5645, %v5646
        %v5648 = vand.u32 %v5647, 4294901760
        %5649 = vmatpush.msra.mxu0 %v5648
        %v5650 = vand.u32 %v5499, 4294901760
        %v5651 = vsub.f32 %v5499, %v5650
        %v5652 = vand.u32 %v5651, 4294901760
        %v5653 = vsub.f32 %v5651, %v5652
        %v5654 = vand.u32 %v5653, 4294901760
        %5655 = vmatpush.msra.mxu0 %v5654
        %v5656 = vand.u32 %v5498, 4294901760
        %5657 = vmatmul.f32.gmra.mxu0 %v5656
        %v5658 = vpop.f32.mrf.mxu0
        %v5659 = vadd.f32 %v5558, %v5658
        %5660 = vdwg.mxu0
        %v5661 = vand.u32 %v5514, 4294901760
        %v5662 = vsub.f32 %v5514, %v5661
        %5663 = vmatpush.msra.mxu0 %v5662
        %v5664 = vand.u32 %v5513, 4294901760
        %v5665 = vsub.f32 %v5513, %v5664
        %5666 = vmatpush.msra.mxu0 %v5665
        %v5667 = vand.u32 %v5512, 4294901760
        %v5668 = vsub.f32 %v5512, %v5667
        %5669 = vmatpush.msra.mxu0 %v5668
        %v5670 = vand.u32 %v5511, 4294901760
        %v5671 = vsub.f32 %v5511, %v5670
        %5672 = vmatpush.msra.mxu0 %v5671
        %v5673 = vand.u32 %v5510, 4294901760
        %v5674 = vsub.f32 %v5510, %v5673
        %5675 = vmatpush.msra.mxu0 %v5674
        %v5676 = vand.u32 %v5509, 4294901760
        %v5677 = vsub.f32 %v5509, %v5676
        %5678 = vmatpush.msra.mxu0 %v5677
        %v5679 = vand.u32 %v5508, 4294901760
        %v5680 = vsub.f32 %v5508, %v5679
        %5681 = vmatpush.msra.mxu0 %v5680
        %v5682 = vand.u32 %v5507, 4294901760
        %v5683 = vsub.f32 %v5507, %v5682
        %5684 = vmatpush.msra.mxu0 %v5683
        %v5685 = vand.u32 %v5506, 4294901760
        %v5686 = vsub.f32 %v5506, %v5685
        %5687 = vmatpush.msra.mxu0 %v5686
        %v5688 = vand.u32 %v5505, 4294901760
        %v5689 = vsub.f32 %v5505, %v5688
        %5690 = vmatpush.msra.mxu0 %v5689
        %v5691 = vand.u32 %v5504, 4294901760
        %v5692 = vsub.f32 %v5504, %v5691
        %5693 = vmatpush.msra.mxu0 %v5692
        %v5694 = vand.u32 %v5503, 4294901760
        %v5695 = vsub.f32 %v5503, %v5694
        %5696 = vmatpush.msra.mxu0 %v5695
        %v5697 = vand.u32 %v5502, 4294901760
        %v5698 = vsub.f32 %v5502, %v5697
        %5699 = vmatpush.msra.mxu0 %v5698
        %v5700 = vand.u32 %v5501, 4294901760
        %v5701 = vsub.f32 %v5501, %v5700
        %5702 = vmatpush.msra.mxu0 %v5701
        %v5703 = vand.u32 %v5500, 4294901760
        %v5704 = vsub.f32 %v5500, %v5703
        %5705 = vmatpush.msra.mxu0 %v5704
        %v5706 = vand.u32 %v5499, 4294901760
        %v5707 = vsub.f32 %v5499, %v5706
        %5708 = vmatpush.msra.mxu0 %v5707
        %v5709 = vand.u32 %v5498, 4294901760
        %v5710 = vsub.f32 %v5498, %v5709
        %5711 = vmatmul.f32.gmra.mxu0 %v5710
        %v5712 = vpop.f32.mrf.mxu0
        %v5713 = vadd.f32 %v5659, %v5712
        %5714 = vdwg.mxu0
        %v5715 = vand.u32 %v5514, 4294901760
        %5716 = vmatpush.msra.mxu0 %v5715
        %v5717 = vand.u32 %v5513, 4294901760
        %5718 = vmatpush.msra.mxu0 %v5717
        %v5719 = vand.u32 %v5512, 4294901760
        %5720 = vmatpush.msra.mxu0 %v5719
        %v5721 = vand.u32 %v5511, 4294901760
        %5722 = vmatpush.msra.mxu0 %v5721
        %v5723 = vand.u32 %v5510, 4294901760
        %5724 = vmatpush.msra.mxu0 %v5723
        %v5725 = vand.u32 %v5509, 4294901760
        %5726 = vmatpush.msra.mxu0 %v5725
        %v5727 = vand.u32 %v5508, 4294901760
        %5728 = vmatpush.msra.mxu0 %v5727
        %v5729 = vand.u32 %v5507, 4294901760
        %5730 = vmatpush.msra.mxu0 %v5729
        %v5731 = vand.u32 %v5506, 4294901760
        %5732 = vmatpush.msra.mxu0 %v5731
        %v5733 = vand.u32 %v5505, 4294901760
        %5734 = vmatpush.msra.mxu0 %v5733
        %v5735 = vand.u32 %v5504, 4294901760
        %5736 = vmatpush.msra.mxu0 %v5735
        %v5737 = vand.u32 %v5503, 4294901760
        %5738 = vmatpush.msra.mxu0 %v5737
        %v5739 = vand.u32 %v5502, 4294901760
        %5740 = vmatpush.msra.mxu0 %v5739
        %v5741 = vand.u32 %v5501, 4294901760
        %5742 = vmatpush.msra.mxu0 %v5741
        %v5743 = vand.u32 %v5500, 4294901760
        %5744 = vmatpush.msra.mxu0 %v5743
        %v5745 = vand.u32 %v5499, 4294901760
        %5746 = vmatpush.msra.mxu0 %v5745
        %v5747 = vand.u32 %v5498, 4294901760
        %v5748 = vsub.f32 %v5498, %v5747
        %v5749 = vand.u32 %v5748, 4294901760
        %5750 = vmatmul.f32.gmra.mxu0 %v5749
        %v5751 = vpop.f32.mrf.mxu0
        %v5752 = vadd.f32 %v5713, %v5751
        %5753 = vdwg.mxu0
        %v5754 = vand.u32 %v5514, 4294901760
        %v5755 = vsub.f32 %v5514, %v5754
        %v5756 = vand.u32 %v5755, 4294901760
        %5757 = vmatpush.msra.mxu0 %v5756
        %v5758 = vand.u32 %v5513, 4294901760
        %v5759 = vsub.f32 %v5513, %v5758
        %v5760 = vand.u32 %v5759, 4294901760
        %5761 = vmatpush.msra.mxu0 %v5760
        %v5762 = vand.u32 %v5512, 4294901760
        %v5763 = vsub.f32 %v5512, %v5762
        %v5764 = vand.u32 %v5763, 4294901760
        %5765 = vmatpush.msra.mxu0 %v5764
        %v5766 = vand.u32 %v5511, 4294901760
        %v5767 = vsub.f32 %v5511, %v5766
        %v5768 = vand.u32 %v5767, 4294901760
        %5769 = vmatpush.msra.mxu0 %v5768
        %v5770 = vand.u32 %v5510, 4294901760
        %v5771 = vsub.f32 %v5510, %v5770
        %v5772 = vand.u32 %v5771, 4294901760
        %5773 = vmatpush.msra.mxu0 %v5772
        %v5774 = vand.u32 %v5509, 4294901760
        %v5775 = vsub.f32 %v5509, %v5774
        %v5776 = vand.u32 %v5775, 4294901760
        %5777 = vmatpush.msra.mxu0 %v5776
        %v5778 = vand.u32 %v5508, 4294901760
        %v5779 = vsub.f32 %v5508, %v5778
        %v5780 = vand.u32 %v5779, 4294901760
        %5781 = vmatpush.msra.mxu0 %v5780
        %v5782 = vand.u32 %v5507, 4294901760
        %v5783 = vsub.f32 %v5507, %v5782
        %v5784 = vand.u32 %v5783, 4294901760
        %5785 = vmatpush.msra.mxu0 %v5784
        %v5786 = vand.u32 %v5506, 4294901760
        %v5787 = vsub.f32 %v5506, %v5786
        %v5788 = vand.u32 %v5787, 4294901760
        %5789 = vmatpush.msra.mxu0 %v5788
        %v5790 = vand.u32 %v5505, 4294901760
        %v5791 = vsub.f32 %v5505, %v5790
        %v5792 = vand.u32 %v5791, 4294901760
        %5793 = vmatpush.msra.mxu0 %v5792
        %v5794 = vand.u32 %v5504, 4294901760
        %v5795 = vsub.f32 %v5504, %v5794
        %v5796 = vand.u32 %v5795, 4294901760
        %5797 = vmatpush.msra.mxu0 %v5796
        %v5798 = vand.u32 %v5503, 4294901760
        %v5799 = vsub.f32 %v5503, %v5798
        %v5800 = vand.u32 %v5799, 4294901760
        %5801 = vmatpush.msra.mxu0 %v5800
        %v5802 = vand.u32 %v5502, 4294901760
        %v5803 = vsub.f32 %v5502, %v5802
        %v5804 = vand.u32 %v5803, 4294901760
        %5805 = vmatpush.msra.mxu0 %v5804
        %v5806 = vand.u32 %v5501, 4294901760
        %v5807 = vsub.f32 %v5501, %v5806
        %v5808 = vand.u32 %v5807, 4294901760
        %5809 = vmatpush.msra.mxu0 %v5808
        %v5810 = vand.u32 %v5500, 4294901760
        %v5811 = vsub.f32 %v5500, %v5810
        %v5812 = vand.u32 %v5811, 4294901760
        %5813 = vmatpush.msra.mxu0 %v5812
        %v5814 = vand.u32 %v5499, 4294901760
        %v5815 = vsub.f32 %v5499, %v5814
        %v5816 = vand.u32 %v5815, 4294901760
        %5817 = vmatpush.msra.mxu0 %v5816
        %v5818 = vand.u32 %v5498, 4294901760
        %5819 = vmatmul.f32.gmra.mxu0 %v5818
        %v5820 = vpop.f32.mrf.mxu0
        %v5821 = vadd.f32 %v5752, %v5820
        %5822 = vdwg.mxu0
        %v5823 = vand.u32 %v5514, 4294901760
        %5824 = vmatpush.msra.mxu0 %v5823
        %v5825 = vand.u32 %v5513, 4294901760
        %5826 = vmatpush.msra.mxu0 %v5825
        %v5827 = vand.u32 %v5512, 4294901760
        %5828 = vmatpush.msra.mxu0 %v5827
        %v5829 = vand.u32 %v5511, 4294901760
        %5830 = vmatpush.msra.mxu0 %v5829
        %v5831 = vand.u32 %v5510, 4294901760
        %5832 = vmatpush.msra.mxu0 %v5831
        %v5833 = vand.u32 %v5509, 4294901760
        %5834 = vmatpush.msra.mxu0 %v5833
        %v5835 = vand.u32 %v5508, 4294901760
        %5836 = vmatpush.msra.mxu0 %v5835
        %v5837 = vand.u32 %v5507, 4294901760
        %5838 = vmatpush.msra.mxu0 %v5837
        %v5839 = vand.u32 %v5506, 4294901760
        %5840 = vmatpush.msra.mxu0 %v5839
        %v5841 = vand.u32 %v5505, 4294901760
        %5842 = vmatpush.msra.mxu0 %v5841
        %v5843 = vand.u32 %v5504, 4294901760
        %5844 = vmatpush.msra.mxu0 %v5843
        %v5845 = vand.u32 %v5503, 4294901760
        %5846 = vmatpush.msra.mxu0 %v5845
        %v5847 = vand.u32 %v5502, 4294901760
        %5848 = vmatpush.msra.mxu0 %v5847
        %v5849 = vand.u32 %v5501, 4294901760
        %5850 = vmatpush.msra.mxu0 %v5849
        %v5851 = vand.u32 %v5500, 4294901760
        %5852 = vmatpush.msra.mxu0 %v5851
        %v5853 = vand.u32 %v5499, 4294901760
        %5854 = vmatpush.msra.mxu0 %v5853
        %v5855 = vand.u32 %v5498, 4294901760
        %5856 = vmatmul.f32.gmra.mxu0 %v5855
        %v5857 = vpop.f32.mrf.mxu0
        %v5858 = vadd.f32 %v5821, %v5857
        %5859 = vdwg.mxu0
        %v5860 = vmax.f32 %v5858, 0.0
        %v5861 = vld [vmem:[#allocation10] sm:$0xff]
        %v5862 = vld [vmem:[#allocation10 + $0x8] sm:$0xff]
        %v5863 = vld [vmem:[#allocation10 + $0x10] sm:$0xff]
        %v5864 = vld [vmem:[#allocation10 + $0x18] sm:$0xff]
        %v5865 = vld [vmem:[#allocation10 + $0x20] sm:$0xff]
        %v5866 = vld [vmem:[#allocation10 + $0x28] sm:$0xff]
        %v5867 = vld [vmem:[#allocation10 + $0x30] sm:$0xff]
        %v5868 = vld [vmem:[#allocation10 + $0x38] sm:$0xff]
        %v5869 = vld [vmem:[#allocation10 + $0x40] sm:$0xff]
        %v5870 = vld [vmem:[#allocation10 + $0x48] sm:$0xff]
        %v5871 = vld [vmem:[#allocation10 + $0x50] sm:$0xff]
        %v5872 = vld [vmem:[#allocation10 + $0x58] sm:$0xff]
        %v5873 = vld [vmem:[#allocation10 + $0x60] sm:$0xff]
        %v5874 = vld [vmem:[#allocation10 + $0x68] sm:$0xff]
        %v5875 = vld [vmem:[#allocation10 + $0x70] sm:$0xff]
        %v5876 = vld [vmem:[#allocation10 + $0x78] sm:$0xff]
        %v5877 = vld [vmem:[%s8] sm:$0x1]
        %v5879 = vperm.slane %v5877, 0
        %v5881 = vand.u32 %v5876, 4294901760
        %5882 = vmatpush.msra.mxu0 %v5881
        %v5883 = vand.u32 %v5875, 4294901760
        %5884 = vmatpush.msra.mxu0 %v5883
        %v5885 = vand.u32 %v5874, 4294901760
        %5886 = vmatpush.msra.mxu0 %v5885
        %v5887 = vand.u32 %v5873, 4294901760
        %5888 = vmatpush.msra.mxu0 %v5887
        %v5889 = vand.u32 %v5872, 4294901760
        %5890 = vmatpush.msra.mxu0 %v5889
        %v5891 = vand.u32 %v5871, 4294901760
        %5892 = vmatpush.msra.mxu0 %v5891
        %v5893 = vand.u32 %v5870, 4294901760
        %5894 = vmatpush.msra.mxu0 %v5893
        %v5895 = vand.u32 %v5869, 4294901760
        %5896 = vmatpush.msra.mxu0 %v5895
        %v5897 = vand.u32 %v5868, 4294901760
        %5898 = vmatpush.msra.mxu0 %v5897
        %v5899 = vand.u32 %v5867, 4294901760
        %5900 = vmatpush.msra.mxu0 %v5899
        %v5901 = vand.u32 %v5866, 4294901760
        %5902 = vmatpush.msra.mxu0 %v5901
        %v5903 = vand.u32 %v5865, 4294901760
        %5904 = vmatpush.msra.mxu0 %v5903
        %v5905 = vand.u32 %v5864, 4294901760
        %5906 = vmatpush.msra.mxu0 %v5905
        %v5907 = vand.u32 %v5863, 4294901760
        %5908 = vmatpush.msra.mxu0 %v5907
        %v5909 = vand.u32 %v5862, 4294901760
        %5910 = vmatpush.msra.mxu0 %v5909
        %v5911 = vand.u32 %v5861, 4294901760
        %5912 = vmatpush.msra.mxu0 %v5911
        %v5913 = vand.u32 %v5860, 4294901760
        %v5914 = vsub.f32 %v5860, %v5913
        %v5915 = vand.u32 %v5914, 4294901760
        %v5916 = vsub.f32 %v5914, %v5915
        %v5917 = vand.u32 %v5916, 4294901760
        %5918 = vmatmul.f32.gmra.mxu0 %v5917
        %v5919 = vpop.f32.mrf.mxu0
        %v5920 = vadd.f32 %v5879, %v5919
        %5921 = vdwg.mxu0
        %v5922 = vand.u32 %v5876, 4294901760
        %v5923 = vsub.f32 %v5876, %v5922
        %v5924 = vand.u32 %v5923, 4294901760
        %v5925 = vsub.f32 %v5923, %v5924
        %v5926 = vand.u32 %v5925, 4294901760
        %5927 = vmatpush.msra.mxu0 %v5926
        %v5928 = vand.u32 %v5875, 4294901760
        %v5929 = vsub.f32 %v5875, %v5928
        %v5930 = vand.u32 %v5929, 4294901760
        %v5931 = vsub.f32 %v5929, %v5930
        %v5932 = vand.u32 %v5931, 4294901760
        %5933 = vmatpush.msra.mxu0 %v5932
        %v5934 = vand.u32 %v5874, 4294901760
        %v5935 = vsub.f32 %v5874, %v5934
        %v5936 = vand.u32 %v5935, 4294901760
        %v5937 = vsub.f32 %v5935, %v5936
        %v5938 = vand.u32 %v5937, 4294901760
        %5939 = vmatpush.msra.mxu0 %v5938
        %v5940 = vand.u32 %v5873, 4294901760
        %v5941 = vsub.f32 %v5873, %v5940
        %v5942 = vand.u32 %v5941, 4294901760
        %v5943 = vsub.f32 %v5941, %v5942
        %v5944 = vand.u32 %v5943, 4294901760
        %5945 = vmatpush.msra.mxu0 %v5944
        %v5946 = vand.u32 %v5872, 4294901760
        %v5947 = vsub.f32 %v5872, %v5946
        %v5948 = vand.u32 %v5947, 4294901760
        %v5949 = vsub.f32 %v5947, %v5948
        %v5950 = vand.u32 %v5949, 4294901760
        %5951 = vmatpush.msra.mxu0 %v5950
        %v5952 = vand.u32 %v5871, 4294901760
        %v5953 = vsub.f32 %v5871, %v5952
        %v5954 = vand.u32 %v5953, 4294901760
        %v5955 = vsub.f32 %v5953, %v5954
        %v5956 = vand.u32 %v5955, 4294901760
        %5957 = vmatpush.msra.mxu0 %v5956
        %v5958 = vand.u32 %v5870, 4294901760
        %v5959 = vsub.f32 %v5870, %v5958
        %v5960 = vand.u32 %v5959, 4294901760
        %v5961 = vsub.f32 %v5959, %v5960
        %v5962 = vand.u32 %v5961, 4294901760
        %5963 = vmatpush.msra.mxu0 %v5962
        %v5964 = vand.u32 %v5869, 4294901760
        %v5965 = vsub.f32 %v5869, %v5964
        %v5966 = vand.u32 %v5965, 4294901760
        %v5967 = vsub.f32 %v5965, %v5966
        %v5968 = vand.u32 %v5967, 4294901760
        %5969 = vmatpush.msra.mxu0 %v5968
        %v5970 = vand.u32 %v5868, 4294901760
        %v5971 = vsub.f32 %v5868, %v5970
        %v5972 = vand.u32 %v5971, 4294901760
        %v5973 = vsub.f32 %v5971, %v5972
        %v5974 = vand.u32 %v5973, 4294901760
        %5975 = vmatpush.msra.mxu0 %v5974
        %v5976 = vand.u32 %v5867, 4294901760
        %v5977 = vsub.f32 %v5867, %v5976
        %v5978 = vand.u32 %v5977, 4294901760
        %v5979 = vsub.f32 %v5977, %v5978
        %v5980 = vand.u32 %v5979, 4294901760
        %5981 = vmatpush.msra.mxu0 %v5980
        %v5982 = vand.u32 %v5866, 4294901760
        %v5983 = vsub.f32 %v5866, %v5982
        %v5984 = vand.u32 %v5983, 4294901760
        %v5985 = vsub.f32 %v5983, %v5984
        %v5986 = vand.u32 %v5985, 4294901760
        %5987 = vmatpush.msra.mxu0 %v5986
        %v5988 = vand.u32 %v5865, 4294901760
        %v5989 = vsub.f32 %v5865, %v5988
        %v5990 = vand.u32 %v5989, 4294901760
        %v5991 = vsub.f32 %v5989, %v5990
        %v5992 = vand.u32 %v5991, 4294901760
        %5993 = vmatpush.msra.mxu0 %v5992
        %v5994 = vand.u32 %v5864, 4294901760
        %v5995 = vsub.f32 %v5864, %v5994
        %v5996 = vand.u32 %v5995, 4294901760
        %v5997 = vsub.f32 %v5995, %v5996
        %v5998 = vand.u32 %v5997, 4294901760
        %5999 = vmatpush.msra.mxu0 %v5998
        %v6000 = vand.u32 %v5863, 4294901760
        %v6001 = vsub.f32 %v5863, %v6000
        %v6002 = vand.u32 %v6001, 4294901760
        %v6003 = vsub.f32 %v6001, %v6002
        %v6004 = vand.u32 %v6003, 4294901760
        %6005 = vmatpush.msra.mxu0 %v6004
        %v6006 = vand.u32 %v5862, 4294901760
        %v6007 = vsub.f32 %v5862, %v6006
        %v6008 = vand.u32 %v6007, 4294901760
        %v6009 = vsub.f32 %v6007, %v6008
        %v6010 = vand.u32 %v6009, 4294901760
        %6011 = vmatpush.msra.mxu0 %v6010
        %v6012 = vand.u32 %v5861, 4294901760
        %v6013 = vsub.f32 %v5861, %v6012
        %v6014 = vand.u32 %v6013, 4294901760
        %v6015 = vsub.f32 %v6013, %v6014
        %v6016 = vand.u32 %v6015, 4294901760
        %6017 = vmatpush.msra.mxu0 %v6016
        %v6018 = vand.u32 %v5860, 4294901760
        %6019 = vmatmul.f32.gmra.mxu0 %v6018
        %v6020 = vpop.f32.mrf.mxu0
        %v6021 = vadd.f32 %v5920, %v6020
        %6022 = vdwg.mxu0
        %v6023 = vand.u32 %v5876, 4294901760
        %v6024 = vsub.f32 %v5876, %v6023
        %6025 = vmatpush.msra.mxu0 %v6024
        %v6026 = vand.u32 %v5875, 4294901760
        %v6027 = vsub.f32 %v5875, %v6026
        %6028 = vmatpush.msra.mxu0 %v6027
        %v6029 = vand.u32 %v5874, 4294901760
        %v6030 = vsub.f32 %v5874, %v6029
        %6031 = vmatpush.msra.mxu0 %v6030
        %v6032 = vand.u32 %v5873, 4294901760
        %v6033 = vsub.f32 %v5873, %v6032
        %6034 = vmatpush.msra.mxu0 %v6033
        %v6035 = vand.u32 %v5872, 4294901760
        %v6036 = vsub.f32 %v5872, %v6035
        %6037 = vmatpush.msra.mxu0 %v6036
        %v6038 = vand.u32 %v5871, 4294901760
        %v6039 = vsub.f32 %v5871, %v6038
        %6040 = vmatpush.msra.mxu0 %v6039
        %v6041 = vand.u32 %v5870, 4294901760
        %v6042 = vsub.f32 %v5870, %v6041
        %6043 = vmatpush.msra.mxu0 %v6042
        %v6044 = vand.u32 %v5869, 4294901760
        %v6045 = vsub.f32 %v5869, %v6044
        %6046 = vmatpush.msra.mxu0 %v6045
        %v6047 = vand.u32 %v5868, 4294901760
        %v6048 = vsub.f32 %v5868, %v6047
        %6049 = vmatpush.msra.mxu0 %v6048
        %v6050 = vand.u32 %v5867, 4294901760
        %v6051 = vsub.f32 %v5867, %v6050
        %6052 = vmatpush.msra.mxu0 %v6051
        %v6053 = vand.u32 %v5866, 4294901760
        %v6054 = vsub.f32 %v5866, %v6053
        %6055 = vmatpush.msra.mxu0 %v6054
        %v6056 = vand.u32 %v5865, 4294901760
        %v6057 = vsub.f32 %v5865, %v6056
        %6058 = vmatpush.msra.mxu0 %v6057
        %v6059 = vand.u32 %v5864, 4294901760
        %v6060 = vsub.f32 %v5864, %v6059
        %6061 = vmatpush.msra.mxu0 %v6060
        %v6062 = vand.u32 %v5863, 4294901760
        %v6063 = vsub.f32 %v5863, %v6062
        %6064 = vmatpush.msra.mxu0 %v6063
        %v6065 = vand.u32 %v5862, 4294901760
        %v6066 = vsub.f32 %v5862, %v6065
        %6067 = vmatpush.msra.mxu0 %v6066
        %v6068 = vand.u32 %v5861, 4294901760
        %v6069 = vsub.f32 %v5861, %v6068
        %6070 = vmatpush.msra.mxu0 %v6069
        %v6071 = vand.u32 %v5860, 4294901760
        %v6072 = vsub.f32 %v5860, %v6071
        %6073 = vmatmul.f32.gmra.mxu0 %v6072
        %v6074 = vpop.f32.mrf.mxu0
        %v6075 = vadd.f32 %v6021, %v6074
        %6076 = vdwg.mxu0
        %v6077 = vand.u32 %v5876, 4294901760
        %6078 = vmatpush.msra.mxu0 %v6077
        %v6079 = vand.u32 %v5875, 4294901760
        %6080 = vmatpush.msra.mxu0 %v6079
        %v6081 = vand.u32 %v5874, 4294901760
        %6082 = vmatpush.msra.mxu0 %v6081
        %v6083 = vand.u32 %v5873, 4294901760
        %6084 = vmatpush.msra.mxu0 %v6083
        %v6085 = vand.u32 %v5872, 4294901760
        %6086 = vmatpush.msra.mxu0 %v6085
        %v6087 = vand.u32 %v5871, 4294901760
        %6088 = vmatpush.msra.mxu0 %v6087
        %v6089 = vand.u32 %v5870, 4294901760
        %6090 = vmatpush.msra.mxu0 %v6089
        %v6091 = vand.u32 %v5869, 4294901760
        %6092 = vmatpush.msra.mxu0 %v6091
        %v6093 = vand.u32 %v5868, 4294901760
        %6094 = vmatpush.msra.mxu0 %v6093
        %v6095 = vand.u32 %v5867, 4294901760
        %6096 = vmatpush.msra.mxu0 %v6095
        %v6097 = vand.u32 %v5866, 4294901760
        %6098 = vmatpush.msra.mxu0 %v6097
        %v6099 = vand.u32 %v5865, 4294901760
        %6100 = vmatpush.msra.mxu0 %v6099
        %v6101 = vand.u32 %v5864, 4294901760
        %6102 = vmatpush.msra.mxu0 %v6101
        %v6103 = vand.u32 %v5863, 4294901760
        %6104 = vmatpush.msra.mxu0 %v6103
        %v6105 = vand.u32 %v5862, 4294901760
        %6106 = vmatpush.msra.mxu0 %v6105
        %v6107 = vand.u32 %v5861, 4294901760
        %6108 = vmatpush.msra.mxu0 %v6107
        %v6109 = vand.u32 %v5860, 4294901760
        %v6110 = vsub.f32 %v5860, %v6109
        %v6111 = vand.u32 %v6110, 4294901760
        %6112 = vmatmul.f32.gmra.mxu0 %v6111
        %v6113 = vpop.f32.mrf.mxu0
        %v6114 = vadd.f32 %v6075, %v6113
        %6115 = vdwg.mxu0
        %v6116 = vand.u32 %v5876, 4294901760
        %v6117 = vsub.f32 %v5876, %v6116
        %v6118 = vand.u32 %v6117, 4294901760
        %6119 = vmatpush.msra.mxu0 %v6118
        %v6120 = vand.u32 %v5875, 4294901760
        %v6121 = vsub.f32 %v5875, %v6120
        %v6122 = vand.u32 %v6121, 4294901760
        %6123 = vmatpush.msra.mxu0 %v6122
        %v6124 = vand.u32 %v5874, 4294901760
        %v6125 = vsub.f32 %v5874, %v6124
        %v6126 = vand.u32 %v6125, 4294901760
        %6127 = vmatpush.msra.mxu0 %v6126
        %v6128 = vand.u32 %v5873, 4294901760
        %v6129 = vsub.f32 %v5873, %v6128
        %v6130 = vand.u32 %v6129, 4294901760
        %6131 = vmatpush.msra.mxu0 %v6130
        %v6132 = vand.u32 %v5872, 4294901760
        %v6133 = vsub.f32 %v5872, %v6132
        %v6134 = vand.u32 %v6133, 4294901760
        %6135 = vmatpush.msra.mxu0 %v6134
        %v6136 = vand.u32 %v5871, 4294901760
        %v6137 = vsub.f32 %v5871, %v6136
        %v6138 = vand.u32 %v6137, 4294901760
        %6139 = vmatpush.msra.mxu0 %v6138
        %v6140 = vand.u32 %v5870, 4294901760
        %v6141 = vsub.f32 %v5870, %v6140
        %v6142 = vand.u32 %v6141, 4294901760
        %6143 = vmatpush.msra.mxu0 %v6142
        %v6144 = vand.u32 %v5869, 4294901760
        %v6145 = vsub.f32 %v5869, %v6144
        %v6146 = vand.u32 %v6145, 4294901760
        %6147 = vmatpush.msra.mxu0 %v6146
        %v6148 = vand.u32 %v5868, 4294901760
        %v6149 = vsub.f32 %v5868, %v6148
        %v6150 = vand.u32 %v6149, 4294901760
        %6151 = vmatpush.msra.mxu0 %v6150
        %v6152 = vand.u32 %v5867, 4294901760
        %v6153 = vsub.f32 %v5867, %v6152
        %v6154 = vand.u32 %v6153, 4294901760
        %6155 = vmatpush.msra.mxu0 %v6154
        %v6156 = vand.u32 %v5866, 4294901760
        %v6157 = vsub.f32 %v5866, %v6156
        %v6158 = vand.u32 %v6157, 4294901760
        %6159 = vmatpush.msra.mxu0 %v6158
        %v6160 = vand.u32 %v5865, 4294901760
        %v6161 = vsub.f32 %v5865, %v6160
        %v6162 = vand.u32 %v6161, 4294901760
        %6163 = vmatpush.msra.mxu0 %v6162
        %v6164 = vand.u32 %v5864, 4294901760
        %v6165 = vsub.f32 %v5864, %v6164
        %v6166 = vand.u32 %v6165, 4294901760
        %6167 = vmatpush.msra.mxu0 %v6166
        %v6168 = vand.u32 %v5863, 4294901760
        %v6169 = vsub.f32 %v5863, %v6168
        %v6170 = vand.u32 %v6169, 4294901760
        %6171 = vmatpush.msra.mxu0 %v6170
        %v6172 = vand.u32 %v5862, 4294901760
        %v6173 = vsub.f32 %v5862, %v6172
        %v6174 = vand.u32 %v6173, 4294901760
        %6175 = vmatpush.msra.mxu0 %v6174
        %v6176 = vand.u32 %v5861, 4294901760
        %v6177 = vsub.f32 %v5861, %v6176
        %v6178 = vand.u32 %v6177, 4294901760
        %6179 = vmatpush.msra.mxu0 %v6178
        %v6180 = vand.u32 %v5860, 4294901760
        %6181 = vmatmul.f32.gmra.mxu0 %v6180
        %v6182 = vpop.f32.mrf.mxu0
        %v6183 = vadd.f32 %v6114, %v6182
        %6184 = vdwg.mxu0
        %v6185 = vand.u32 %v5876, 4294901760
        %6186 = vmatpush.msra.mxu0 %v6185
        %v6187 = vand.u32 %v5875, 4294901760
        %6188 = vmatpush.msra.mxu0 %v6187
        %v6189 = vand.u32 %v5874, 4294901760
        %6190 = vmatpush.msra.mxu0 %v6189
        %v6191 = vand.u32 %v5873, 4294901760
        %6192 = vmatpush.msra.mxu0 %v6191
        %v6193 = vand.u32 %v5872, 4294901760
        %6194 = vmatpush.msra.mxu0 %v6193
        %v6195 = vand.u32 %v5871, 4294901760
        %6196 = vmatpush.msra.mxu0 %v6195
        %v6197 = vand.u32 %v5870, 4294901760
        %6198 = vmatpush.msra.mxu0 %v6197
        %v6199 = vand.u32 %v5869, 4294901760
        %6200 = vmatpush.msra.mxu0 %v6199
        %v6201 = vand.u32 %v5868, 4294901760
        %6202 = vmatpush.msra.mxu0 %v6201
        %v6203 = vand.u32 %v5867, 4294901760
        %6204 = vmatpush.msra.mxu0 %v6203
        %v6205 = vand.u32 %v5866, 4294901760
        %6206 = vmatpush.msra.mxu0 %v6205
        %v6207 = vand.u32 %v5865, 4294901760
        %6208 = vmatpush.msra.mxu0 %v6207
        %v6209 = vand.u32 %v5864, 4294901760
        %6210 = vmatpush.msra.mxu0 %v6209
        %v6211 = vand.u32 %v5863, 4294901760
        %6212 = vmatpush.msra.mxu0 %v6211
        %v6213 = vand.u32 %v5862, 4294901760
        %6214 = vmatpush.msra.mxu0 %v6213
        %v6215 = vand.u32 %v5861, 4294901760
        %6216 = vmatpush.msra.mxu0 %v6215
        %v6217 = vand.u32 %v5860, 4294901760
        %6218 = vmatmul.f32.gmra.mxu0 %v6217
        %v6219 = vpop.f32.mrf.mxu0
        %v6220 = vadd.f32 %v6183, %v6219
        %6221 = vdwg.mxu0
        %6222 = vset.pattern.permute.xlu0 73
        %6223 = vperm.xlu0 %6222, %v416
        %v6224 = vpop.permute.xlu0 %6223
        %v6226 = vmul.f32 %v6220, %v6224
        %6227 = vst [vmem:[%s415] sm:$0xff] %v6226
        %s6228 = sand.u32 %s230, 1
        %s6229 = scalar_lea.sflag [#allocation4], %s6228
        %s6230 = sand.u32 %s230, 1
        %s6231 = smul.addr %s6230, 8
        %s6232 = scalar_lea.vmem [#allocation11], %s6231
        // Predicated region
        $region77: #{tpu_custom_call.1} parent=55 // pred_check
          %p6233 = pneg %p240
        $region78: #{tpu_custom_call.1} parent=55 // pred_check_branch
          %6235 = sbr.rel (%p6233) target = $region80
        $region79: #{tpu_custom_call.1} parent=55 // pred_region
          %6237 = vsyncadd %s6229, 0
          %s6238 = smul.addr %s28, 8
          %s6239 = scalar_lea.hbm %s9, %s6238
          %s6241 = sshll.u32 %s6232, 4
          %s6242 = int_to_ptr.vmem [resolvable:$true] %s6241
          %s6243 = sshll.u32 %s6239, 4
          %s6244 = int_to_ptr.hbm [resolvable:$true] %s6243
          %6246 = dma.vmem_to_hbm [thread:$0]  %s6242, 128, %s6244, %s6229
        $region80: #{tpu_custom_call.1} parent=55 // pred_fallthru
          _
      $region56: #{tpu_custom_call.1} parent=5 // pred_fallthru
        _
      %p6247 = scmp.le.s32.totalorder 2, %s23
      // Predicated region
      $region81: #{tpu_custom_call.1} parent=5 // pred_check
        %p6248 = pneg %p6247
      $region82: #{tpu_custom_call.1} parent=5 // pred_check_branch
        %6250 = sbr.rel (%p6248) target = $region84
      $region83: #{tpu_custom_call.1} parent=5 // pred_region
        %s6251 = ssub.s32 %s23, 2
        // Predicated region
        $region85: #{tpu_custom_call.1} parent=83 // pred_check
          %p6252 = pneg %p246
        $region86: #{tpu_custom_call.1} parent=83 // pred_check_branch
          %6254 = sbr.rel (%p6252) target = $region88
        $region87: #{tpu_custom_call.1} parent=83 // pred_region
          %s6255 = sand.u32 %s231, 1
          %s6256 = scalar_lea.sflag [#allocation4], %s6255
          %s6257 = sand.u32 %s231, 1
          %s6258 = smul.addr %s6257, 8
          %s6259 = scalar_lea.vmem [#allocation11], %s6258
          %6261 = dma.done %s6256, 128
        $region88: #{tpu_custom_call.1} parent=83 // pred_fallthru
          _
      $region84: #{tpu_custom_call.1} parent=5 // pred_fallthru
        _
    $region6: #{tpu_custom_call.1} parent=1 // loop_footer
      %s27 = sadd.s32 1, %s23
    $region7: #{tpu_custom_call.1} parent=1 // loop_footer_branch
      %22 = sbr.rel target = $region3
    $region8: #{tpu_custom_call.1} parent=1 // loop_exit
      _
    %6262 = vsyncpa [#allocation3], 1
    %s6263 = scalar_lea.sflag [#allocation3], 1
    %6264 = vsyncpa %s6263, 1
    %6265 = vsyncpa [#allocation6], 1
    %6266 = vsyncpa [#allocation9], 1
    %6267 = vsyncpa [#allocation4], 1
    %s6268 = scalar_lea.sflag [#allocation4], 1
    %6269 = vsyncpa %s6268, 1

</llo_original>
